<compile_context>
chip_gen: v5e
topology: v5e:2x2
jax: 0.10.0
libtpu: 0.0.40
codegen_flags: <defaults>
</compile_context>

<pallas_src>
import math

import jax
import jax.numpy as jnp
from jax import lax
from jax.experimental import pallas as pl
from jax.experimental.pallas import tpu as pltpu

# ---- module hyper-parameters (small, consistent with the PyTorch module) ----
EMBED_DIM = 32
NUM_HEADS = 4
GROUP_SIZE = 16
FFN_DIM = EMBED_DIM * 2                 # self.ffn_dim = embed_dim * 2
HEAD_DIM = EMBED_DIM // NUM_HEADS
KEY_DIM = EMBED_DIM // NUM_HEADS
SCALING = KEY_DIM ** -0.5
EPS = 1e-6
MAX_WINDOWS_PER_BLOCK = 64              # 1024 tokens per grid step

_DECAYS = [math.log(1.0 - 2.0 ** (-5.0 - h)) for h in range(NUM_HEADS)]
_DN = (((1,), (0,)), ((), ()))          # plain 2-D matmul dimension_numbers


def _rms_norm(x, weight=None, eps=EPS):
    y = x * lax.rsqrt(jnp.mean(x * x, axis=-1, keepdims=True) + eps)
    if weight is not None:
        y = y * weight
    return y


def retention_layer_kernel(x_ref, pe_ref, coords_ref,
                           w_qk_ref, w_vg_ref, wo_ref,
                           ret_norm_w_ref, fin_norm_w_ref,
                           w_ffn_in_ref, w_ffn_out_ref,
                           o_ref):
    """One block of B windows: (B*GROUP_SIZE, EMBED_DIM) tokens."""
    x = x_ref[...]                      # (N, D) f32, N = B * GROUP_SIZE
    pe = pe_ref[...]                    # (N, D) f32
    N = x.shape[0]
    B = N // GROUP_SIZE
    S = GROUP_SIZE
    D = EMBED_DIM

    # ---- Manhattan distance between voxel coords, all windows at once ----
    c = coords_ref[...]                 # (3, B, S) f32  (x/y/z coordinate planes)
    dist = (jnp.abs(c[0][:, :, None] - c[0][:, None, :])
            + jnp.abs(c[1][:, :, None] - c[1][:, None, :])
            + jnp.abs(c[2][:, :, None] - c[2][:, None, :]))          # (B, S, S)

    # ---- retention_layer_norm (RMSNorm, pre-norm) ----
    xn = _rms_norm(x, ret_norm_w_ref[...])

    # ---- MultiScaleRetentionSoftmax projections (pos-enc added to q/k input) ----
    # TODO(synk): exact MultiScaleRetentionSoftmax source not provided; this is
    # the standard torchscale MultiScaleRetention parallel path with softmax
    # normalization of the decay-masked qk matrix, pe added to the q/k input.
    xp = xn + pe
    qk_proj = lax.dot_general(xp, w_qk_ref[...], _DN,
                              preferred_element_type=jnp.float32)    # (N, 2D) = [q | k]
    vg_proj = lax.dot_general(xn, w_vg_ref[...], _DN,
                              preferred_element_type=jnp.float32)    # (N, 2D) = [v | g]

    q = qk_proj[:, :D].reshape(B, S, D)
    k = (qk_proj[:, D:] * SCALING).reshape(B, S, D)
    v = vg_proj[:, :D].reshape(B, S, D)
    g = vg_proj[:, D:].reshape(B, S, D)

    wo = wo_ref[...]                    # (D, D)
    ret = jnp.zeros((N, D), jnp.float32)

    # Static 4-way head unroll; every op inside is batched over ALL B windows.
    for h in range(NUM_HEADS):
        # decay mask: exp(dist * log(1 - 2^(-5-h))), row-normalized by sqrt(sum).
        # (nan_to_num dropped: dist is finite and the zero diagonal -> row sum >= 1.)
        mask = jnp.exp(dist * _DECAYS[h])                             # (B, S, S)
        mask = mask * lax.rsqrt(jnp.sum(mask, axis=-1, keepdims=True))

        lo, hi = h * KEY_DIM, (h + 1) * KEY_DIM
        qh, kh = q[:, :, lo:hi], k[:, :, lo:hi]                       # (B, S, kd)
        vh, gh = v[:, :, lo:hi], g[:, :, lo:hi]                       # (B, S, hd)

        qk = jnp.einsum('bqc,bkc->bqk', qh, kh,
                        preferred_element_type=jnp.float32)           # (B, S, S)

        # softmax over keys, denominator reciprocal on the EUP (free slot)
        s = qk * mask
        s = s - jnp.max(s, axis=-1, keepdims=True)
        e = jnp.exp(s)
        att = e * pl.reciprocal(jnp.sum(e, axis=-1, keepdims=True), approx=True)

        oh = jnp.einsum('bqk,bkc->bqc', att, vh,
                        preferred_element_type=jnp.float32)           # (B, S, hd)

        # group_norm: RMSNorm over head_dim, no affine
        oh = _rms_norm(oh)

        # gate (swish), then fold this head's out_proj row-block:
        # out_proj(concat_h(silu(g_h)*o_h)) == sum_h (silu(g_h)*o_h) @ Wo[h_rows]
        gated = (jax.nn.silu(gh) * oh).reshape(N, HEAD_DIM)
        ret = ret + lax.dot_general(gated, wo[lo:hi, :], _DN,
                                    preferred_element_type=jnp.float32)

    # residual (drop_path == Identity for drop_path=0.0)
    x1 = x + ret

    # ---- final_layer_norm + GLU FFN (gate & fc1 fused into one 128-wide matmul) ----
    yn = _rms_norm(x1, fin_norm_w_ref[...])
    ffn_in = lax.dot_general(yn, w_ffn_in_ref[...], _DN,
                             preferred_element_type=jnp.float32)      # (N, 2*FFN_DIM)
    gate = ffn_in[:, :FFN_DIM]
    hid = jax.nn.silu(ffn_in[:, FFN_DIM:]) * gate                     # GLU, act = swish
    ffn_out = lax.dot_general(hid, w_ffn_out_ref[...], _DN,
                              preferred_element_type=jnp.float32)     # (N, D)

    o_ref[...] = x1 + ffn_out


def retention_encoder_layer(x, pe, coords, params,
                            max_windows_per_block=MAX_WINDOWS_PER_BLOCK):
    """RetentionEncoderLayer.forward on padded window layout (M, D), M % GROUP_SIZE == 0."""
    M, D = x.shape
    assert M % GROUP_SIZE == 0 and D == EMBED_DIM
    num_groups = M // GROUP_SIZE

    # windows per grid step (batched); pad the window count if needed
    win_per_block = min(num_groups, max_windows_per_block)
    num_blocks = -(-num_groups // win_per_block)
    ng_pad = num_blocks * win_per_block
    pad_rows = (ng_pad - num_groups) * GROUP_SIZE

    # per-window x/y/z coordinate planes; the Manhattan distance is computed in-kernel
    c = coords.reshape(num_groups, GROUP_SIZE, -1).astype(jnp.float32)
    planes = jnp.stack([c[:, :, 1], c[:, :, 2], c[:, :, 3]], axis=0)   # (3, NG, S)

    if pad_rows:
        x = jnp.concatenate([x, jnp.zeros((pad_rows, D), x.dtype)], axis=0)
        pe = jnp.concatenate([pe, jnp.zeros((pad_rows, D), pe.dtype)], axis=0)
        planes = jnp.concatenate(
            [planes, jnp.zeros((3, ng_pad - num_groups, GROUP_SIZE), planes.dtype)], axis=1)

    tok_rows = win_per_block * GROUP_SIZE
    tok_spec = pl.BlockSpec((tok_rows, D), lambda g: (g, 0))

    def const_spec(shape):
        n = len(shape)
        return pl.BlockSpec(shape, lambda g, _n=n: (0,) * _n)

    in_specs = [
        tok_spec,                                                       # x
        tok_spec,                                                       # pe
        pl.BlockSpec((3, win_per_block, GROUP_SIZE), lambda g: (0, g, 0)),  # coord planes
        const_spec((D, 2 * D)),                                         # fused wq|wk
        const_spec((D, 2 * D)),                                         # fused wv|wg
        const_spec((D, D)),                                             # wo
        const_spec((1, D)), const_spec((1, D)),                         # RMSNorm weights
        const_spec((D, 2 * FFN_DIM)),                                   # fused gate|fc1
        const_spec((FFN_DIM, D)),                                       # fc2
    ]

    out = pl.pallas_call(
        retention_layer_kernel,
        out_shape=jax.ShapeDtypeStruct((ng_pad * GROUP_SIZE, D), jnp.float32),
        grid_spec=pl.GridSpec(
            grid=(num_blocks,),
            in_specs=in_specs,
            out_specs=tok_spec,
        ),
        compiler_params=pltpu.CompilerParams(dimension_semantics=("parallel",)),
    )(x, pe, planes,
      params["w_qk"], params["w_vg"], params["wo"],
      params["ret_norm_w"], params["fin_norm_w"],
      params["w_ffn_in"], params["w_ffn_out"])
    return out[:M]


def retention_encoder_block(x, pe, mappings, coords, layer_params, direction=("x",)):
    """RetentionEncoderBlock.forward — gather/scatter glue in plain JAX."""
    for k, name in enumerate(direction):
        idx = mappings[name]
        f2w = mappings["flat2win"]
        w2f = mappings["win2flat"]
        y = retention_encoder_layer(
            x[idx][f2w], pe[idx][f2w], coords[idx][f2w], layer_params[k])
        x = x.at[idx].set(y[w2f])
    return x


# ---------------------------- pure-JAX reference ----------------------------
def retention_layer_reference(x, pe, coords, params):
    """Same assumed semantics as the kernel, written as the PyTorch module does."""
    M, D = x.shape
    ng = M // GROUP_SIZE
    residual = x
    xn = _rms_norm(x, params["ret_norm_w"])

    xg = xn.reshape(ng, GROUP_SIZE, D)
    pg = pe.reshape(ng, GROUP_SIZE, D)
    cg = coords.reshape(ng, GROUP_SIZE, -1).astype(jnp.float32)
    dist = (jnp.abs(cg[:, :, None, 1] - cg[:, None, :, 1])
            + jnp.abs(cg[:, :, None, 2] - cg[:, None, :, 2])
            + jnp.abs(cg[:, :, None, 3] - cg[:, None, :, 3]))          # (ng, S, S)

    decay = jnp.log(1.0 - 2.0 ** (-5.0 - jnp.arange(NUM_HEADS, dtype=jnp.float32)))
    mask = jnp.exp(dist[None] * decay[:, None, None, None])            # (H, ng, S, S)
    mask = mask / jnp.sqrt(jnp.sum(mask, axis=-1, keepdims=True))
    mask = mask.transpose(1, 0, 2, 3)                                   # (ng, H, S, S)

    wq, wk = params["w_qk"][:, :D], params["w_qk"][:, D:]
    wv, wg = params["w_vg"][:, :D], params["w_vg"][:, D:]
    q = (xg + pg) @ wq
    k = ((xg + pg) @ wk) * SCALING
    v = xg @ wv
    g = xg @ wg

    def split_heads(t):                                                  # (ng,S,D)->(ng,H,S,hd)
        return t.reshape(ng, GROUP_SIZE, NUM_HEADS, HEAD_DIM).transpose(0, 2, 1, 3)

    qh, kh, vh, gh = map(split_heads, (q, k, v, g))
    qk = jnp.einsum('nhqc,nhkc->nhqk', qh, kh)
    att = jax.nn.softmax(qk * mask, axis=-1)
    oh = jnp.einsum('nhqk,nhkc->nhqc', att, vh)
    oh = _rms_norm(oh)                                                   # group_norm, no affine
    oh = jax.nn.silu(gh) * oh
    oh = oh.transpose(0, 2, 1, 3).reshape(M, D)
    x1 = residual + oh @ params["wo"]

    yn = _rms_norm(x1, params["fin_norm_w"])
    ffn_in = yn @ params["w_ffn_in"]
    gate = ffn_in[:, :FFN_DIM]
    hid = jax.nn.silu(ffn_in[:, FFN_DIM:]) * gate
    return x1 + hid @ params["w_ffn_out"]


def init_layer_params(key):
    keys = jax.random.split(key, 8)

    def w(k, shape):
        return jax.random.normal(k, shape, jnp.float32) * 0.02

    # Linear weights stored pre-transposed as (in, out): y = x @ W
    wq = w(keys[0], (EMBED_DIM, EMBED_DIM))
    wk = w(keys[1], (EMBED_DIM, EMBED_DIM))
    wv = w(keys[2], (EMBED_DIM, EMBED_DIM))
    wg = w(keys[3], (EMBED_DIM, EMBED_DIM))
    gate_w = w(keys[5], (EMBED_DIM, FFN_DIM))
    fc1_w = w(keys[6], (EMBED_DIM, FFN_DIM))
    return dict(
        w_qk=jnp.concatenate([wq, wk], axis=1),                  # (D, 2D)
        w_vg=jnp.concatenate([wv, wg], axis=1),                  # (D, 2D)
        wo=w(keys[4], (EMBED_DIM, EMBED_DIM)),
        ret_norm_w=jnp.ones((1, EMBED_DIM), jnp.float32),        # RMSNorm weight (init ones)
        fin_norm_w=jnp.ones((1, EMBED_DIM), jnp.float32),
        w_ffn_in=jnp.concatenate([gate_w, fc1_w], axis=1),       # (D, 2*FFN_DIM), lane-dense
        w_ffn_out=w(keys[7], (FFN_DIM, EMBED_DIM)),
    )


if __name__ == "__main__":
    key = jax.random.PRNGKey(0)
    k_x, k_pe, k_c, k_perm, k_p = jax.random.split(key, 5)

    N_FLAT = 60                     # number of real voxels
    M_WIN = 64                      # padded window size = num_groups * GROUP_SIZE

    x = jax.random.normal(k_x, (N_FLAT, EMBED_DIM), jnp.float32)
    pe = jax.random.normal(k_pe, (N_FLAT, EMBED_DIM), jnp.float32)
    coords = jax.random.randint(k_c, (N_FLAT, 4), 0, 32, dtype=jnp.int32)

    mappings = {
        "x": jax.random.permutation(k_perm, N_FLAT),                       # direction ordering
        "flat2win": jnp.concatenate(
            [jnp.arange(N_FLAT), jnp.arange(M_WIN - N_FLAT)]).astype(jnp.int32),
        "win2flat": jnp.arange(N_FLAT, dtype=jnp.int32),
    }

    layer_params = [init_layer_params(k_p)]   # direction=['x'] -> one layer

    # correctness self-check of the Pallas layer against the pure-JAX reference
    idx, f2w = mappings["x"], mappings["flat2win"]
    x_win, pe_win, c_win = x[idx][f2w], pe[idx][f2w], coords[idx][f2w]
    got = retention_encoder_layer(x_win, pe_win, c_win, layer_params[0])
    want = retention_layer_reference(x_win, pe_win, c_win, layer_params[0])
    max_err = float(jnp.max(jnp.abs(got - want)))
    assert jnp.allclose(got, want, atol=2e-3, rtol=2e-3), f"max abs err {max_err}"

    out = retention_encoder_block(x, pe, mappings, coords, layer_params, direction=("x",))
    jax.block_until_ready(out)
    assert out.shape == (N_FLAT, EMBED_DIM)
    print("KERNEL_OK")
</pallas_src>

<mosaic_0001>
module attributes {stable_mosaic.version = 11 : i64} {
  func.func @retention_layer_kernel(%arg0: i32, %arg1: memref<64x32xf32, #tpu.memory_space<vmem>>, %arg2: memref<64x32xf32, #tpu.memory_space<vmem>>, %arg3: memref<3x4x16xf32, #tpu.memory_space<vmem>>, %arg4: memref<32x64xf32, #tpu.memory_space<vmem>>, %arg5: memref<32x64xf32, #tpu.memory_space<vmem>>, %arg6: memref<32x32xf32, #tpu.memory_space<vmem>>, %arg7: memref<1x32xf32, #tpu.memory_space<vmem>>, %arg8: memref<1x32xf32, #tpu.memory_space<vmem>>, %arg9: memref<32x128xf32, #tpu.memory_space<vmem>>, %arg10: memref<64x32xf32, #tpu.memory_space<vmem>>, %arg11: memref<64x32xf32, #tpu.memory_space<vmem>>) attributes {dimension_semantics = [#tpu.dimension_semantics<parallel>], iteration_bounds = array<i64: 1>, scalar_prefetch = 0 : i64, scratch_operands = 0 : i64, tpu.core_type = #tpu.core_type<tc>, window_params = [{transform_indices = @transform_0, window_bounds = array<i64: 64, 32>}, {transform_indices = @transform_1, window_bounds = array<i64: 64, 32>}, {transform_indices = @transform_2, window_bounds = array<i64: 3, 4, 16>}, {pipeline_mode = #tpu.pipeline_mode<synchronous>, transform_indices = @transform_3, window_bounds = array<i64: 32, 64>}, {pipeline_mode = #tpu.pipeline_mode<synchronous>, transform_indices = @transform_4, window_bounds = array<i64: 32, 64>}, {pipeline_mode = #tpu.pipeline_mode<synchronous>, transform_indices = @transform_5, window_bounds = array<i64: 32, 32>}, {pipeline_mode = #tpu.pipeline_mode<synchronous>, transform_indices = @transform_6, window_bounds = array<i64: 1, 32>}, {pipeline_mode = #tpu.pipeline_mode<synchronous>, transform_indices = @transform_7, window_bounds = array<i64: 1, 32>}, {pipeline_mode = #tpu.pipeline_mode<synchronous>, transform_indices = @transform_8, window_bounds = array<i64: 32, 128>}, {pipeline_mode = #tpu.pipeline_mode<synchronous>, transform_indices = @transform_9, window_bounds = array<i64: 64, 32>}, {transform_indices = @transform_10, window_bounds = array<i64: 64, 32>}]} {
    %c0 = arith.constant 0 : index
    %c0_0 = arith.constant 0 : index
    %0 = vector.load %arg1[%c0, %c0_0] : memref<64x32xf32, #tpu.memory_space<vmem>>, vector<64x32xf32>
    %c0_1 = arith.constant 0 : index
    %c0_2 = arith.constant 0 : index
    %1 = vector.load %arg2[%c0_1, %c0_2] : memref<64x32xf32, #tpu.memory_space<vmem>>, vector<64x32xf32>
    %c0_3 = arith.constant 0 : index
    %c0_4 = arith.constant 0 : index
    %c0_5 = arith.constant 0 : index
    %2 = vector.load %arg3[%c0_3, %c0_4, %c0_5] : memref<3x4x16xf32, #tpu.memory_space<vmem>>, vector<3x4x16xf32>
    %3 = vector.extract_strided_slice %2 {offsets = [0, 0, 0], sizes = [1, 4, 16], strides = [1, 1, 1]} : vector<3x4x16xf32> to vector<1x4x16xf32>
    %4 = vector.shape_cast %3 : vector<1x4x16xf32> to vector<4x16xf32>
    %5 = vector.shape_cast %4 : vector<4x16xf32> to vector<4x16x1xf32>
    %6 = vector.extract_strided_slice %2 {offsets = [0, 0, 0], sizes = [1, 4, 16], strides = [1, 1, 1]} : vector<3x4x16xf32> to vector<1x4x16xf32>
    %7 = vector.shape_cast %6 : vector<1x4x16xf32> to vector<4x16xf32>
    %8 = vector.shape_cast %7 : vector<4x16xf32> to vector<4x1x16xf32>
    %9 = vector.broadcast %5 : vector<4x16x1xf32> to vector<4x16x16xf32>
    %10 = vector.broadcast %8 : vector<4x1x16xf32> to vector<4x16x16xf32>
    %11 = arith.subf %9, %10 : vector<4x16x16xf32>
    %12 = math.absf %11 : vector<4x16x16xf32>
    %13 = vector.extract_strided_slice %2 {offsets = [1, 0, 0], sizes = [1, 4, 16], strides = [1, 1, 1]} : vector<3x4x16xf32> to vector<1x4x16xf32>
    %14 = vector.shape_cast %13 : vector<1x4x16xf32> to vector<4x16xf32>
    %15 = vector.shape_cast %14 : vector<4x16xf32> to vector<4x16x1xf32>
    %16 = vector.extract_strided_slice %2 {offsets = [1, 0, 0], sizes = [1, 4, 16], strides = [1, 1, 1]} : vector<3x4x16xf32> to vector<1x4x16xf32>
    %17 = vector.shape_cast %16 : vector<1x4x16xf32> to vector<4x16xf32>
    %18 = vector.shape_cast %17 : vector<4x16xf32> to vector<4x1x16xf32>
    %19 = vector.broadcast %15 : vector<4x16x1xf32> to vector<4x16x16xf32>
    %20 = vector.broadcast %18 : vector<4x1x16xf32> to vector<4x16x16xf32>
    %21 = arith.subf %19, %20 : vector<4x16x16xf32>
    %22 = math.absf %21 : vector<4x16x16xf32>
    %23 = arith.addf %12, %22 : vector<4x16x16xf32>
    %24 = vector.extract_strided_slice %2 {offsets = [2, 0, 0], sizes = [1, 4, 16], strides = [1, 1, 1]} : vector<3x4x16xf32> to vector<1x4x16xf32>
    %25 = vector.shape_cast %24 : vector<1x4x16xf32> to vector<4x16xf32>
    %26 = vector.shape_cast %25 : vector<4x16xf32> to vector<4x16x1xf32>
    %27 = vector.extract_strided_slice %2 {offsets = [2, 0, 0], sizes = [1, 4, 16], strides = [1, 1, 1]} : vector<3x4x16xf32> to vector<1x4x16xf32>
    %28 = vector.shape_cast %27 : vector<1x4x16xf32> to vector<4x16xf32>
    %29 = vector.shape_cast %28 : vector<4x16xf32> to vector<4x1x16xf32>
    %30 = vector.broadcast %26 : vector<4x16x1xf32> to vector<4x16x16xf32>
    %31 = vector.broadcast %29 : vector<4x1x16xf32> to vector<4x16x16xf32>
    %32 = arith.subf %30, %31 : vector<4x16x16xf32>
    %33 = math.absf %32 : vector<4x16x16xf32>
    %34 = arith.addf %23, %33 : vector<4x16x16xf32>
    %c0_6 = arith.constant 0 : index
    %c0_7 = arith.constant 0 : index
    %35 = vector.load %arg7[%c0_6, %c0_7] : memref<1x32xf32, #tpu.memory_space<vmem>>, vector<1x32xf32>
    %36 = arith.mulf %0, %0 : vector<64x32xf32>
    %cst = arith.constant dense<0.000000e+00> : vector<64xf32>
    %37 = vector.multi_reduction <add>, %36, %cst [1] : vector<64x32xf32> to vector<64xf32>
    %38 = vector.shape_cast %37 : vector<64xf32> to vector<64x1xf32>
    %cst_8 = arith.constant 3.200000e+01 : f32
    %39 = vector.broadcast %cst_8 : f32 to vector<64x1xf32>
    %40 = arith.divf %38, %39 : vector<64x1xf32>
    %cst_9 = arith.constant 9.99999997E-7 : f32
    %41 = vector.broadcast %cst_9 : f32 to vector<64x1xf32>
    %42 = arith.addf %40, %41 : vector<64x1xf32>
    %43 = math.rsqrt %42 : vector<64x1xf32>
    %44 = vector.broadcast %43 : vector<64x1xf32> to vector<64x32xf32>
    %45 = arith.mulf %0, %44 : vector<64x32xf32>
    %46 = vector.broadcast %35 : vector<1x32xf32> to vector<64x32xf32>
    %47 = arith.mulf %45, %46 : vector<64x32xf32>
    %48 = arith.addf %47, %1 : vector<64x32xf32>
    %c0_10 = arith.constant 0 : index
    %c0_11 = arith.constant 0 : index
    %49 = vector.load %arg4[%c0_10, %c0_11] : memref<32x64xf32, #tpu.memory_space<vmem>>, vector<32x64xf32>
    %cst_12 = arith.constant dense<0.000000e+00> : vector<64x64xf32>
    %50 = tpu.matmul %48, %49, %cst_12 {dimension_numbers = #tpu.dot_dimension_numbers<[1], [0], [0], [1], [0, 0, 1, 1], [], []>} : vector<64x32xf32>, vector<32x64xf32>, vector<64x64xf32> -> vector<64x64xf32>
    %c0_13 = arith.constant 0 : index
    %c0_14 = arith.constant 0 : index
    %51 = vector.load %arg5[%c0_13, %c0_14] : memref<32x64xf32, #tpu.memory_space<vmem>>, vector<32x64xf32>
    %cst_15 = arith.constant dense<0.000000e+00> : vector<64x64xf32>
    %52 = tpu.matmul %47, %51, %cst_15 {dimension_numbers = #tpu.dot_dimension_numbers<[1], [0], [0], [1], [0, 0, 1, 1], [], []>} : vector<64x32xf32>, vector<32x64xf32>, vector<64x64xf32> -> vector<64x64xf32>
    %53 = vector.extract_strided_slice %50 {offsets = [0, 0], sizes = [64, 32], strides = [1, 1]} : vector<64x64xf32> to vector<64x32xf32>
    %54 = vector.shape_cast %53 : vector<64x32xf32> to vector<4x16x32xf32>
    %55 = vector.extract_strided_slice %50 {offsets = [0, 32], sizes = [64, 32], strides = [1, 1]} : vector<64x64xf32> to vector<64x32xf32>
    %cst_16 = arith.constant 0.353553385 : f32
    %56 = vector.broadcast %cst_16 : f32 to vector<64x32xf32>
    %57 = arith.mulf %55, %56 : vector<64x32xf32>
    %58 = vector.shape_cast %57 : vector<64x32xf32> to vector<4x16x32xf32>
    %59 = vector.extract_strided_slice %52 {offsets = [0, 0], sizes = [64, 32], strides = [1, 1]} : vector<64x64xf32> to vector<64x32xf32>
    %60 = vector.shape_cast %59 : vector<64x32xf32> to vector<4x16x32xf32>
    %61 = vector.extract_strided_slice %52 {offsets = [0, 32], sizes = [64, 32], strides = [1, 1]} : vector<64x64xf32> to vector<64x32xf32>
    %62 = vector.shape_cast %61 : vector<64x32xf32> to vector<4x16x32xf32>
    %c0_17 = arith.constant 0 : index
    %c0_18 = arith.constant 0 : index
    %63 = vector.load %arg6[%c0_17, %c0_18] : memref<32x32xf32, #tpu.memory_space<vmem>>, vector<32x32xf32>
    %cst_19 = arith.constant 0.000000e+00 : f32
    %64 = vector.broadcast %cst_19 : f32 to vector<64x32xf32>
    %cst_20 = arith.constant -0.0317486972 : f32
    %65 = vector.broadcast %cst_20 : f32 to vector<4x16x16xf32>
    %66 = arith.mulf %34, %65 : vector<4x16x16xf32>
    %67 = math.exp %66 : vector<4x16x16xf32>
    %cst_21 = arith.constant dense<0.000000e+00> : vector<4x16xf32>
    %68 = vector.multi_reduction <add>, %67, %cst_21 [2] : vector<4x16x16xf32> to vector<4x16xf32>
    %69 = vector.shape_cast %68 : vector<4x16xf32> to vector<4x16x1xf32>
    %70 = math.rsqrt %69 : vector<4x16x1xf32>
    %71 = vector.broadcast %70 : vector<4x16x1xf32> to vector<4x16x16xf32>
    %72 = arith.mulf %67, %71 : vector<4x16x16xf32>
    %73 = vector.extract_strided_slice %54 {offsets = [0, 0, 0], sizes = [4, 16, 8], strides = [1, 1, 1]} : vector<4x16x32xf32> to vector<4x16x8xf32>
    %74 = vector.extract_strided_slice %58 {offsets = [0, 0, 0], sizes = [4, 16, 8], strides = [1, 1, 1]} : vector<4x16x32xf32> to vector<4x16x8xf32>
    %75 = vector.extract_strided_slice %60 {offsets = [0, 0, 0], sizes = [4, 16, 8], strides = [1, 1, 1]} : vector<4x16x32xf32> to vector<4x16x8xf32>
    %76 = vector.extract_strided_slice %62 {offsets = [0, 0, 0], sizes = [4, 16, 8], strides = [1, 1, 1]} : vector<4x16x32xf32> to vector<4x16x8xf32>
    "tpu.trace_start"() <{level = 10 : i32, message = "bqc,bkc->bqk"}> : () -> ()
    %cst_22 = arith.constant dense<0.000000e+00> : vector<4x16x16xf32>
    %77 = tpu.matmul %73, %74, %cst_22 {dimension_numbers = #tpu.dot_dimension_numbers<[2], [2], [1], [1], [0, 0, 0, 1, 1, 1], [0], [0]>} : vector<4x16x8xf32>, vector<4x16x8xf32>, vector<4x16x16xf32> -> vector<4x16x16xf32>
    "tpu.trace_stop"() : () -> ()
    %78 = arith.mulf %77, %72 : vector<4x16x16xf32>
    %cst_23 = arith.constant dense<0xFF800000> : vector<4x16xf32>
    %79 = vector.multi_reduction <maximumf>, %78, %cst_23 [2] : vector<4x16x16xf32> to vector<4x16xf32>
    %80 = vector.shape_cast %79 : vector<4x16xf32> to vector<4x16x1xf32>
    %81 = vector.broadcast %80 : vector<4x16x1xf32> to vector<4x16x16xf32>
    %82 = arith.subf %78, %81 : vector<4x16x16xf32>
    %83 = math.exp %82 : vector<4x16x16xf32>
    %cst_24 = arith.constant dense<0.000000e+00> : vector<4x16xf32>
    %84 = vector.multi_reduction <add>, %83, %cst_24 [2] : vector<4x16x16xf32> to vector<4x16xf32>
    %85 = vector.shape_cast %84 : vector<4x16xf32> to vector<4x16x1xf32>
    %86 = tpu.reciprocal %85 {approx = true} : vector<4x16x1xf32> -> vector<4x16x1xf32>
    %87 = vector.broadcast %86 : vector<4x16x1xf32> to vector<4x16x16xf32>
    %88 = arith.mulf %83, %87 : vector<4x16x16xf32>
    "tpu.trace_start"() <{level = 10 : i32, message = "bqk,bkc->bqc"}> : () -> ()
    %cst_25 = arith.constant dense<0.000000e+00> : vector<4x16x8xf32>
    %89 = tpu.matmul %88, %75, %cst_25 {dimension_numbers = #tpu.dot_dimension_numbers<[2], [1], [1], [2], [0, 0, 0, 1, 1, 2], [0], [0]>} : vector<4x16x16xf32>, vector<4x16x8xf32>, vector<4x16x8xf32> -> vector<4x16x8xf32>
    "tpu.trace_stop"() : () -> ()
    %90 = arith.mulf %89, %89 : vector<4x16x8xf32>
    %cst_26 = arith.constant dense<0.000000e+00> : vector<4x16xf32>
    %91 = vector.multi_reduction <add>, %90, %cst_26 [2] : vector<4x16x8xf32> to vector<4x16xf32>
    %92 = vector.shape_cast %91 : vector<4x16xf32> to vector<4x16x1xf32>
    %cst_27 = arith.constant 8.000000e+00 : f32
    %93 = vector.broadcast %cst_27 : f32 to vector<4x16x1xf32>
    %94 = arith.divf %92, %93 : vector<4x16x1xf32>
    %cst_28 = arith.constant 9.99999997E-7 : f32
    %95 = vector.broadcast %cst_28 : f32 to vector<4x16x1xf32>
    %96 = arith.addf %94, %95 : vector<4x16x1xf32>
    %97 = math.rsqrt %96 : vector<4x16x1xf32>
    %98 = vector.broadcast %97 : vector<4x16x1xf32> to vector<4x16x8xf32>
    %99 = arith.mulf %89, %98 : vector<4x16x8xf32>
    %100 = arith.negf %76 : vector<4x16x8xf32>
    %101 = math.exp %100 : vector<4x16x8xf32>
    %cst_29 = arith.constant 1.000000e+00 : f32
    %102 = vector.broadcast %cst_29 : f32 to vector<4x16x8xf32>
    %103 = arith.addf %102, %101 : vector<4x16x8xf32>
    %104 = arith.divf %102, %103 : vector<4x16x8xf32>
    %105 = arith.mulf %76, %104 : vector<4x16x8xf32>
    %106 = arith.mulf %105, %99 : vector<4x16x8xf32>
    %107 = vector.shape_cast %106 : vector<4x16x8xf32> to vector<64x8xf32>
    %108 = vector.extract_strided_slice %63 {offsets = [0, 0], sizes = [8, 32], strides = [1, 1]} : vector<32x32xf32> to vector<8x32xf32>
    %cst_30 = arith.constant dense<0.000000e+00> : vector<64x32xf32>
    %109 = tpu.matmul %107, %108, %cst_30 {dimension_numbers = #tpu.dot_dimension_numbers<[1], [0], [0], [1], [0, 0, 1, 1], [], []>} : vector<64x8xf32>, vector<8x32xf32>, vector<64x32xf32> -> vector<64x32xf32>
    %110 = arith.addf %64, %109 : vector<64x32xf32>
    %cst_31 = arith.constant -0.0157483574 : f32
    %111 = vector.broadcast %cst_31 : f32 to vector<4x16x16xf32>
    %112 = arith.mulf %34, %111 : vector<4x16x16xf32>
    %113 = math.exp %112 : vector<4x16x16xf32>
    %cst_32 = arith.constant dense<0.000000e+00> : vector<4x16xf32>
    %114 = vector.multi_reduction <add>, %113, %cst_32 [2] : vector<4x16x16xf32> to vector<4x16xf32>
    %115 = vector.shape_cast %114 : vector<4x16xf32> to vector<4x16x1xf32>
    %116 = math.rsqrt %115 : vector<4x16x1xf32>
    %117 = vector.broadcast %116 : vector<4x16x1xf32> to vector<4x16x16xf32>
    %118 = arith.mulf %113, %117 : vector<4x16x16xf32>
    %119 = vector.extract_strided_slice %54 {offsets = [0, 0, 8], sizes = [4, 16, 8], strides = [1, 1, 1]} : vector<4x16x32xf32> to vector<4x16x8xf32>
    %120 = vector.extract_strided_slice %58 {offsets = [0, 0, 8], sizes = [4, 16, 8], strides = [1, 1, 1]} : vector<4x16x32xf32> to vector<4x16x8xf32>
    %121 = vector.extract_strided_slice %60 {offsets = [0, 0, 8], sizes = [4, 16, 8], strides = [1, 1, 1]} : vector<4x16x32xf32> to vector<4x16x8xf32>
    %122 = vector.extract_strided_slice %62 {offsets = [0, 0, 8], sizes = [4, 16, 8], strides = [1, 1, 1]} : vector<4x16x32xf32> to vector<4x16x8xf32>
    "tpu.trace_start"() <{level = 10 : i32, message = "bqc,bkc->bqk"}> : () -> ()
    %cst_33 = arith.constant dense<0.000000e+00> : vector<4x16x16xf32>
    %123 = tpu.matmul %119, %120, %cst_33 {dimension_numbers = #tpu.dot_dimension_numbers<[2], [2], [1], [1], [0, 0, 0, 1, 1, 1], [0], [0]>} : vector<4x16x8xf32>, vector<4x16x8xf32>, vector<4x16x16xf32> -> vector<4x16x16xf32>
    "tpu.trace_stop"() : () -> ()
    %124 = arith.mulf %123, %118 : vector<4x16x16xf32>
    %cst_34 = arith.constant dense<0xFF800000> : vector<4x16xf32>
    %125 = vector.multi_reduction <maximumf>, %124, %cst_34 [2] : vector<4x16x16xf32> to vector<4x16xf32>
    %126 = vector.shape_cast %125 : vector<4x16xf32> to vector<4x16x1xf32>
    %127 = vector.broadcast %126 : vector<4x16x1xf32> to vector<4x16x16xf32>
    %128 = arith.subf %124, %127 : vector<4x16x16xf32>
    %129 = math.exp %128 : vector<4x16x16xf32>
    %cst_35 = arith.constant dense<0.000000e+00> : vector<4x16xf32>
    %130 = vector.multi_reduction <add>, %129, %cst_35 [2] : vector<4x16x16xf32> to vector<4x16xf32>
    %131 = vector.shape_cast %130 : vector<4x16xf32> to vector<4x16x1xf32>
    %132 = tpu.reciprocal %131 {approx = true} : vector<4x16x1xf32> -> vector<4x16x1xf32>
    %133 = vector.broadcast %132 : vector<4x16x1xf32> to vector<4x16x16xf32>
    %134 = arith.mulf %129, %133 : vector<4x16x16xf32>
    "tpu.trace_start"() <{level = 10 : i32, message = "bqk,bkc->bqc"}> : () -> ()
    %cst_36 = arith.constant dense<0.000000e+00> : vector<4x16x8xf32>
    %135 = tpu.matmul %134, %121, %cst_36 {dimension_numbers = #tpu.dot_dimension_numbers<[2], [1], [1], [2], [0, 0, 0, 1, 1, 2], [0], [0]>} : vector<4x16x16xf32>, vector<4x16x8xf32>, vector<4x16x8xf32> -> vector<4x16x8xf32>
    "tpu.trace_stop"() : () -> ()
    %136 = arith.mulf %135, %135 : vector<4x16x8xf32>
    %cst_37 = arith.constant dense<0.000000e+00> : vector<4x16xf32>
    %137 = vector.multi_reduction <add>, %136, %cst_37 [2] : vector<4x16x8xf32> to vector<4x16xf32>
    %138 = vector.shape_cast %137 : vector<4x16xf32> to vector<4x16x1xf32>
    %cst_38 = arith.constant 8.000000e+00 : f32
    %139 = vector.broadcast %cst_38 : f32 to vector<4x16x1xf32>
    %140 = arith.divf %138, %139 : vector<4x16x1xf32>
    %cst_39 = arith.constant 9.99999997E-7 : f32
    %141 = vector.broadcast %cst_39 : f32 to vector<4x16x1xf32>
    %142 = arith.addf %140, %141 : vector<4x16x1xf32>
    %143 = math.rsqrt %142 : vector<4x16x1xf32>
    %144 = vector.broadcast %143 : vector<4x16x1xf32> to vector<4x16x8xf32>
    %145 = arith.mulf %135, %144 : vector<4x16x8xf32>
    %146 = arith.negf %122 : vector<4x16x8xf32>
    %147 = math.exp %146 : vector<4x16x8xf32>
    %cst_40 = arith.constant 1.000000e+00 : f32
    %148 = vector.broadcast %cst_40 : f32 to vector<4x16x8xf32>
    %149 = arith.addf %148, %147 : vector<4x16x8xf32>
    %150 = arith.divf %148, %149 : vector<4x16x8xf32>
    %151 = arith.mulf %122, %150 : vector<4x16x8xf32>
    %152 = arith.mulf %151, %145 : vector<4x16x8xf32>
    %153 = vector.shape_cast %152 : vector<4x16x8xf32> to vector<64x8xf32>
    %154 = vector.extract_strided_slice %63 {offsets = [8, 0], sizes = [8, 32], strides = [1, 1]} : vector<32x32xf32> to vector<8x32xf32>
    %cst_41 = arith.constant dense<0.000000e+00> : vector<64x32xf32>
    %155 = tpu.matmul %153, %154, %cst_41 {dimension_numbers = #tpu.dot_dimension_numbers<[1], [0], [0], [1], [0, 0, 1, 1], [], []>} : vector<64x8xf32>, vector<8x32xf32>, vector<64x32xf32> -> vector<64x32xf32>
    %156 = arith.addf %110, %155 : vector<64x32xf32>
    %cst_42 = arith.constant -0.00784317776 : f32
    %157 = vector.broadcast %cst_42 : f32 to vector<4x16x16xf32>
    %158 = arith.mulf %34, %157 : vector<4x16x16xf32>
    %159 = math.exp %158 : vector<4x16x16xf32>
    %cst_43 = arith.constant dense<0.000000e+00> : vector<4x16xf32>
    %160 = vector.multi_reduction <add>, %159, %cst_43 [2] : vector<4x16x16xf32> to vector<4x16xf32>
    %161 = vector.shape_cast %160 : vector<4x16xf32> to vector<4x16x1xf32>
    %162 = math.rsqrt %161 : vector<4x16x1xf32>
    %163 = vector.broadcast %162 : vector<4x16x1xf32> to vector<4x16x16xf32>
    %164 = arith.mulf %159, %163 : vector<4x16x16xf32>
    %165 = vector.extract_strided_slice %54 {offsets = [0, 0, 16], sizes = [4, 16, 8], strides = [1, 1, 1]} : vector<4x16x32xf32> to vector<4x16x8xf32>
    %166 = vector.extract_strided_slice %58 {offsets = [0, 0, 16], sizes = [4, 16, 8], strides = [1, 1, 1]} : vector<4x16x32xf32> to vector<4x16x8xf32>
    %167 = vector.extract_strided_slice %60 {offsets = [0, 0, 16], sizes = [4, 16, 8], strides = [1, 1, 1]} : vector<4x16x32xf32> to vector<4x16x8xf32>
    %168 = vector.extract_strided_slice %62 {offsets = [0, 0, 16], sizes = [4, 16, 8], strides = [1, 1, 1]} : vector<4x16x32xf32> to vector<4x16x8xf32>
    "tpu.trace_start"() <{level = 10 : i32, message = "bqc,bkc->bqk"}> : () -> ()
    %cst_44 = arith.constant dense<0.000000e+00> : vector<4x16x16xf32>
    %169 = tpu.matmul %165, %166, %cst_44 {dimension_numbers = #tpu.dot_dimension_numbers<[2], [2], [1], [1], [0, 0, 0, 1, 1, 1], [0], [0]>} : vector<4x16x8xf32>, vector<4x16x8xf32>, vector<4x16x16xf32> -> vector<4x16x16xf32>
    "tpu.trace_stop"() : () -> ()
    %170 = arith.mulf %169, %164 : vector<4x16x16xf32>
    %cst_45 = arith.constant dense<0xFF800000> : vector<4x16xf32>
    %171 = vector.multi_reduction <maximumf>, %170, %cst_45 [2] : vector<4x16x16xf32> to vector<4x16xf32>
    %172 = vector.shape_cast %171 : vector<4x16xf32> to vector<4x16x1xf32>
    %173 = vector.broadcast %172 : vector<4x16x1xf32> to vector<4x16x16xf32>
    %174 = arith.subf %170, %173 : vector<4x16x16xf32>
    %175 = math.exp %174 : vector<4x16x16xf32>
    %cst_46 = arith.constant dense<0.000000e+00> : vector<4x16xf32>
    %176 = vector.multi_reduction <add>, %175, %cst_46 [2] : vector<4x16x16xf32> to vector<4x16xf32>
    %177 = vector.shape_cast %176 : vector<4x16xf32> to vector<4x16x1xf32>
    %178 = tpu.reciprocal %177 {approx = true} : vector<4x16x1xf32> -> vector<4x16x1xf32>
    %179 = vector.broadcast %178 : vector<4x16x1xf32> to vector<4x16x16xf32>
    %180 = arith.mulf %175, %179 : vector<4x16x16xf32>
    "tpu.trace_start"() <{level = 10 : i32, message = "bqk,bkc->bqc"}> : () -> ()
    %cst_47 = arith.constant dense<0.000000e+00> : vector<4x16x8xf32>
    %181 = tpu.matmul %180, %167, %cst_47 {dimension_numbers = #tpu.dot_dimension_numbers<[2], [1], [1], [2], [0, 0, 0, 1, 1, 2], [0], [0]>} : vector<4x16x16xf32>, vector<4x16x8xf32>, vector<4x16x8xf32> -> vector<4x16x8xf32>
    "tpu.trace_stop"() : () -> ()
    %182 = arith.mulf %181, %181 : vector<4x16x8xf32>
    %cst_48 = arith.constant dense<0.000000e+00> : vector<4x16xf32>
    %183 = vector.multi_reduction <add>, %182, %cst_48 [2] : vector<4x16x8xf32> to vector<4x16xf32>
    %184 = vector.shape_cast %183 : vector<4x16xf32> to vector<4x16x1xf32>
    %cst_49 = arith.constant 8.000000e+00 : f32
    %185 = vector.broadcast %cst_49 : f32 to vector<4x16x1xf32>
    %186 = arith.divf %184, %185 : vector<4x16x1xf32>
    %cst_50 = arith.constant 9.99999997E-7 : f32
    %187 = vector.broadcast %cst_50 : f32 to vector<4x16x1xf32>
    %188 = arith.addf %186, %187 : vector<4x16x1xf32>
    %189 = math.rsqrt %188 : vector<4x16x1xf32>
    %190 = vector.broadcast %189 : vector<4x16x1xf32> to vector<4x16x8xf32>
    %191 = arith.mulf %181, %190 : vector<4x16x8xf32>
    %192 = arith.negf %168 : vector<4x16x8xf32>
    %193 = math.exp %192 : vector<4x16x8xf32>
    %cst_51 = arith.constant 1.000000e+00 : f32
    %194 = vector.broadcast %cst_51 : f32 to vector<4x16x8xf32>
    %195 = arith.addf %194, %193 : vector<4x16x8xf32>
    %196 = arith.divf %194, %195 : vector<4x16x8xf32>
    %197 = arith.mulf %168, %196 : vector<4x16x8xf32>
    %198 = arith.mulf %197, %191 : vector<4x16x8xf32>
    %199 = vector.shape_cast %198 : vector<4x16x8xf32> to vector<64x8xf32>
    %200 = vector.extract_strided_slice %63 {offsets = [16, 0], sizes = [8, 32], strides = [1, 1]} : vector<32x32xf32> to vector<8x32xf32>
    %cst_52 = arith.constant dense<0.000000e+00> : vector<64x32xf32>
    %201 = tpu.matmul %199, %200, %cst_52 {dimension_numbers = #tpu.dot_dimension_numbers<[1], [0], [0], [1], [0, 0, 1, 1], [], []>} : vector<64x8xf32>, vector<8x32xf32>, vector<64x32xf32> -> vector<64x32xf32>
    %202 = arith.addf %156, %201 : vector<64x32xf32>
    %cst_53 = arith.constant -0.00391389942 : f32
    %203 = vector.broadcast %cst_53 : f32 to vector<4x16x16xf32>
    %204 = arith.mulf %34, %203 : vector<4x16x16xf32>
    %205 = math.exp %204 : vector<4x16x16xf32>
    %cst_54 = arith.constant dense<0.000000e+00> : vector<4x16xf32>
    %206 = vector.multi_reduction <add>, %205, %cst_54 [2] : vector<4x16x16xf32> to vector<4x16xf32>
    %207 = vector.shape_cast %206 : vector<4x16xf32> to vector<4x16x1xf32>
    %208 = math.rsqrt %207 : vector<4x16x1xf32>
    %209 = vector.broadcast %208 : vector<4x16x1xf32> to vector<4x16x16xf32>
    %210 = arith.mulf %205, %209 : vector<4x16x16xf32>
    %211 = vector.extract_strided_slice %54 {offsets = [0, 0, 24], sizes = [4, 16, 8], strides = [1, 1, 1]} : vector<4x16x32xf32> to vector<4x16x8xf32>
    %212 = vector.extract_strided_slice %58 {offsets = [0, 0, 24], sizes = [4, 16, 8], strides = [1, 1, 1]} : vector<4x16x32xf32> to vector<4x16x8xf32>
    %213 = vector.extract_strided_slice %60 {offsets = [0, 0, 24], sizes = [4, 16, 8], strides = [1, 1, 1]} : vector<4x16x32xf32> to vector<4x16x8xf32>
    %214 = vector.extract_strided_slice %62 {offsets = [0, 0, 24], sizes = [4, 16, 8], strides = [1, 1, 1]} : vector<4x16x32xf32> to vector<4x16x8xf32>
    "tpu.trace_start"() <{level = 10 : i32, message = "bqc,bkc->bqk"}> : () -> ()
    %cst_55 = arith.constant dense<0.000000e+00> : vector<4x16x16xf32>
    %215 = tpu.matmul %211, %212, %cst_55 {dimension_numbers = #tpu.dot_dimension_numbers<[2], [2], [1], [1], [0, 0, 0, 1, 1, 1], [0], [0]>} : vector<4x16x8xf32>, vector<4x16x8xf32>, vector<4x16x16xf32> -> vector<4x16x16xf32>
    "tpu.trace_stop"() : () -> ()
    %216 = arith.mulf %215, %210 : vector<4x16x16xf32>
    %cst_56 = arith.constant dense<0xFF800000> : vector<4x16xf32>
    %217 = vector.multi_reduction <maximumf>, %216, %cst_56 [2] : vector<4x16x16xf32> to vector<4x16xf32>
    %218 = vector.shape_cast %217 : vector<4x16xf32> to vector<4x16x1xf32>
    %219 = vector.broadcast %218 : vector<4x16x1xf32> to vector<4x16x16xf32>
    %220 = arith.subf %216, %219 : vector<4x16x16xf32>
    %221 = math.exp %220 : vector<4x16x16xf32>
    %cst_57 = arith.constant dense<0.000000e+00> : vector<4x16xf32>
    %222 = vector.multi_reduction <add>, %221, %cst_57 [2] : vector<4x16x16xf32> to vector<4x16xf32>
    %223 = vector.shape_cast %222 : vector<4x16xf32> to vector<4x16x1xf32>
    %224 = tpu.reciprocal %223 {approx = true} : vector<4x16x1xf32> -> vector<4x16x1xf32>
    %225 = vector.broadcast %224 : vector<4x16x1xf32> to vector<4x16x16xf32>
    %226 = arith.mulf %221, %225 : vector<4x16x16xf32>
    "tpu.trace_start"() <{level = 10 : i32, message = "bqk,bkc->bqc"}> : () -> ()
    %cst_58 = arith.constant dense<0.000000e+00> : vector<4x16x8xf32>
    %227 = tpu.matmul %226, %213, %cst_58 {dimension_numbers = #tpu.dot_dimension_numbers<[2], [1], [1], [2], [0, 0, 0, 1, 1, 2], [0], [0]>} : vector<4x16x16xf32>, vector<4x16x8xf32>, vector<4x16x8xf32> -> vector<4x16x8xf32>
    "tpu.trace_stop"() : () -> ()
    %228 = arith.mulf %227, %227 : vector<4x16x8xf32>
    %cst_59 = arith.constant dense<0.000000e+00> : vector<4x16xf32>
    %229 = vector.multi_reduction <add>, %228, %cst_59 [2] : vector<4x16x8xf32> to vector<4x16xf32>
    %230 = vector.shape_cast %229 : vector<4x16xf32> to vector<4x16x1xf32>
    %cst_60 = arith.constant 8.000000e+00 : f32
    %231 = vector.broadcast %cst_60 : f32 to vector<4x16x1xf32>
    %232 = arith.divf %230, %231 : vector<4x16x1xf32>
    %cst_61 = arith.constant 9.99999997E-7 : f32
    %233 = vector.broadcast %cst_61 : f32 to vector<4x16x1xf32>
    %234 = arith.addf %232, %233 : vector<4x16x1xf32>
    %235 = math.rsqrt %234 : vector<4x16x1xf32>
    %236 = vector.broadcast %235 : vector<4x16x1xf32> to vector<4x16x8xf32>
    %237 = arith.mulf %227, %236 : vector<4x16x8xf32>
    %238 = arith.negf %214 : vector<4x16x8xf32>
    %239 = math.exp %238 : vector<4x16x8xf32>
    %cst_62 = arith.constant 1.000000e+00 : f32
    %240 = vector.broadcast %cst_62 : f32 to vector<4x16x8xf32>
    %241 = arith.addf %240, %239 : vector<4x16x8xf32>
    %242 = arith.divf %240, %241 : vector<4x16x8xf32>
    %243 = arith.mulf %214, %242 : vector<4x16x8xf32>
    %244 = arith.mulf %243, %237 : vector<4x16x8xf32>
    %245 = vector.shape_cast %244 : vector<4x16x8xf32> to vector<64x8xf32>
    %246 = vector.extract_strided_slice %63 {offsets = [24, 0], sizes = [8, 32], strides = [1, 1]} : vector<32x32xf32> to vector<8x32xf32>
    %cst_63 = arith.constant dense<0.000000e+00> : vector<64x32xf32>
    %247 = tpu.matmul %245, %246, %cst_63 {dimension_numbers = #tpu.dot_dimension_numbers<[1], [0], [0], [1], [0, 0, 1, 1], [], []>} : vector<64x8xf32>, vector<8x32xf32>, vector<64x32xf32> -> vector<64x32xf32>
    %248 = arith.addf %202, %247 : vector<64x32xf32>
    %249 = arith.addf %0, %248 : vector<64x32xf32>
    %c0_64 = arith.constant 0 : index
    %c0_65 = arith.constant 0 : index
    %250 = vector.load %arg8[%c0_64, %c0_65] : memref<1x32xf32, #tpu.memory_space<vmem>>, vector<1x32xf32>
    %251 = arith.mulf %249, %249 : vector<64x32xf32>
    %cst_66 = arith.constant dense<0.000000e+00> : vector<64xf32>
    %252 = vector.multi_reduction <add>, %251, %cst_66 [1] : vector<64x32xf32> to vector<64xf32>
    %253 = vector.shape_cast %252 : vector<64xf32> to vector<64x1xf32>
    %cst_67 = arith.constant 3.200000e+01 : f32
    %254 = vector.broadcast %cst_67 : f32 to vector<64x1xf32>
    %255 = arith.divf %253, %254 : vector<64x1xf32>
    %cst_68 = arith.constant 9.99999997E-7 : f32
    %256 = vector.broadcast %cst_68 : f32 to vector<64x1xf32>
    %257 = arith.addf %255, %256 : vector<64x1xf32>
    %258 = math.rsqrt %257 : vector<64x1xf32>
    %259 = vector.broadcast %258 : vector<64x1xf32> to vector<64x32xf32>
    %260 = arith.mulf %249, %259 : vector<64x32xf32>
    %261 = vector.broadcast %250 : vector<1x32xf32> to vector<64x32xf32>
    %262 = arith.mulf %260, %261 : vector<64x32xf32>
    %c0_69 = arith.constant 0 : index
    %c0_70 = arith.constant 0 : index
    %263 = vector.load %arg9[%c0_69, %c0_70] : memref<32x128xf32, #tpu.memory_space<vmem>>, vector<32x128xf32>
    %cst_71 = arith.constant dense<0.000000e+00> : vector<64x128xf32>
    %264 = tpu.matmul %262, %263, %cst_71 {dimension_numbers = #tpu.dot_dimension_numbers<[1], [0], [0], [1], [0, 0, 1, 1], [], []>} : vector<64x32xf32>, vector<32x128xf32>, vector<64x128xf32> -> vector<64x128xf32>
    %265 = vector.extract_strided_slice %264 {offsets = [0, 0], sizes = [64, 64], strides = [1, 1]} : vector<64x128xf32> to vector<64x64xf32>
    %266 = vector.extract_strided_slice %264 {offsets = [0, 64], sizes = [64, 64], strides = [1, 1]} : vector<64x128xf32> to vector<64x64xf32>
    %267 = arith.negf %266 : vector<64x64xf32>
    %268 = math.exp %267 : vector<64x64xf32>
    %cst_72 = arith.constant 1.000000e+00 : f32
    %269 = vector.broadcast %cst_72 : f32 to vector<64x64xf32>
    %270 = arith.addf %269, %268 : vector<64x64xf32>
    %271 = arith.divf %269, %270 : vector<64x64xf32>
    %272 = arith.mulf %266, %271 : vector<64x64xf32>
    %273 = arith.mulf %272, %265 : vector<64x64xf32>
    %c0_73 = arith.constant 0 : index
    %c0_74 = arith.constant 0 : index
    %274 = vector.load %arg10[%c0_73, %c0_74] : memref<64x32xf32, #tpu.memory_space<vmem>>, vector<64x32xf32>
    %cst_75 = arith.constant dense<0.000000e+00> : vector<64x32xf32>
    %275 = tpu.matmul %273, %274, %cst_75 {dimension_numbers = #tpu.dot_dimension_numbers<[1], [0], [0], [1], [0, 0, 1, 1], [], []>} : vector<64x64xf32>, vector<64x32xf32>, vector<64x32xf32> -> vector<64x32xf32>
    %276 = arith.addf %249, %275 : vector<64x32xf32>
    %c0_76 = arith.constant 0 : index
    %c0_77 = arith.constant 0 : index
    %277 = vector.load %arg11[%c0_76, %c0_77] : memref<64x32xf32, #tpu.memory_space<vmem>>, vector<64x32xf32>
    tpu.vector_store %arg11[%c0_76, %c0_77], %276 {strides = array<i32>} : memref<64x32xf32, #tpu.memory_space<vmem>>, vector<64x32xf32>,
    return
  }
  func.func @transform_0(%arg0: i32) -> (i32, i32) {
    %c0_i32 = arith.constant 0 : i32
    %c0_i32_0 = arith.constant 0 : i32
    return %arg0, %c0_i32 : i32, i32
  }
  func.func @transform_1(%arg0: i32) -> (i32, i32) {
    %c0_i32 = arith.constant 0 : i32
    %c0_i32_0 = arith.constant 0 : i32
    return %arg0, %c0_i32 : i32, i32
  }
  func.func @transform_2(%arg0: i32) -> (i32, i32, i32) {
    %c0_i32 = arith.constant 0 : i32
    %c0_i32_0 = arith.constant 0 : i32
    %c0_i32_1 = arith.constant 0 : i32
    return %c0_i32, %arg0, %c0_i32_0 : i32, i32, i32
  }
  func.func @transform_3(%arg0: i32) -> (i32, i32) {
    %c0_i32 = arith.constant 0 : i32
    %c0_i32_0 = arith.constant 0 : i32
    %c0_i32_1 = arith.constant 0 : i32
    return %c0_i32, %c0_i32_0 : i32, i32
  }
  func.func @transform_4(%arg0: i32) -> (i32, i32) {
    %c0_i32 = arith.constant 0 : i32
    %c0_i32_0 = arith.constant 0 : i32
    %c0_i32_1 = arith.constant 0 : i32
    return %c0_i32, %c0_i32_0 : i32, i32
  }
  func.func @transform_5(%arg0: i32) -> (i32, i32) {
    %c0_i32 = arith.constant 0 : i32
    %c0_i32_0 = arith.constant 0 : i32
    %c0_i32_1 = arith.constant 0 : i32
    return %c0_i32, %c0_i32_0 : i32, i32
  }
  func.func @transform_6(%arg0: i32) -> (i32, i32) {
    %c0_i32 = arith.constant 0 : i32
    %c0_i32_0 = arith.constant 0 : i32
    %c0_i32_1 = arith.constant 0 : i32
    return %c0_i32, %c0_i32_0 : i32, i32
  }
  func.func @transform_7(%arg0: i32) -> (i32, i32) {
    %c0_i32 = arith.constant 0 : i32
    %c0_i32_0 = arith.constant 0 : i32
    %c0_i32_1 = arith.constant 0 : i32
    return %c0_i32, %c0_i32_0 : i32, i32
  }
  func.func @transform_8(%arg0: i32) -> (i32, i32) {
    %c0_i32 = arith.constant 0 : i32
    %c0_i32_0 = arith.constant 0 : i32
    %c0_i32_1 = arith.constant 0 : i32
    return %c0_i32, %c0_i32_0 : i32, i32
  }
  func.func @transform_9(%arg0: i32) -> (i32, i32) {
    %c0_i32 = arith.constant 0 : i32
    %c0_i32_0 = arith.constant 0 : i32
    %c0_i32_1 = arith.constant 0 : i32
    return %c0_i32, %c0_i32_0 : i32, i32
  }
  func.func @transform_10(%arg0: i32) -> (i32, i32) {
    %c0_i32 = arith.constant 0 : i32
    %c0_i32_0 = arith.constant 0 : i32
    return %arg0, %c0_i32 : i32, i32
  }
}

</mosaic_0001>

<llo_original>
// kernel: tpu_custom_call.1
$region0: #{tpu_custom_call.1}
  #allocation0 [shape = 'u32[]', space=smem, size = 0x4, offset = 0x4, fixed_abs, tag = 'smem constant byte address 0x4 - core index']
  #allocation1 [shape = 'u32[72,128]{1,0:T(1,128)}', space=vmem, size = 0x9000, scoped, tag = 'internal scratch']
  %s0 = inlined_call_operand.vmem [shape: f32[64,32], index: 0, kind: input, shape index: {}]
  %s1 = inlined_call_operand.vmem [shape: f32[64,32], index: 1, kind: input, shape index: {}]
  %s2 = inlined_call_operand.vmem [shape: f32[3,4,16], index: 2, kind: input, shape index: {}]
  %s3 = inlined_call_operand.vmem [shape: f32[32,64], index: 3, kind: input, shape index: {}]
  %s4 = inlined_call_operand.vmem [shape: f32[32,64], index: 4, kind: input, shape index: {}]
  %s5 = inlined_call_operand.vmem [shape: f32[32,32], index: 5, kind: input, shape index: {}]
  %s6 = inlined_call_operand.vmem [shape: f32[1,32], index: 6, kind: input, shape index: {}]
  %s7 = inlined_call_operand.vmem [shape: f32[1,32], index: 7, kind: input, shape index: {}]
  %s8 = inlined_call_operand.vmem [shape: f32[32,128], index: 8, kind: input, shape index: {}]
  %s9 = inlined_call_operand.vmem [shape: f32[64,32], index: 9, kind: input, shape index: {}]
  %s10 = inlined_call_operand.vmem [shape: f32[64,32], index: 10, kind: output, shape index: {}]
  %s11 = sld [smem:[#allocation0]]
  $region50: #{tpu_custom_call.1} parent=0
    _
  %s13 = ssub.s32 1, %s11
  %s14 = scalar_select 0, %s13, %s11
  // Predicated region
  $region2: #{tpu_custom_call.1} parent=0 // pred_check
    _
  $region3: #{tpu_custom_call.1} parent=0 // pred_check_branch
    %16 = sbr.rel (0) target = $region5
  $region4: #{tpu_custom_call.1} parent=0 // pred_region
    _
  $region5: #{tpu_custom_call.1} parent=0 // pred_fallthru
    _
  // Predicated region
  $region6: #{tpu_custom_call.1} parent=0 // pred_check
    _
  $region7: #{tpu_custom_call.1} parent=0 // pred_check_branch
    %18 = sbr.rel (0) target = $region9
  $region8: #{tpu_custom_call.1} parent=0 // pred_region
    _
  $region9: #{tpu_custom_call.1} parent=0 // pred_fallthru
    _
  // Predicated region
  $region10: #{tpu_custom_call.1} parent=0 // pred_check
    _
  $region11: #{tpu_custom_call.1} parent=0 // pred_check_branch
    %20 = sbr.rel (0) target = $region13
  $region12: #{tpu_custom_call.1} parent=0 // pred_region
    _
  $region13: #{tpu_custom_call.1} parent=0 // pred_fallthru
    _
  // Predicated region
  $region14: #{tpu_custom_call.1} parent=0 // pred_check
    _
  $region15: #{tpu_custom_call.1} parent=0 // pred_check_branch
    %22 = sbr.rel (0) target = $region17
  $region16: #{tpu_custom_call.1} parent=0 // pred_region
    _
  $region17: #{tpu_custom_call.1} parent=0 // pred_fallthru
    _
  // Predicated region
  $region18: #{tpu_custom_call.1} parent=0 // pred_check
    _
  $region19: #{tpu_custom_call.1} parent=0 // pred_check_branch
    %24 = sbr.rel (0) target = $region21
  $region20: #{tpu_custom_call.1} parent=0 // pred_region
    _
  $region21: #{tpu_custom_call.1} parent=0 // pred_fallthru
    _
  // Predicated region
  $region22: #{tpu_custom_call.1} parent=0 // pred_check
    _
  $region23: #{tpu_custom_call.1} parent=0 // pred_check_branch
    %26 = sbr.rel (0) target = $region25
  $region24: #{tpu_custom_call.1} parent=0 // pred_region
    _
  $region25: #{tpu_custom_call.1} parent=0 // pred_fallthru
    _
  // Predicated region
  $region26: #{tpu_custom_call.1} parent=0 // pred_check
    _
  $region27: #{tpu_custom_call.1} parent=0 // pred_check_branch
    %28 = sbr.rel (0) target = $region29
  $region28: #{tpu_custom_call.1} parent=0 // pred_region
    _
  $region29: #{tpu_custom_call.1} parent=0 // pred_fallthru
    _
  // Predicated region
  $region30: #{tpu_custom_call.1} parent=0 // pred_check
    _
  $region31: #{tpu_custom_call.1} parent=0 // pred_check_branch
    %30 = sbr.rel (0) target = $region33
  $region32: #{tpu_custom_call.1} parent=0 // pred_region
    _
  $region33: #{tpu_custom_call.1} parent=0 // pred_fallthru
    _
  // Predicated region
  $region34: #{tpu_custom_call.1} parent=0 // pred_check
    _
  $region35: #{tpu_custom_call.1} parent=0 // pred_check_branch
    %32 = sbr.rel (0) target = $region37
  $region36: #{tpu_custom_call.1} parent=0 // pred_region
    _
  $region37: #{tpu_custom_call.1} parent=0 // pred_fallthru
    _
  // Predicated region
  $region38: #{tpu_custom_call.1} parent=0 // pred_check
    _
  $region39: #{tpu_custom_call.1} parent=0 // pred_check_branch
    %34 = sbr.rel (0) target = $region41
  $region40: #{tpu_custom_call.1} parent=0 // pred_region
    _
  $region41: #{tpu_custom_call.1} parent=0 // pred_fallthru
    _
  %v35 = vld [vmem:[%s0] sm:$0xff]
  %v36 = vld [vmem:[%s0 + $0x8] sm:$0xff]
  %v37 = vld [vmem:[%s0 + $0x10] sm:$0xff]
  %v38 = vld [vmem:[%s0 + $0x18] sm:$0xff]
  %v39 = vld [vmem:[%s0 + $0x20] sm:$0xff]
  %v40 = vld [vmem:[%s0 + $0x28] sm:$0xff]
  %v41 = vld [vmem:[%s0 + $0x30] sm:$0xff]
  %v42 = vld [vmem:[%s0 + $0x38] sm:$0xff]
  %v43 = vld [vmem:[%s1] sm:$0xff]
  %v44 = vld [vmem:[%s1 + $0x8] sm:$0xff]
  %v45 = vld [vmem:[%s1 + $0x10] sm:$0xff]
  %v46 = vld [vmem:[%s1 + $0x18] sm:$0xff]
  %v47 = vld [vmem:[%s1 + $0x20] sm:$0xff]
  %v48 = vld [vmem:[%s1 + $0x28] sm:$0xff]
  %v49 = vld [vmem:[%s1 + $0x30] sm:$0xff]
  %v50 = vld [vmem:[%s1 + $0x38] sm:$0xff]
  %v51 = vld [vmem:[%s2] sm:$0xf]
  %v52 = vld [vmem:[%s2 + $0x4] sm:$0xf]
  %v53 = vld [vmem:[%s2 + $0x8] sm:$0xf]
  %v54 = vperm.slane %v51, 0
  %v55 = vlaneseq
  %v56 = vshrl.u32 %v55, 7
  %58 = vset.pattern.permute.xlu0 %v56
  %59 = vperm.xlu0 %58, %v54
  %v60 = vpop.permute.xlu0 %59
  %v61 = vlaneseq
  %v62 = vshrl.u32 %v61, 7
  %v63 = vadd.s32 %v62, 8
  %64 = vset.pattern.permute.xlu0 %v63
  %65 = vperm.xlu0 %64, %v54
  %v66 = vpop.permute.xlu0 %65
  %v67 = vperm.slane %v51, 1
  %v68 = vlaneseq
  %v69 = vshrl.u32 %v68, 7
  %71 = vset.pattern.permute.xlu0 %v69
  %72 = vperm.xlu0 %71, %v67
  %v73 = vpop.permute.xlu0 %72
  %v74 = vlaneseq
  %v75 = vshrl.u32 %v74, 7
  %v76 = vadd.s32 %v75, 8
  %77 = vset.pattern.permute.xlu0 %v76
  %78 = vperm.xlu0 %77, %v67
  %v79 = vpop.permute.xlu0 %78
  %v80 = vperm.slane %v51, 2
  %v81 = vlaneseq
  %v82 = vshrl.u32 %v81, 7
  %84 = vset.pattern.permute.xlu0 %v82
  %85 = vperm.xlu0 %84, %v80
  %v86 = vpop.permute.xlu0 %85
  %v87 = vlaneseq
  %v88 = vshrl.u32 %v87, 7
  %v89 = vadd.s32 %v88, 8
  %90 = vset.pattern.permute.xlu0 %v89
  %91 = vperm.xlu0 %90, %v80
  %v92 = vpop.permute.xlu0 %91
  %v93 = vperm.slane %v51, 3
  %v94 = vlaneseq
  %v95 = vshrl.u32 %v94, 7
  %97 = vset.pattern.permute.xlu0 %v95
  %98 = vperm.xlu0 %97, %v93
  %v99 = vpop.permute.xlu0 %98
  %v100 = vlaneseq
  %v101 = vshrl.u32 %v100, 7
  %v102 = vadd.s32 %v101, 8
  %103 = vset.pattern.permute.xlu0 %v102
  %104 = vperm.xlu0 %103, %v93
  %v105 = vpop.permute.xlu0 %104
  %v107 = vrot.slane %v51, 1
  %v108 = vrot.slane %v51, 2
  %v109 = vrot.slane %v51, 3
  %v110 = vperm.slane %v51, 0
  %v111 = vperm.slane %v107, 0
  %v112 = vperm.slane %v108, 0
  %v113 = vperm.slane %v109, 0
  %v118 = vsub.f32 %v60, %v110
  %v119 = vsub.f32 %v66, %v110
  %v120 = vsub.f32 %v73, %v111
  %v121 = vsub.f32 %v79, %v111
  %v122 = vsub.f32 %v86, %v112
  %v123 = vsub.f32 %v92, %v112
  %v124 = vsub.f32 %v99, %v113
  %v125 = vsub.f32 %v105, %v113
  %v126 = vand.u32 2147483647, %v118
  %v127 = vand.u32 2147483647, %v119
  %v128 = vand.u32 2147483647, %v120
  %v129 = vand.u32 2147483647, %v121
  %v130 = vand.u32 2147483647, %v122
  %v131 = vand.u32 2147483647, %v123
  %v132 = vand.u32 2147483647, %v124
  %v133 = vand.u32 2147483647, %v125
  %v134 = vperm.slane %v52, 0
  %v135 = vlaneseq
  %v136 = vshrl.u32 %v135, 7
  %138 = vset.pattern.permute.xlu0 %v136
  %139 = vperm.xlu0 %138, %v134
  %v140 = vpop.permute.xlu0 %139
  %v141 = vlaneseq
  %v142 = vshrl.u32 %v141, 7
  %v143 = vadd.s32 %v142, 8
  %144 = vset.pattern.permute.xlu0 %v143
  %145 = vperm.xlu0 %144, %v134
  %v146 = vpop.permute.xlu0 %145
  %v147 = vperm.slane %v52, 1
  %v148 = vlaneseq
  %v149 = vshrl.u32 %v148, 7
  %151 = vset.pattern.permute.xlu0 %v149
  %152 = vperm.xlu0 %151, %v147
  %v153 = vpop.permute.xlu0 %152
  %v154 = vlaneseq
  %v155 = vshrl.u32 %v154, 7
  %v156 = vadd.s32 %v155, 8
  %157 = vset.pattern.permute.xlu0 %v156
  %158 = vperm.xlu0 %157, %v147
  %v159 = vpop.permute.xlu0 %158
  %v160 = vperm.slane %v52, 2
  %v161 = vlaneseq
  %v162 = vshrl.u32 %v161, 7
  %164 = vset.pattern.permute.xlu0 %v162
  %165 = vperm.xlu0 %164, %v160
  %v166 = vpop.permute.xlu0 %165
  %v167 = vlaneseq
  %v168 = vshrl.u32 %v167, 7
  %v169 = vadd.s32 %v168, 8
  %170 = vset.pattern.permute.xlu0 %v169
  %171 = vperm.xlu0 %170, %v160
  %v172 = vpop.permute.xlu0 %171
  %v173 = vperm.slane %v52, 3
  %v174 = vlaneseq
  %v175 = vshrl.u32 %v174, 7
  %177 = vset.pattern.permute.xlu0 %v175
  %178 = vperm.xlu0 %177, %v173
  %v179 = vpop.permute.xlu0 %178
  %v180 = vlaneseq
  %v181 = vshrl.u32 %v180, 7
  %v182 = vadd.s32 %v181, 8
  %183 = vset.pattern.permute.xlu0 %v182
  %184 = vperm.xlu0 %183, %v173
  %v185 = vpop.permute.xlu0 %184
  %v187 = vrot.slane %v52, 1
  %v188 = vrot.slane %v52, 2
  %v189 = vrot.slane %v52, 3
  %v190 = vperm.slane %v52, 0
  %v191 = vperm.slane %v187, 0
  %v192 = vperm.slane %v188, 0
  %v193 = vperm.slane %v189, 0
  %v198 = vsub.f32 %v140, %v190
  %v199 = vsub.f32 %v146, %v190
  %v200 = vsub.f32 %v153, %v191
  %v201 = vsub.f32 %v159, %v191
  %v202 = vsub.f32 %v166, %v192
  %v203 = vsub.f32 %v172, %v192
  %v204 = vsub.f32 %v179, %v193
  %v205 = vsub.f32 %v185, %v193
  %v206 = vand.u32 2147483647, %v198
  %v207 = vand.u32 2147483647, %v199
  %v208 = vand.u32 2147483647, %v200
  %v209 = vand.u32 2147483647, %v201
  %v210 = vand.u32 2147483647, %v202
  %v211 = vand.u32 2147483647, %v203
  %v212 = vand.u32 2147483647, %v204
  %v213 = vand.u32 2147483647, %v205
  %v214 = vadd.f32 %v126, %v206
  %v215 = vadd.f32 %v127, %v207
  %v216 = vadd.f32 %v128, %v208
  %v217 = vadd.f32 %v129, %v209
  %v218 = vadd.f32 %v130, %v210
  %v219 = vadd.f32 %v131, %v211
  %v220 = vadd.f32 %v132, %v212
  %v221 = vadd.f32 %v133, %v213
  %v222 = vperm.slane %v53, 0
  %v223 = vlaneseq
  %v224 = vshrl.u32 %v223, 7
  %226 = vset.pattern.permute.xlu0 %v224
  %227 = vperm.xlu0 %226, %v222
  %v228 = vpop.permute.xlu0 %227
  %v229 = vlaneseq
  %v230 = vshrl.u32 %v229, 7
  %v231 = vadd.s32 %v230, 8
  %232 = vset.pattern.permute.xlu0 %v231
  %233 = vperm.xlu0 %232, %v222
  %v234 = vpop.permute.xlu0 %233
  %v235 = vperm.slane %v53, 1
  %v236 = vlaneseq
  %v237 = vshrl.u32 %v236, 7
  %239 = vset.pattern.permute.xlu0 %v237
  %240 = vperm.xlu0 %239, %v235
  %v241 = vpop.permute.xlu0 %240
  %v242 = vlaneseq
  %v243 = vshrl.u32 %v242, 7
  %v244 = vadd.s32 %v243, 8
  %245 = vset.pattern.permute.xlu0 %v244
  %246 = vperm.xlu0 %245, %v235
  %v247 = vpop.permute.xlu0 %246
  %v248 = vperm.slane %v53, 2
  %v249 = vlaneseq
  %v250 = vshrl.u32 %v249, 7
  %252 = vset.pattern.permute.xlu0 %v250
  %253 = vperm.xlu0 %252, %v248
  %v254 = vpop.permute.xlu0 %253
  %v255 = vlaneseq
  %v256 = vshrl.u32 %v255, 7
  %v257 = vadd.s32 %v256, 8
  %258 = vset.pattern.permute.xlu0 %v257
  %259 = vperm.xlu0 %258, %v248
  %v260 = vpop.permute.xlu0 %259
  %v261 = vperm.slane %v53, 3
  %v262 = vlaneseq
  %v263 = vshrl.u32 %v262, 7
  %265 = vset.pattern.permute.xlu0 %v263
  %266 = vperm.xlu0 %265, %v261
  %v267 = vpop.permute.xlu0 %266
  %v268 = vlaneseq
  %v269 = vshrl.u32 %v268, 7
  %v270 = vadd.s32 %v269, 8
  %271 = vset.pattern.permute.xlu0 %v270
  %272 = vperm.xlu0 %271, %v261
  %v273 = vpop.permute.xlu0 %272
  %v275 = vrot.slane %v53, 1
  %v276 = vrot.slane %v53, 2
  %v277 = vrot.slane %v53, 3
  %v278 = vperm.slane %v53, 0
  %v279 = vperm.slane %v275, 0
  %v280 = vperm.slane %v276, 0
  %v281 = vperm.slane %v277, 0
  %v286 = vsub.f32 %v228, %v278
  %v287 = vsub.f32 %v234, %v278
  %v288 = vsub.f32 %v241, %v279
  %v289 = vsub.f32 %v247, %v279
  %v290 = vsub.f32 %v254, %v280
  %v291 = vsub.f32 %v260, %v280
  %v292 = vsub.f32 %v267, %v281
  %v293 = vsub.f32 %v273, %v281
  %v294 = vand.u32 2147483647, %v286
  %v295 = vand.u32 2147483647, %v287
  %v296 = vand.u32 2147483647, %v288
  %v297 = vand.u32 2147483647, %v289
  %v298 = vand.u32 2147483647, %v290
  %v299 = vand.u32 2147483647, %v291
  %v300 = vand.u32 2147483647, %v292
  %v301 = vand.u32 2147483647, %v293
  %v302 = vadd.f32 %v214, %v294
  %v303 = vadd.f32 %v215, %v295
  %v304 = vadd.f32 %v216, %v296
  %v305 = vadd.f32 %v217, %v297
  %v306 = vadd.f32 %v218, %v298
  %v307 = vadd.f32 %v219, %v299
  %v308 = vadd.f32 %v220, %v300
  %v309 = vadd.f32 %v221, %v301
  %v310 = vld [vmem:[%s6] sm:$0x1]
  %v311 = vmul.f32 %v35, %v35
  %v312 = vmul.f32 %v36, %v36
  %v313 = vmul.f32 %v37, %v37
  %v314 = vmul.f32 %v38, %v38
  %v315 = vmul.f32 %v39, %v39
  %v316 = vmul.f32 %v40, %v40
  %v317 = vmul.f32 %v41, %v41
  %v318 = vmul.f32 %v42, %v42
  %vm319 = vcmask 261120
  %v320 = vsel %vm319, %v311, 0.0
  %321 = vadd.xlane.f32.xlu0 %v320
  %v322 = vpop.xlane.xlu0 %321
  %v323 = vsel %vm319, %v312, 0.0
  %324 = vadd.xlane.f32.xlu0 %v323
  %v325 = vpop.xlane.xlu0 %324
  %v326 = vsel %vm319, %v313, 0.0
  %327 = vadd.xlane.f32.xlu0 %v326
  %v328 = vpop.xlane.xlu0 %327
  %v329 = vsel %vm319, %v314, 0.0
  %330 = vadd.xlane.f32.xlu0 %v329
  %v331 = vpop.xlane.xlu0 %330
  %v332 = vsel %vm319, %v315, 0.0
  %333 = vadd.xlane.f32.xlu0 %v332
  %v334 = vpop.xlane.xlu0 %333
  %v335 = vsel %vm319, %v316, 0.0
  %336 = vadd.xlane.f32.xlu0 %v335
  %v337 = vpop.xlane.xlu0 %336
  %v338 = vsel %vm319, %v317, 0.0
  %339 = vadd.xlane.f32.xlu0 %v338
  %v340 = vpop.xlane.xlu0 %339
  %v341 = vsel %vm319, %v318, 0.0
  %342 = vadd.xlane.f32.xlu0 %v341
  %v343 = vpop.xlane.xlu0 %342
  %v344 = vrcp.pop 32.0
  %v345 = vmul.f32 32.0, %v344
  %v346 = vsub.f32 1.0, %v345
  %v347 = vmul.f32 %v344, %v346
  %v348 = vadd.f32 %v344, %v347
  %vm349 = vweird.f32 %v344
  %v350 = vsel %vm349, %v344, %v348
  %v351 = vmul.f32 %v322, %v350
  %v352 = vmul.f32 %v325, %v350
  %v353 = vmul.f32 %v328, %v350
  %v354 = vmul.f32 %v331, %v350
  %v355 = vmul.f32 %v334, %v350
  %v356 = vmul.f32 %v337, %v350
  %v357 = vmul.f32 %v340, %v350
  %v358 = vmul.f32 %v343, %v350
  %v359 = vadd.f32 %v351, 1e-06
  %v360 = vadd.f32 %v352, 1e-06
  %v361 = vadd.f32 %v353, 1e-06
  %v362 = vadd.f32 %v354, 1e-06
  %v363 = vadd.f32 %v355, 1e-06
  %v364 = vadd.f32 %v356, 1e-06
  %v365 = vadd.f32 %v357, 1e-06
  %v366 = vadd.f32 %v358, 1e-06
  %v367 = vrsqrt.pop %v359
  %v368 = vmul.f32 %v367, %v359
  %v369 = vmul.f32 %v368, %v367
  %v370 = vmul.f32 0.5, %v369
  %v371 = vsub.f32 1.5, %v370
  %v372 = vmul.f32 %v367, %v371
  %vm373 = vweird.f32 %v359
  %vm374 = vweird.f32 %v367
  %vm375 = vmor %vm373, %vm374
  %v376 = vsel %vm375, %v367, %v372
  %v377 = vrsqrt.pop %v360
  %v378 = vmul.f32 %v377, %v360
  %v379 = vmul.f32 %v378, %v377
  %v380 = vmul.f32 0.5, %v379
  %v381 = vsub.f32 1.5, %v380
  %v382 = vmul.f32 %v377, %v381
  %vm383 = vweird.f32 %v360
  %vm384 = vweird.f32 %v377
  %vm385 = vmor %vm383, %vm384
  %v386 = vsel %vm385, %v377, %v382
  %v387 = vrsqrt.pop %v361
  %v388 = vmul.f32 %v387, %v361
  %v389 = vmul.f32 %v388, %v387
  %v390 = vmul.f32 0.5, %v389
  %v391 = vsub.f32 1.5, %v390
  %v392 = vmul.f32 %v387, %v391
  %vm393 = vweird.f32 %v361
  %vm394 = vweird.f32 %v387
  %vm395 = vmor %vm393, %vm394
  %v396 = vsel %vm395, %v387, %v392
  %v397 = vrsqrt.pop %v362
  %v398 = vmul.f32 %v397, %v362
  %v399 = vmul.f32 %v398, %v397
  %v400 = vmul.f32 0.5, %v399
  %v401 = vsub.f32 1.5, %v400
  %v402 = vmul.f32 %v397, %v401
  %vm403 = vweird.f32 %v362
  %vm404 = vweird.f32 %v397
  %vm405 = vmor %vm403, %vm404
  %v406 = vsel %vm405, %v397, %v402
  %v407 = vrsqrt.pop %v363
  %v408 = vmul.f32 %v407, %v363
  %v409 = vmul.f32 %v408, %v407
  %v410 = vmul.f32 0.5, %v409
  %v411 = vsub.f32 1.5, %v410
  %v412 = vmul.f32 %v407, %v411
  %vm413 = vweird.f32 %v363
  %vm414 = vweird.f32 %v407
  %vm415 = vmor %vm413, %vm414
  %v416 = vsel %vm415, %v407, %v412
  %v417 = vrsqrt.pop %v364
  %v418 = vmul.f32 %v417, %v364
  %v419 = vmul.f32 %v418, %v417
  %v420 = vmul.f32 0.5, %v419
  %v421 = vsub.f32 1.5, %v420
  %v422 = vmul.f32 %v417, %v421
  %vm423 = vweird.f32 %v364
  %vm424 = vweird.f32 %v417
  %vm425 = vmor %vm423, %vm424
  %v426 = vsel %vm425, %v417, %v422
  %v427 = vrsqrt.pop %v365
  %v428 = vmul.f32 %v427, %v365
  %v429 = vmul.f32 %v428, %v427
  %v430 = vmul.f32 0.5, %v429
  %v431 = vsub.f32 1.5, %v430
  %v432 = vmul.f32 %v427, %v431
  %vm433 = vweird.f32 %v365
  %vm434 = vweird.f32 %v427
  %vm435 = vmor %vm433, %vm434
  %v436 = vsel %vm435, %v427, %v432
  %v437 = vrsqrt.pop %v366
  %v438 = vmul.f32 %v437, %v366
  %v439 = vmul.f32 %v438, %v437
  %v440 = vmul.f32 0.5, %v439
  %v441 = vsub.f32 1.5, %v440
  %v442 = vmul.f32 %v437, %v441
  %vm443 = vweird.f32 %v366
  %vm444 = vweird.f32 %v437
  %vm445 = vmor %vm443, %vm444
  %v446 = vsel %vm445, %v437, %v442
  %v447 = vmul.f32 %v35, %v376
  %v448 = vmul.f32 %v36, %v386
  %v449 = vmul.f32 %v37, %v396
  %v450 = vmul.f32 %v38, %v406
  %v451 = vmul.f32 %v39, %v416
  %v452 = vmul.f32 %v40, %v426
  %v453 = vmul.f32 %v41, %v436
  %v454 = vmul.f32 %v42, %v446
  %v456 = vperm.slane %v310, 0
  %v458 = vmul.f32 %v447, %v456
  %v459 = vmul.f32 %v448, %v456
  %v460 = vmul.f32 %v449, %v456
  %v461 = vmul.f32 %v450, %v456
  %v462 = vmul.f32 %v451, %v456
  %v463 = vmul.f32 %v452, %v456
  %v464 = vmul.f32 %v453, %v456
  %v465 = vmul.f32 %v454, %v456
  %v466 = vadd.f32 %v458, %v43
  %v467 = vadd.f32 %v459, %v44
  %v468 = vadd.f32 %v460, %v45
  %v469 = vadd.f32 %v461, %v46
  %v470 = vadd.f32 %v462, %v47
  %v471 = vadd.f32 %v463, %v48
  %v472 = vadd.f32 %v464, %v49
  %v473 = vadd.f32 %v465, %v50
  %v474 = vld [vmem:[%s3] sm:$0xff]
  %v475 = vld [vmem:[%s3 + $0x8] sm:$0xff]
  %v476 = vld [vmem:[%s3 + $0x10] sm:$0xff]
  %v477 = vld [vmem:[%s3 + $0x18] sm:$0xff]
  %v479 = vsel %vm319, %v466, 0
  %v482 = vsel %vm319, %v467, 0
  %v485 = vsel %vm319, %v468, 0
  %v488 = vsel %vm319, %v469, 0
  %v491 = vsel %vm319, %v470, 0
  %v494 = vsel %vm319, %v471, 0
  %v497 = vsel %vm319, %v472, 0
  %v500 = vsel %vm319, %v473, 0
  %502 = vmatpush.msra.mxu0 0.0
  %503 = vmatpush.msra.mxu0 0.0
  %504 = vmatpush.msra.mxu0 0.0
  %505 = vmatpush.msra.mxu0 0.0
  %506 = vmatpush.msra.mxu0 0.0
  %507 = vmatpush.msra.mxu0 0.0
  %508 = vmatpush.msra.mxu0 0.0
  %509 = vmatpush.msra.mxu0 0.0
  %510 = vmatpush.msra.mxu0 0.0
  %511 = vmatpush.msra.mxu0 0.0
  %512 = vmatpush.msra.mxu0 0.0
  %513 = vmatpush.msra.mxu0 0.0
  %514 = vmatpush.msra.mxu0 %v477
  %515 = vmatpush.msra.mxu0 %v476
  %516 = vmatpush.msra.mxu0 %v475
  %517 = vmatpush.msra.mxu0 %v474
  %518 = vmatmul.f32.gmra.mxu0 %v479
  %v519 = vpop.f32.mrf.mxu0
  %v520 = vadd.f32 0.0, %v519
  %521 = vmatmul.f32.gmra.mxu0 %v482
  %v522 = vpop.f32.mrf.mxu0
  %v523 = vadd.f32 0.0, %v522
  %524 = vmatmul.f32.gmra.mxu0 %v485
  %v525 = vpop.f32.mrf.mxu0
  %v526 = vadd.f32 0.0, %v525
  %527 = vmatmul.f32.gmra.mxu0 %v488
  %v528 = vpop.f32.mrf.mxu0
  %v529 = vadd.f32 0.0, %v528
  %530 = vmatmul.f32.gmra.mxu0 %v491
  %v531 = vpop.f32.mrf.mxu0
  %v532 = vadd.f32 0.0, %v531
  %533 = vmatmul.f32.gmra.mxu0 %v494
  %v534 = vpop.f32.mrf.mxu0
  %v535 = vadd.f32 0.0, %v534
  %536 = vmatmul.f32.gmra.mxu0 %v497
  %v537 = vpop.f32.mrf.mxu0
  %v538 = vadd.f32 0.0, %v537
  %539 = vmatmul.f32.gmra.mxu0 %v500
  %v540 = vpop.f32.mrf.mxu0
  %v541 = vadd.f32 0.0, %v540
  %542 = vdwg.mxu0
  %v543 = vld [vmem:[%s4] sm:$0xff]
  %v544 = vld [vmem:[%s4 + $0x8] sm:$0xff]
  %v545 = vld [vmem:[%s4 + $0x10] sm:$0xff]
  %v546 = vld [vmem:[%s4 + $0x18] sm:$0xff]
  %v548 = vsel %vm319, %v458, 0
  %v551 = vsel %vm319, %v459, 0
  %v554 = vsel %vm319, %v460, 0
  %v557 = vsel %vm319, %v461, 0
  %v560 = vsel %vm319, %v462, 0
  %v563 = vsel %vm319, %v463, 0
  %v566 = vsel %vm319, %v464, 0
  %v569 = vsel %vm319, %v465, 0
  %571 = vmatpush.msra.mxu0 0.0
  %572 = vmatpush.msra.mxu0 0.0
  %573 = vmatpush.msra.mxu0 0.0
  %574 = vmatpush.msra.mxu0 0.0
  %575 = vmatpush.msra.mxu0 0.0
  %576 = vmatpush.msra.mxu0 0.0
  %577 = vmatpush.msra.mxu0 0.0
  %578 = vmatpush.msra.mxu0 0.0
  %579 = vmatpush.msra.mxu0 0.0
  %580 = vmatpush.msra.mxu0 0.0
  %581 = vmatpush.msra.mxu0 0.0
  %582 = vmatpush.msra.mxu0 0.0
  %583 = vmatpush.msra.mxu0 %v546
  %584 = vmatpush.msra.mxu0 %v545
  %585 = vmatpush.msra.mxu0 %v544
  %586 = vmatpush.msra.mxu0 %v543
  %587 = vmatmul.f32.gmra.mxu0 %v548
  %v588 = vpop.f32.mrf.mxu0
  %v589 = vadd.f32 0.0, %v588
  %590 = vmatmul.f32.gmra.mxu0 %v551
  %v591 = vpop.f32.mrf.mxu0
  %v592 = vadd.f32 0.0, %v591
  %593 = vmatmul.f32.gmra.mxu0 %v554
  %v594 = vpop.f32.mrf.mxu0
  %v595 = vadd.f32 0.0, %v594
  %596 = vmatmul.f32.gmra.mxu0 %v557
  %v597 = vpop.f32.mrf.mxu0
  %v598 = vadd.f32 0.0, %v597
  %599 = vmatmul.f32.gmra.mxu0 %v560
  %v600 = vpop.f32.mrf.mxu0
  %v601 = vadd.f32 0.0, %v600
  %602 = vmatmul.f32.gmra.mxu0 %v563
  %v603 = vpop.f32.mrf.mxu0
  %v604 = vadd.f32 0.0, %v603
  %605 = vmatmul.f32.gmra.mxu0 %v566
  %v606 = vpop.f32.mrf.mxu0
  %v607 = vadd.f32 0.0, %v606
  %608 = vmatmul.f32.gmra.mxu0 %v569
  %v609 = vpop.f32.mrf.mxu0
  %v610 = vadd.f32 0.0, %v609
  %611 = vdwg.mxu0
  %v612 = vmul.f32 %v520, 0.35355338
  %v613 = vmul.f32 %v523, 0.35355338
  %v614 = vmul.f32 %v526, 0.35355338
  %v615 = vmul.f32 %v529, 0.35355338
  %v616 = vmul.f32 %v532, 0.35355338
  %v617 = vmul.f32 %v535, 0.35355338
  %v618 = vmul.f32 %v538, 0.35355338
  %v619 = vmul.f32 %v541, 0.35355338
  %v620 = vld [vmem:[%s5] sm:$0xff]
  %v621 = vld [vmem:[%s5 + $0x8] sm:$0xff]
  %v622 = vld [vmem:[%s5 + $0x10] sm:$0xff]
  %v623 = vld [vmem:[%s5 + $0x18] sm:$0xff]
  %v624 = vmul.f32 %v302, -0.031748697
  %v625 = vmul.f32 %v303, -0.031748697
  %v626 = vmul.f32 %v304, -0.031748697
  %v627 = vmul.f32 %v305, -0.031748697
  %v628 = vmul.f32 %v306, -0.031748697
  %v629 = vmul.f32 %v307, -0.031748697
  %v630 = vmul.f32 %v308, -0.031748697
  %v631 = vmul.f32 %v309, -0.031748697
  %v632 = vmul.f32 %v624, 1.442695
  %v633 = vpow.pop %v632
  %v634 = vmul.f32 %v625, 1.442695
  %v635 = vpow.pop %v634
  %v636 = vmul.f32 %v626, 1.442695
  %v637 = vpow.pop %v636
  %v638 = vmul.f32 %v627, 1.442695
  %v639 = vpow.pop %v638
  %v640 = vmul.f32 %v628, 1.442695
  %v641 = vpow.pop %v640
  %v642 = vmul.f32 %v629, 1.442695
  %v643 = vpow.pop %v642
  %v644 = vmul.f32 %v630, 1.442695
  %v645 = vpow.pop %v644
  %v646 = vmul.f32 %v631, 1.442695
  %v647 = vpow.pop %v646
  %vm648 = vcmask 130048
  %v649 = vsel %vm648, %v633, 0.0
  %650 = vadd.xlane.f32.xlu0 %v649
  %v651 = vpop.xlane.xlu0 %650
  %v652 = vsel %vm648, %v635, 0.0
  %653 = vadd.xlane.f32.xlu0 %v652
  %v654 = vpop.xlane.xlu0 %653
  %v655 = vsel %vm648, %v637, 0.0
  %656 = vadd.xlane.f32.xlu0 %v655
  %v657 = vpop.xlane.xlu0 %656
  %v658 = vsel %vm648, %v639, 0.0
  %659 = vadd.xlane.f32.xlu0 %v658
  %v660 = vpop.xlane.xlu0 %659
  %v661 = vsel %vm648, %v641, 0.0
  %662 = vadd.xlane.f32.xlu0 %v661
  %v663 = vpop.xlane.xlu0 %662
  %v664 = vsel %vm648, %v643, 0.0
  %665 = vadd.xlane.f32.xlu0 %v664
  %v666 = vpop.xlane.xlu0 %665
  %v667 = vsel %vm648, %v645, 0.0
  %668 = vadd.xlane.f32.xlu0 %v667
  %v669 = vpop.xlane.xlu0 %668
  %v670 = vsel %vm648, %v647, 0.0
  %671 = vadd.xlane.f32.xlu0 %v670
  %v672 = vpop.xlane.xlu0 %671
  %v673 = vrsqrt.pop %v651
  %v674 = vmul.f32 %v673, %v651
  %v675 = vmul.f32 %v674, %v673
  %v676 = vmul.f32 0.5, %v675
  %v677 = vsub.f32 1.5, %v676
  %v678 = vmul.f32 %v673, %v677
  %vm679 = vweird.f32 %v651
  %vm680 = vweird.f32 %v673
  %vm681 = vmor %vm679, %vm680
  %v682 = vsel %vm681, %v673, %v678
  %v683 = vrsqrt.pop %v654
  %v684 = vmul.f32 %v683, %v654
  %v685 = vmul.f32 %v684, %v683
  %v686 = vmul.f32 0.5, %v685
  %v687 = vsub.f32 1.5, %v686
  %v688 = vmul.f32 %v683, %v687
  %vm689 = vweird.f32 %v654
  %vm690 = vweird.f32 %v683
  %vm691 = vmor %vm689, %vm690
  %v692 = vsel %vm691, %v683, %v688
  %v693 = vrsqrt.pop %v657
  %v694 = vmul.f32 %v693, %v657
  %v695 = vmul.f32 %v694, %v693
  %v696 = vmul.f32 0.5, %v695
  %v697 = vsub.f32 1.5, %v696
  %v698 = vmul.f32 %v693, %v697
  %vm699 = vweird.f32 %v657
  %vm700 = vweird.f32 %v693
  %vm701 = vmor %vm699, %vm700
  %v702 = vsel %vm701, %v693, %v698
  %v703 = vrsqrt.pop %v660
  %v704 = vmul.f32 %v703, %v660
  %v705 = vmul.f32 %v704, %v703
  %v706 = vmul.f32 0.5, %v705
  %v707 = vsub.f32 1.5, %v706
  %v708 = vmul.f32 %v703, %v707
  %vm709 = vweird.f32 %v660
  %vm710 = vweird.f32 %v703
  %vm711 = vmor %vm709, %vm710
  %v712 = vsel %vm711, %v703, %v708
  %v713 = vrsqrt.pop %v663
  %v714 = vmul.f32 %v713, %v663
  %v715 = vmul.f32 %v714, %v713
  %v716 = vmul.f32 0.5, %v715
  %v717 = vsub.f32 1.5, %v716
  %v718 = vmul.f32 %v713, %v717
  %vm719 = vweird.f32 %v663
  %vm720 = vweird.f32 %v713
  %vm721 = vmor %vm719, %vm720
  %v722 = vsel %vm721, %v713, %v718
  %v723 = vrsqrt.pop %v666
  %v724 = vmul.f32 %v723, %v666
  %v725 = vmul.f32 %v724, %v723
  %v726 = vmul.f32 0.5, %v725
  %v727 = vsub.f32 1.5, %v726
  %v728 = vmul.f32 %v723, %v727
  %vm729 = vweird.f32 %v666
  %vm730 = vweird.f32 %v723
  %vm731 = vmor %vm729, %vm730
  %v732 = vsel %vm731, %v723, %v728
  %v733 = vrsqrt.pop %v669
  %v734 = vmul.f32 %v733, %v669
  %v735 = vmul.f32 %v734, %v733
  %v736 = vmul.f32 0.5, %v735
  %v737 = vsub.f32 1.5, %v736
  %v738 = vmul.f32 %v733, %v737
  %vm739 = vweird.f32 %v669
  %vm740 = vweird.f32 %v733
  %vm741 = vmor %vm739, %vm740
  %v742 = vsel %vm741, %v733, %v738
  %v743 = vrsqrt.pop %v672
  %v744 = vmul.f32 %v743, %v672
  %v745 = vmul.f32 %v744, %v743
  %v746 = vmul.f32 0.5, %v745
  %v747 = vsub.f32 1.5, %v746
  %v748 = vmul.f32 %v743, %v747
  %vm749 = vweird.f32 %v672
  %vm750 = vweird.f32 %v743
  %vm751 = vmor %vm749, %vm750
  %v752 = vsel %vm751, %v743, %v748
  %v753 = vmul.f32 %v633, %v682
  %v754 = vmul.f32 %v635, %v692
  %v755 = vmul.f32 %v637, %v702
  %v756 = vmul.f32 %v639, %v712
  %v757 = vmul.f32 %v641, %v722
  %v758 = vmul.f32 %v643, %v732
  %v759 = vmul.f32 %v645, %v742
  %v760 = vmul.f32 %v647, %v752
  %763 = vrot.lane.b32.xlu0 %v612, 96
  %v764 = vpop.permute.xlu0 %763
  %765 = vrot.lane.b32.xlu0 %v613, 96
  %v766 = vpop.permute.xlu0 %765
  %vm767 = vcmask 64512
  %v769 = vsel %vm767, %v520, 0
  %v772 = vsel %vm767, %v523, 0
  %v774 = vsel %vm767, %v764, 0
  %v776 = vsel %vm767, %v766, 0
  %778 = vmatpush.xpose.msra.mxu0 0.0
  %779 = vmatpush.xpose.msra.mxu0 0.0
  %780 = vmatpush.xpose.msra.mxu0 0.0
  %781 = vmatpush.xpose.msra.mxu0 0.0
  %782 = vmatpush.xpose.msra.mxu0 0.0
  %783 = vmatpush.xpose.msra.mxu0 0.0
  %784 = vmatpush.xpose.msra.mxu0 0.0
  %785 = vmatpush.xpose.msra.mxu0 0.0
  %786 = vmatpush.xpose.msra.mxu0 0.0
  %787 = vmatpush.xpose.msra.mxu0 0.0
  %788 = vmatpush.xpose.msra.mxu0 0.0
  %789 = vmatpush.xpose.msra.mxu0 0.0
  %790 = vmatpush.xpose.msra.mxu0 0.0
  %791 = vmatpush.xpose.msra.mxu0 0.0
  %792 = vmatpush.xpose.msra.mxu0 %v776
  %793 = vmatpush.xpose.msra.mxu0 %v774
  %794 = vmatmul.f32.gmra.mxu0 %v769
  %v795 = vpop.f32.mrf.mxu0
  %v796 = vadd.f32 0.0, %v795
  %797 = vmatmul.f32.gmra.mxu0 %v772
  %v798 = vpop.f32.mrf.mxu0
  %v799 = vadd.f32 0.0, %v798
  %800 = vdwg.mxu0
  %803 = vrot.lane.b32.xlu0 %v614, 96
  %v804 = vpop.permute.xlu0 %803
  %805 = vrot.lane.b32.xlu0 %v615, 96
  %v806 = vpop.permute.xlu0 %805
  %v808 = vsel %vm767, %v526, 0
  %v811 = vsel %vm767, %v529, 0
  %v813 = vsel %vm767, %v804, 0
  %v815 = vsel %vm767, %v806, 0
  %817 = vmatpush.xpose.msra.mxu0 0.0
  %818 = vmatpush.xpose.msra.mxu0 0.0
  %819 = vmatpush.xpose.msra.mxu0 0.0
  %820 = vmatpush.xpose.msra.mxu0 0.0
  %821 = vmatpush.xpose.msra.mxu0 0.0
  %822 = vmatpush.xpose.msra.mxu0 0.0
  %823 = vmatpush.xpose.msra.mxu0 0.0
  %824 = vmatpush.xpose.msra.mxu0 0.0
  %825 = vmatpush.xpose.msra.mxu0 0.0
  %826 = vmatpush.xpose.msra.mxu0 0.0
  %827 = vmatpush.xpose.msra.mxu0 0.0
  %828 = vmatpush.xpose.msra.mxu0 0.0
  %829 = vmatpush.xpose.msra.mxu0 0.0
  %830 = vmatpush.xpose.msra.mxu0 0.0
  %831 = vmatpush.xpose.msra.mxu0 %v815
  %832 = vmatpush.xpose.msra.mxu0 %v813
  %833 = vmatmul.f32.gmra.mxu0 %v808
  %v834 = vpop.f32.mrf.mxu0
  %v835 = vadd.f32 0.0, %v834
  %836 = vmatmul.f32.gmra.mxu0 %v811
  %v837 = vpop.f32.mrf.mxu0
  %v838 = vadd.f32 0.0, %v837
  %839 = vdwg.mxu0
  %842 = vrot.lane.b32.xlu0 %v616, 96
  %v843 = vpop.permute.xlu0 %842
  %844 = vrot.lane.b32.xlu0 %v617, 96
  %v845 = vpop.permute.xlu0 %844
  %v847 = vsel %vm767, %v532, 0
  %v850 = vsel %vm767, %v535, 0
  %v852 = vsel %vm767, %v843, 0
  %v854 = vsel %vm767, %v845, 0
  %856 = vmatpush.xpose.msra.mxu0 0.0
  %857 = vmatpush.xpose.msra.mxu0 0.0
  %858 = vmatpush.xpose.msra.mxu0 0.0
  %859 = vmatpush.xpose.msra.mxu0 0.0
  %860 = vmatpush.xpose.msra.mxu0 0.0
  %861 = vmatpush.xpose.msra.mxu0 0.0
  %862 = vmatpush.xpose.msra.mxu0 0.0
  %863 = vmatpush.xpose.msra.mxu0 0.0
  %864 = vmatpush.xpose.msra.mxu0 0.0
  %865 = vmatpush.xpose.msra.mxu0 0.0
  %866 = vmatpush.xpose.msra.mxu0 0.0
  %867 = vmatpush.xpose.msra.mxu0 0.0
  %868 = vmatpush.xpose.msra.mxu0 0.0
  %869 = vmatpush.xpose.msra.mxu0 0.0
  %870 = vmatpush.xpose.msra.mxu0 %v854
  %871 = vmatpush.xpose.msra.mxu0 %v852
  %872 = vmatmul.f32.gmra.mxu0 %v847
  %v873 = vpop.f32.mrf.mxu0
  %v874 = vadd.f32 0.0, %v873
  %875 = vmatmul.f32.gmra.mxu0 %v850
  %v876 = vpop.f32.mrf.mxu0
  %v877 = vadd.f32 0.0, %v876
  %878 = vdwg.mxu0
  %881 = vrot.lane.b32.xlu0 %v618, 96
  %v882 = vpop.permute.xlu0 %881
  %883 = vrot.lane.b32.xlu0 %v619, 96
  %v884 = vpop.permute.xlu0 %883
  %v886 = vsel %vm767, %v538, 0
  %v889 = vsel %vm767, %v541, 0
  %v891 = vsel %vm767, %v882, 0
  %v893 = vsel %vm767, %v884, 0
  %895 = vmatpush.xpose.msra.mxu0 0.0
  %896 = vmatpush.xpose.msra.mxu0 0.0
  %897 = vmatpush.xpose.msra.mxu0 0.0
  %898 = vmatpush.xpose.msra.mxu0 0.0
  %899 = vmatpush.xpose.msra.mxu0 0.0
  %900 = vmatpush.xpose.msra.mxu0 0.0
  %901 = vmatpush.xpose.msra.mxu0 0.0
  %902 = vmatpush.xpose.msra.mxu0 0.0
  %903 = vmatpush.xpose.msra.mxu0 0.0
  %904 = vmatpush.xpose.msra.mxu0 0.0
  %905 = vmatpush.xpose.msra.mxu0 0.0
  %906 = vmatpush.xpose.msra.mxu0 0.0
  %907 = vmatpush.xpose.msra.mxu0 0.0
  %908 = vmatpush.xpose.msra.mxu0 0.0
  %909 = vmatpush.xpose.msra.mxu0 %v893
  %910 = vmatpush.xpose.msra.mxu0 %v891
  %911 = vmatmul.f32.gmra.mxu0 %v886
  %v912 = vpop.f32.mrf.mxu0
  %v913 = vadd.f32 0.0, %v912
  %914 = vmatmul.f32.gmra.mxu0 %v889
  %v915 = vpop.f32.mrf.mxu0
  %v916 = vadd.f32 0.0, %v915
  %917 = vdwg.mxu0
  %v918 = vmul.f32 %v796, %v753
  %v919 = vmul.f32 %v799, %v754
  %v920 = vmul.f32 %v835, %v755
  %v921 = vmul.f32 %v838, %v756
  %v922 = vmul.f32 %v874, %v757
  %v923 = vmul.f32 %v877, %v758
  %v924 = vmul.f32 %v913, %v759
  %v925 = vmul.f32 %v916, %v760
  %v926 = vsel %vm648, %v918, -inf
  %927 = vmax.xlane.f32.xlu0 %v926
  %v928 = vpop.xlane.xlu0 %927
  %v929 = vsel %vm648, %v919, -inf
  %930 = vmax.xlane.f32.xlu0 %v929
  %v931 = vpop.xlane.xlu0 %930
  %v932 = vsel %vm648, %v920, -inf
  %933 = vmax.xlane.f32.xlu0 %v932
  %v934 = vpop.xlane.xlu0 %933
  %v935 = vsel %vm648, %v921, -inf
  %936 = vmax.xlane.f32.xlu0 %v935
  %v937 = vpop.xlane.xlu0 %936
  %v938 = vsel %vm648, %v922, -inf
  %939 = vmax.xlane.f32.xlu0 %v938
  %v940 = vpop.xlane.xlu0 %939
  %v941 = vsel %vm648, %v923, -inf
  %942 = vmax.xlane.f32.xlu0 %v941
  %v943 = vpop.xlane.xlu0 %942
  %v944 = vsel %vm648, %v924, -inf
  %945 = vmax.xlane.f32.xlu0 %v944
  %v946 = vpop.xlane.xlu0 %945
  %v947 = vsel %vm648, %v925, -inf
  %948 = vmax.xlane.f32.xlu0 %v947
  %v949 = vpop.xlane.xlu0 %948
  %v950 = vsub.f32 %v918, %v928
  %v951 = vsub.f32 %v919, %v931
  %v952 = vsub.f32 %v920, %v934
  %v953 = vsub.f32 %v921, %v937
  %v954 = vsub.f32 %v922, %v940
  %v955 = vsub.f32 %v923, %v943
  %v956 = vsub.f32 %v924, %v946
  %v957 = vsub.f32 %v925, %v949
  %v958 = vmul.f32 %v950, 1.442695
  %v959 = vpow.pop %v958
  %v960 = vmul.f32 %v951, 1.442695
  %v961 = vpow.pop %v960
  %v962 = vmul.f32 %v952, 1.442695
  %v963 = vpow.pop %v962
  %v964 = vmul.f32 %v953, 1.442695
  %v965 = vpow.pop %v964
  %v966 = vmul.f32 %v954, 1.442695
  %v967 = vpow.pop %v966
  %v968 = vmul.f32 %v955, 1.442695
  %v969 = vpow.pop %v968
  %v970 = vmul.f32 %v956, 1.442695
  %v971 = vpow.pop %v970
  %v972 = vmul.f32 %v957, 1.442695
  %v973 = vpow.pop %v972
  %v974 = vsel %vm648, %v959, 0.0
  %975 = vadd.xlane.f32.xlu0 %v974
  %v976 = vpop.xlane.xlu0 %975
  %v977 = vsel %vm648, %v961, 0.0
  %978 = vadd.xlane.f32.xlu0 %v977
  %v979 = vpop.xlane.xlu0 %978
  %v980 = vsel %vm648, %v963, 0.0
  %981 = vadd.xlane.f32.xlu0 %v980
  %v982 = vpop.xlane.xlu0 %981
  %v983 = vsel %vm648, %v965, 0.0
  %984 = vadd.xlane.f32.xlu0 %v983
  %v985 = vpop.xlane.xlu0 %984
  %v986 = vsel %vm648, %v967, 0.0
  %987 = vadd.xlane.f32.xlu0 %v986
  %v988 = vpop.xlane.xlu0 %987
  %v989 = vsel %vm648, %v969, 0.0
  %990 = vadd.xlane.f32.xlu0 %v989
  %v991 = vpop.xlane.xlu0 %990
  %v992 = vsel %vm648, %v971, 0.0
  %993 = vadd.xlane.f32.xlu0 %v992
  %v994 = vpop.xlane.xlu0 %993
  %v995 = vsel %vm648, %v973, 0.0
  %996 = vadd.xlane.f32.xlu0 %v995
  %v997 = vpop.xlane.xlu0 %996
  %v998 = vrcp.pop %v976
  %v999 = vrcp.pop %v979
  %v1000 = vrcp.pop %v982
  %v1001 = vrcp.pop %v985
  %v1002 = vrcp.pop %v988
  %v1003 = vrcp.pop %v991
  %v1004 = vrcp.pop %v994
  %v1005 = vrcp.pop %v997
  %v1006 = vmul.f32 %v959, %v998
  %v1007 = vmul.f32 %v961, %v999
  %v1008 = vmul.f32 %v963, %v1000
  %v1009 = vmul.f32 %v965, %v1001
  %v1010 = vmul.f32 %v967, %v1002
  %v1011 = vmul.f32 %v969, %v1003
  %v1012 = vmul.f32 %v971, %v1004
  %v1013 = vmul.f32 %v973, %v1005
  %v1015 = vsel %vm648, %v1006, 0
  %v1018 = vsel %vm648, %v1007, 0
  %1020 = vmatpush.msra.mxu0 0.0
  %1021 = vmatpush.msra.mxu0 0.0
  %1022 = vmatpush.msra.mxu0 0.0
  %1023 = vmatpush.msra.mxu0 0.0
  %1024 = vmatpush.msra.mxu0 0.0
  %1025 = vmatpush.msra.mxu0 0.0
  %1026 = vmatpush.msra.mxu0 0.0
  %1027 = vmatpush.msra.mxu0 0.0
  %1028 = vmatpush.msra.mxu0 0.0
  %1029 = vmatpush.msra.mxu0 0.0
  %1030 = vmatpush.msra.mxu0 0.0
  %1031 = vmatpush.msra.mxu0 0.0
  %1032 = vmatpush.msra.mxu0 0.0
  %1033 = vmatpush.msra.mxu0 0.0
  %1034 = vmatpush.msra.mxu0 %v592
  %1035 = vmatpush.msra.mxu0 %v589
  %1036 = vmatmul.f32.gmra.mxu0 %v1015
  %v1037 = vpop.f32.mrf.mxu0
  %v1038 = vadd.f32 0.0, %v1037
  %1039 = vmatmul.f32.gmra.mxu0 %v1018
  %v1040 = vpop.f32.mrf.mxu0
  %v1041 = vadd.f32 0.0, %v1040
  %1042 = vdwg.mxu0
  %v1044 = vsel %vm648, %v1008, 0
  %v1047 = vsel %vm648, %v1009, 0
  %1049 = vmatpush.msra.mxu0 0.0
  %1050 = vmatpush.msra.mxu0 0.0
  %1051 = vmatpush.msra.mxu0 0.0
  %1052 = vmatpush.msra.mxu0 0.0
  %1053 = vmatpush.msra.mxu0 0.0
  %1054 = vmatpush.msra.mxu0 0.0
  %1055 = vmatpush.msra.mxu0 0.0
  %1056 = vmatpush.msra.mxu0 0.0
  %1057 = vmatpush.msra.mxu0 0.0
  %1058 = vmatpush.msra.mxu0 0.0
  %1059 = vmatpush.msra.mxu0 0.0
  %1060 = vmatpush.msra.mxu0 0.0
  %1061 = vmatpush.msra.mxu0 0.0
  %1062 = vmatpush.msra.mxu0 0.0
  %1063 = vmatpush.msra.mxu0 %v598
  %1064 = vmatpush.msra.mxu0 %v595
  %1065 = vmatmul.f32.gmra.mxu0 %v1044
  %v1066 = vpop.f32.mrf.mxu0
  %v1067 = vadd.f32 0.0, %v1066
  %1068 = vmatmul.f32.gmra.mxu0 %v1047
  %v1069 = vpop.f32.mrf.mxu0
  %v1070 = vadd.f32 0.0, %v1069
  %1071 = vdwg.mxu0
  %v1073 = vsel %vm648, %v1010, 0
  %v1076 = vsel %vm648, %v1011, 0
  %1078 = vmatpush.msra.mxu0 0.0
  %1079 = vmatpush.msra.mxu0 0.0
  %1080 = vmatpush.msra.mxu0 0.0
  %1081 = vmatpush.msra.mxu0 0.0
  %1082 = vmatpush.msra.mxu0 0.0
  %1083 = vmatpush.msra.mxu0 0.0
  %1084 = vmatpush.msra.mxu0 0.0
  %1085 = vmatpush.msra.mxu0 0.0
  %1086 = vmatpush.msra.mxu0 0.0
  %1087 = vmatpush.msra.mxu0 0.0
  %1088 = vmatpush.msra.mxu0 0.0
  %1089 = vmatpush.msra.mxu0 0.0
  %1090 = vmatpush.msra.mxu0 0.0
  %1091 = vmatpush.msra.mxu0 0.0
  %1092 = vmatpush.msra.mxu0 %v604
  %1093 = vmatpush.msra.mxu0 %v601
  %1094 = vmatmul.f32.gmra.mxu0 %v1073
  %v1095 = vpop.f32.mrf.mxu0
  %v1096 = vadd.f32 0.0, %v1095
  %1097 = vmatmul.f32.gmra.mxu0 %v1076
  %v1098 = vpop.f32.mrf.mxu0
  %v1099 = vadd.f32 0.0, %v1098
  %1100 = vdwg.mxu0
  %v1102 = vsel %vm648, %v1012, 0
  %v1105 = vsel %vm648, %v1013, 0
  %1107 = vmatpush.msra.mxu0 0.0
  %1108 = vmatpush.msra.mxu0 0.0
  %1109 = vmatpush.msra.mxu0 0.0
  %1110 = vmatpush.msra.mxu0 0.0
  %1111 = vmatpush.msra.mxu0 0.0
  %1112 = vmatpush.msra.mxu0 0.0
  %1113 = vmatpush.msra.mxu0 0.0
  %1114 = vmatpush.msra.mxu0 0.0
  %1115 = vmatpush.msra.mxu0 0.0
  %1116 = vmatpush.msra.mxu0 0.0
  %1117 = vmatpush.msra.mxu0 0.0
  %1118 = vmatpush.msra.mxu0 0.0
  %1119 = vmatpush.msra.mxu0 0.0
  %1120 = vmatpush.msra.mxu0 0.0
  %1121 = vmatpush.msra.mxu0 %v610
  %1122 = vmatpush.msra.mxu0 %v607
  %1123 = vmatmul.f32.gmra.mxu0 %v1102
  %v1124 = vpop.f32.mrf.mxu0
  %v1125 = vadd.f32 0.0, %v1124
  %1126 = vmatmul.f32.gmra.mxu0 %v1105
  %v1127 = vpop.f32.mrf.mxu0
  %v1128 = vadd.f32 0.0, %v1127
  %1129 = vdwg.mxu0
  %v1130 = vmul.f32 %v1038, %v1038
  %v1131 = vmul.f32 %v1041, %v1041
  %v1132 = vmul.f32 %v1067, %v1067
  %v1133 = vmul.f32 %v1070, %v1070
  %v1134 = vmul.f32 %v1096, %v1096
  %v1135 = vmul.f32 %v1099, %v1099
  %v1136 = vmul.f32 %v1125, %v1125
  %v1137 = vmul.f32 %v1128, %v1128
  %v1138 = vsel %vm767, %v1130, 0.0
  %1139 = vadd.xlane.f32.xlu0 %v1138
  %v1140 = vpop.xlane.xlu0 %1139
  %v1141 = vsel %vm767, %v1131, 0.0
  %1142 = vadd.xlane.f32.xlu0 %v1141
  %v1143 = vpop.xlane.xlu0 %1142
  %v1144 = vsel %vm767, %v1132, 0.0
  %1145 = vadd.xlane.f32.xlu0 %v1144
  %v1146 = vpop.xlane.xlu0 %1145
  %v1147 = vsel %vm767, %v1133, 0.0
  %1148 = vadd.xlane.f32.xlu0 %v1147
  %v1149 = vpop.xlane.xlu0 %1148
  %v1150 = vsel %vm767, %v1134, 0.0
  %1151 = vadd.xlane.f32.xlu0 %v1150
  %v1152 = vpop.xlane.xlu0 %1151
  %v1153 = vsel %vm767, %v1135, 0.0
  %1154 = vadd.xlane.f32.xlu0 %v1153
  %v1155 = vpop.xlane.xlu0 %1154
  %v1156 = vsel %vm767, %v1136, 0.0
  %1157 = vadd.xlane.f32.xlu0 %v1156
  %v1158 = vpop.xlane.xlu0 %1157
  %v1159 = vsel %vm767, %v1137, 0.0
  %1160 = vadd.xlane.f32.xlu0 %v1159
  %v1161 = vpop.xlane.xlu0 %1160
  %v1162 = vrcp.pop 8.0
  %v1163 = vmul.f32 8.0, %v1162
  %v1164 = vsub.f32 1.0, %v1163
  %v1165 = vmul.f32 %v1162, %v1164
  %v1166 = vadd.f32 %v1162, %v1165
  %vm1167 = vweird.f32 %v1162
  %v1168 = vsel %vm1167, %v1162, %v1166
  %v1169 = vmul.f32 %v1140, %v1168
  %v1170 = vmul.f32 %v1143, %v1168
  %v1171 = vmul.f32 %v1146, %v1168
  %v1172 = vmul.f32 %v1149, %v1168
  %v1173 = vmul.f32 %v1152, %v1168
  %v1174 = vmul.f32 %v1155, %v1168
  %v1175 = vmul.f32 %v1158, %v1168
  %v1176 = vmul.f32 %v1161, %v1168
  %v1177 = vadd.f32 %v1169, 1e-06
  %v1178 = vadd.f32 %v1170, 1e-06
  %v1179 = vadd.f32 %v1171, 1e-06
  %v1180 = vadd.f32 %v1172, 1e-06
  %v1181 = vadd.f32 %v1173, 1e-06
  %v1182 = vadd.f32 %v1174, 1e-06
  %v1183 = vadd.f32 %v1175, 1e-06
  %v1184 = vadd.f32 %v1176, 1e-06
  %v1185 = vrsqrt.pop %v1177
  %v1186 = vmul.f32 %v1185, %v1177
  %v1187 = vmul.f32 %v1186, %v1185
  %v1188 = vmul.f32 0.5, %v1187
  %v1189 = vsub.f32 1.5, %v1188
  %v1190 = vmul.f32 %v1185, %v1189
  %vm1191 = vweird.f32 %v1177
  %vm1192 = vweird.f32 %v1185
  %vm1193 = vmor %vm1191, %vm1192
  %v1194 = vsel %vm1193, %v1185, %v1190
  %v1195 = vrsqrt.pop %v1178
  %v1196 = vmul.f32 %v1195, %v1178
  %v1197 = vmul.f32 %v1196, %v1195
  %v1198 = vmul.f32 0.5, %v1197
  %v1199 = vsub.f32 1.5, %v1198
  %v1200 = vmul.f32 %v1195, %v1199
  %vm1201 = vweird.f32 %v1178
  %vm1202 = vweird.f32 %v1195
  %vm1203 = vmor %vm1201, %vm1202
  %v1204 = vsel %vm1203, %v1195, %v1200
  %v1205 = vrsqrt.pop %v1179
  %v1206 = vmul.f32 %v1205, %v1179
  %v1207 = vmul.f32 %v1206, %v1205
  %v1208 = vmul.f32 0.5, %v1207
  %v1209 = vsub.f32 1.5, %v1208
  %v1210 = vmul.f32 %v1205, %v1209
  %vm1211 = vweird.f32 %v1179
  %vm1212 = vweird.f32 %v1205
  %vm1213 = vmor %vm1211, %vm1212
  %v1214 = vsel %vm1213, %v1205, %v1210
  %v1215 = vrsqrt.pop %v1180
  %v1216 = vmul.f32 %v1215, %v1180
  %v1217 = vmul.f32 %v1216, %v1215
  %v1218 = vmul.f32 0.5, %v1217
  %v1219 = vsub.f32 1.5, %v1218
  %v1220 = vmul.f32 %v1215, %v1219
  %vm1221 = vweird.f32 %v1180
  %vm1222 = vweird.f32 %v1215
  %vm1223 = vmor %vm1221, %vm1222
  %v1224 = vsel %vm1223, %v1215, %v1220
  %v1225 = vrsqrt.pop %v1181
  %v1226 = vmul.f32 %v1225, %v1181
  %v1227 = vmul.f32 %v1226, %v1225
  %v1228 = vmul.f32 0.5, %v1227
  %v1229 = vsub.f32 1.5, %v1228
  %v1230 = vmul.f32 %v1225, %v1229
  %vm1231 = vweird.f32 %v1181
  %vm1232 = vweird.f32 %v1225
  %vm1233 = vmor %vm1231, %vm1232
  %v1234 = vsel %vm1233, %v1225, %v1230
  %v1235 = vrsqrt.pop %v1182
  %v1236 = vmul.f32 %v1235, %v1182
  %v1237 = vmul.f32 %v1236, %v1235
  %v1238 = vmul.f32 0.5, %v1237
  %v1239 = vsub.f32 1.5, %v1238
  %v1240 = vmul.f32 %v1235, %v1239
  %vm1241 = vweird.f32 %v1182
  %vm1242 = vweird.f32 %v1235
  %vm1243 = vmor %vm1241, %vm1242
  %v1244 = vsel %vm1243, %v1235, %v1240
  %v1245 = vrsqrt.pop %v1183
  %v1246 = vmul.f32 %v1245, %v1183
  %v1247 = vmul.f32 %v1246, %v1245
  %v1248 = vmul.f32 0.5, %v1247
  %v1249 = vsub.f32 1.5, %v1248
  %v1250 = vmul.f32 %v1245, %v1249
  %vm1251 = vweird.f32 %v1183
  %vm1252 = vweird.f32 %v1245
  %vm1253 = vmor %vm1251, %vm1252
  %v1254 = vsel %vm1253, %v1245, %v1250
  %v1255 = vrsqrt.pop %v1184
  %v1256 = vmul.f32 %v1255, %v1184
  %v1257 = vmul.f32 %v1256, %v1255
  %v1258 = vmul.f32 0.5, %v1257
  %v1259 = vsub.f32 1.5, %v1258
  %v1260 = vmul.f32 %v1255, %v1259
  %vm1261 = vweird.f32 %v1184
  %vm1262 = vweird.f32 %v1255
  %vm1263 = vmor %vm1261, %vm1262
  %v1264 = vsel %vm1263, %v1255, %v1260
  %v1265 = vmul.f32 %v1038, %v1194
  %v1266 = vmul.f32 %v1041, %v1204
  %v1267 = vmul.f32 %v1067, %v1214
  %v1268 = vmul.f32 %v1070, %v1224
  %v1269 = vmul.f32 %v1096, %v1234
  %v1270 = vmul.f32 %v1099, %v1244
  %v1271 = vmul.f32 %v1125, %v1254
  %v1272 = vmul.f32 %v1128, %v1264
  %v1273 = vxor.u32 %v589, 2147483648
  %v1274 = vxor.u32 %v592, 2147483648
  %v1275 = vxor.u32 %v595, 2147483648
  %v1276 = vxor.u32 %v598, 2147483648
  %v1277 = vxor.u32 %v601, 2147483648
  %v1278 = vxor.u32 %v604, 2147483648
  %v1279 = vxor.u32 %v607, 2147483648
  %v1280 = vxor.u32 %v610, 2147483648
  %v1281 = vmul.f32 %v1273, 1.442695
  %v1282 = vpow.pop %v1281
  %v1283 = vmul.f32 %v1274, 1.442695
  %v1284 = vpow.pop %v1283
  %v1285 = vmul.f32 %v1275, 1.442695
  %v1286 = vpow.pop %v1285
  %v1287 = vmul.f32 %v1276, 1.442695
  %v1288 = vpow.pop %v1287
  %v1289 = vmul.f32 %v1277, 1.442695
  %v1290 = vpow.pop %v1289
  %v1291 = vmul.f32 %v1278, 1.442695
  %v1292 = vpow.pop %v1291
  %v1293 = vmul.f32 %v1279, 1.442695
  %v1294 = vpow.pop %v1293
  %v1295 = vmul.f32 %v1280, 1.442695
  %v1296 = vpow.pop %v1295
  %v1297 = vadd.f32 %v1282, 1.0
  %v1298 = vadd.f32 %v1284, 1.0
  %v1299 = vadd.f32 %v1286, 1.0
  %v1300 = vadd.f32 %v1288, 1.0
  %v1301 = vadd.f32 %v1290, 1.0
  %v1302 = vadd.f32 %v1292, 1.0
  %v1303 = vadd.f32 %v1294, 1.0
  %v1304 = vadd.f32 %v1296, 1.0
  %v1305 = vrcp.pop %v1297
  %v1306 = vmul.f32 %v1297, %v1305
  %v1307 = vsub.f32 1.0, %v1306
  %v1308 = vmul.f32 %v1305, %v1307
  %v1309 = vadd.f32 %v1305, %v1308
  %vm1310 = vweird.f32 %v1297
  %vm1311 = vweird.f32 %v1305
  %vm1312 = vmor %vm1310, %vm1311
  %v1313 = vsel %vm1312, %v1305, %v1309
  %v1314 = vand.u32 2147483647, %v1297
  %vm1315 = vcmp.eq.f32.partialorder %v1314, 8.507059e+37
  %v1316 = vand.u32 %v1297, 2147483648
  %v1317 = vor.u32 1.1754944e-38, %v1316
  %v1318 = vsel %vm1315, %v1317, %v1313
  %v1319 = vmul.f32 1.0, %v1318
  %v1320 = vrcp.pop %v1298
  %v1321 = vmul.f32 %v1298, %v1320
  %v1322 = vsub.f32 1.0, %v1321
  %v1323 = vmul.f32 %v1320, %v1322
  %v1324 = vadd.f32 %v1320, %v1323
  %vm1325 = vweird.f32 %v1298
  %vm1326 = vweird.f32 %v1320
  %vm1327 = vmor %vm1325, %vm1326
  %v1328 = vsel %vm1327, %v1320, %v1324
  %v1329 = vand.u32 2147483647, %v1298
  %vm1330 = vcmp.eq.f32.partialorder %v1329, 8.507059e+37
  %v1331 = vand.u32 %v1298, 2147483648
  %v1332 = vor.u32 1.1754944e-38, %v1331
  %v1333 = vsel %vm1330, %v1332, %v1328
  %v1334 = vmul.f32 1.0, %v1333
  %v1335 = vrcp.pop %v1299
  %v1336 = vmul.f32 %v1299, %v1335
  %v1337 = vsub.f32 1.0, %v1336
  %v1338 = vmul.f32 %v1335, %v1337
  %v1339 = vadd.f32 %v1335, %v1338
  %vm1340 = vweird.f32 %v1299
  %vm1341 = vweird.f32 %v1335
  %vm1342 = vmor %vm1340, %vm1341
  %v1343 = vsel %vm1342, %v1335, %v1339
  %v1344 = vand.u32 2147483647, %v1299
  %vm1345 = vcmp.eq.f32.partialorder %v1344, 8.507059e+37
  %v1346 = vand.u32 %v1299, 2147483648
  %v1347 = vor.u32 1.1754944e-38, %v1346
  %v1348 = vsel %vm1345, %v1347, %v1343
  %v1349 = vmul.f32 1.0, %v1348
  %v1350 = vrcp.pop %v1300
  %v1351 = vmul.f32 %v1300, %v1350
  %v1352 = vsub.f32 1.0, %v1351
  %v1353 = vmul.f32 %v1350, %v1352
  %v1354 = vadd.f32 %v1350, %v1353
  %vm1355 = vweird.f32 %v1300
  %vm1356 = vweird.f32 %v1350
  %vm1357 = vmor %vm1355, %vm1356
  %v1358 = vsel %vm1357, %v1350, %v1354
  %v1359 = vand.u32 2147483647, %v1300
  %vm1360 = vcmp.eq.f32.partialorder %v1359, 8.507059e+37
  %v1361 = vand.u32 %v1300, 2147483648
  %v1362 = vor.u32 1.1754944e-38, %v1361
  %v1363 = vsel %vm1360, %v1362, %v1358
  %v1364 = vmul.f32 1.0, %v1363
  %v1365 = vrcp.pop %v1301
  %v1366 = vmul.f32 %v1301, %v1365
  %v1367 = vsub.f32 1.0, %v1366
  %v1368 = vmul.f32 %v1365, %v1367
  %v1369 = vadd.f32 %v1365, %v1368
  %vm1370 = vweird.f32 %v1301
  %vm1371 = vweird.f32 %v1365
  %vm1372 = vmor %vm1370, %vm1371
  %v1373 = vsel %vm1372, %v1365, %v1369
  %v1374 = vand.u32 2147483647, %v1301
  %vm1375 = vcmp.eq.f32.partialorder %v1374, 8.507059e+37
  %v1376 = vand.u32 %v1301, 2147483648
  %v1377 = vor.u32 1.1754944e-38, %v1376
  %v1378 = vsel %vm1375, %v1377, %v1373
  %v1379 = vmul.f32 1.0, %v1378
  %v1380 = vrcp.pop %v1302
  %v1381 = vmul.f32 %v1302, %v1380
  %v1382 = vsub.f32 1.0, %v1381
  %v1383 = vmul.f32 %v1380, %v1382
  %v1384 = vadd.f32 %v1380, %v1383
  %vm1385 = vweird.f32 %v1302
  %vm1386 = vweird.f32 %v1380
  %vm1387 = vmor %vm1385, %vm1386
  %v1388 = vsel %vm1387, %v1380, %v1384
  %v1389 = vand.u32 2147483647, %v1302
  %vm1390 = vcmp.eq.f32.partialorder %v1389, 8.507059e+37
  %v1391 = vand.u32 %v1302, 2147483648
  %v1392 = vor.u32 1.1754944e-38, %v1391
  %v1393 = vsel %vm1390, %v1392, %v1388
  %v1394 = vmul.f32 1.0, %v1393
  %v1395 = vrcp.pop %v1303
  %v1396 = vmul.f32 %v1303, %v1395
  %v1397 = vsub.f32 1.0, %v1396
  %v1398 = vmul.f32 %v1395, %v1397
  %v1399 = vadd.f32 %v1395, %v1398
  %vm1400 = vweird.f32 %v1303
  %vm1401 = vweird.f32 %v1395
  %vm1402 = vmor %vm1400, %vm1401
  %v1403 = vsel %vm1402, %v1395, %v1399
  %v1404 = vand.u32 2147483647, %v1303
  %vm1405 = vcmp.eq.f32.partialorder %v1404, 8.507059e+37
  %v1406 = vand.u32 %v1303, 2147483648
  %v1407 = vor.u32 1.1754944e-38, %v1406
  %v1408 = vsel %vm1405, %v1407, %v1403
  %v1409 = vmul.f32 1.0, %v1408
  %v1410 = vrcp.pop %v1304
  %v1411 = vmul.f32 %v1304, %v1410
  %v1412 = vsub.f32 1.0, %v1411
  %v1413 = vmul.f32 %v1410, %v1412
  %v1414 = vadd.f32 %v1410, %v1413
  %vm1415 = vweird.f32 %v1304
  %vm1416 = vweird.f32 %v1410
  %vm1417 = vmor %vm1415, %vm1416
  %v1418 = vsel %vm1417, %v1410, %v1414
  %v1419 = vand.u32 2147483647, %v1304
  %vm1420 = vcmp.eq.f32.partialorder %v1419, 8.507059e+37
  %v1421 = vand.u32 %v1304, 2147483648
  %v1422 = vor.u32 1.1754944e-38, %v1421
  %v1423 = vsel %vm1420, %v1422, %v1418
  %v1424 = vmul.f32 1.0, %v1423
  %v1425 = vmul.f32 %v589, %v1319
  %v1426 = vmul.f32 %v592, %v1334
  %v1427 = vmul.f32 %v595, %v1349
  %v1428 = vmul.f32 %v598, %v1364
  %v1429 = vmul.f32 %v601, %v1379
  %v1430 = vmul.f32 %v604, %v1394
  %v1431 = vmul.f32 %v607, %v1409
  %v1432 = vmul.f32 %v610, %v1424
  %1441 = vrot.lane.b32.xlu0 %v1265, 32
  %v1442 = vpop.permute.xlu0 %1441
  %1443 = vrot.lane.b32.xlu0 %v1266, 32
  %v1444 = vpop.permute.xlu0 %1443
  %1445 = vrot.lane.b32.xlu0 %v1267, 32
  %v1446 = vpop.permute.xlu0 %1445
  %1447 = vrot.lane.b32.xlu0 %v1268, 32
  %v1448 = vpop.permute.xlu0 %1447
  %1449 = vrot.lane.b32.xlu0 %v1269, 32
  %v1450 = vpop.permute.xlu0 %1449
  %1451 = vrot.lane.b32.xlu0 %v1270, 32
  %v1452 = vpop.permute.xlu0 %1451
  %1453 = vrot.lane.b32.xlu0 %v1271, 32
  %v1454 = vpop.permute.xlu0 %1453
  %1455 = vrot.lane.b32.xlu0 %v1272, 32
  %v1456 = vpop.permute.xlu0 %1455
  %v1465 = vmul.f32 %v1425, %v1442
  %v1466 = vmul.f32 %v1426, %v1444
  %v1467 = vmul.f32 %v1427, %v1446
  %v1468 = vmul.f32 %v1428, %v1448
  %v1469 = vmul.f32 %v1429, %v1450
  %v1470 = vmul.f32 %v1430, %v1452
  %v1471 = vmul.f32 %v1431, %v1454
  %v1472 = vmul.f32 %v1432, %v1456
  %v1473 = vmul.f32 %v302, -0.015748357
  %v1474 = vmul.f32 %v303, -0.015748357
  %v1475 = vmul.f32 %v304, -0.015748357
  %v1476 = vmul.f32 %v305, -0.015748357
  %v1477 = vmul.f32 %v306, -0.015748357
  %v1478 = vmul.f32 %v307, -0.015748357
  %v1479 = vmul.f32 %v308, -0.015748357
  %v1480 = vmul.f32 %v309, -0.015748357
  %v1481 = vmul.f32 %v1473, 1.442695
  %v1482 = vpow.pop %v1481
  %v1483 = vmul.f32 %v1474, 1.442695
  %v1484 = vpow.pop %v1483
  %v1485 = vmul.f32 %v1475, 1.442695
  %v1486 = vpow.pop %v1485
  %v1487 = vmul.f32 %v1476, 1.442695
  %v1488 = vpow.pop %v1487
  %v1489 = vmul.f32 %v1477, 1.442695
  %v1490 = vpow.pop %v1489
  %v1491 = vmul.f32 %v1478, 1.442695
  %v1492 = vpow.pop %v1491
  %v1493 = vmul.f32 %v1479, 1.442695
  %v1494 = vpow.pop %v1493
  %v1495 = vmul.f32 %v1480, 1.442695
  %v1496 = vpow.pop %v1495
  %v1497 = vsel %vm648, %v1482, 0.0
  %1498 = vadd.xlane.f32.xlu0 %v1497
  %v1499 = vpop.xlane.xlu0 %1498
  %v1500 = vsel %vm648, %v1484, 0.0
  %1501 = vadd.xlane.f32.xlu0 %v1500
  %v1502 = vpop.xlane.xlu0 %1501
  %v1503 = vsel %vm648, %v1486, 0.0
  %1504 = vadd.xlane.f32.xlu0 %v1503
  %v1505 = vpop.xlane.xlu0 %1504
  %v1506 = vsel %vm648, %v1488, 0.0
  %1507 = vadd.xlane.f32.xlu0 %v1506
  %v1508 = vpop.xlane.xlu0 %1507
  %v1509 = vsel %vm648, %v1490, 0.0
  %1510 = vadd.xlane.f32.xlu0 %v1509
  %v1511 = vpop.xlane.xlu0 %1510
  %v1512 = vsel %vm648, %v1492, 0.0
  %1513 = vadd.xlane.f32.xlu0 %v1512
  %v1514 = vpop.xlane.xlu0 %1513
  %v1515 = vsel %vm648, %v1494, 0.0
  %1516 = vadd.xlane.f32.xlu0 %v1515
  %v1517 = vpop.xlane.xlu0 %1516
  %v1518 = vsel %vm648, %v1496, 0.0
  %1519 = vadd.xlane.f32.xlu0 %v1518
  %v1520 = vpop.xlane.xlu0 %1519
  %v1521 = vrsqrt.pop %v1499
  %v1522 = vmul.f32 %v1521, %v1499
  %v1523 = vmul.f32 %v1522, %v1521
  %v1524 = vmul.f32 0.5, %v1523
  %v1525 = vsub.f32 1.5, %v1524
  %v1526 = vmul.f32 %v1521, %v1525
  %vm1527 = vweird.f32 %v1499
  %vm1528 = vweird.f32 %v1521
  %vm1529 = vmor %vm1527, %vm1528
  %v1530 = vsel %vm1529, %v1521, %v1526
  %v1531 = vrsqrt.pop %v1502
  %v1532 = vmul.f32 %v1531, %v1502
  %v1533 = vmul.f32 %v1532, %v1531
  %v1534 = vmul.f32 0.5, %v1533
  %v1535 = vsub.f32 1.5, %v1534
  %v1536 = vmul.f32 %v1531, %v1535
  %vm1537 = vweird.f32 %v1502
  %vm1538 = vweird.f32 %v1531
  %vm1539 = vmor %vm1537, %vm1538
  %v1540 = vsel %vm1539, %v1531, %v1536
  %v1541 = vrsqrt.pop %v1505
  %v1542 = vmul.f32 %v1541, %v1505
  %v1543 = vmul.f32 %v1542, %v1541
  %v1544 = vmul.f32 0.5, %v1543
  %v1545 = vsub.f32 1.5, %v1544
  %v1546 = vmul.f32 %v1541, %v1545
  %vm1547 = vweird.f32 %v1505
  %vm1548 = vweird.f32 %v1541
  %vm1549 = vmor %vm1547, %vm1548
  %v1550 = vsel %vm1549, %v1541, %v1546
  %v1551 = vrsqrt.pop %v1508
  %v1552 = vmul.f32 %v1551, %v1508
  %v1553 = vmul.f32 %v1552, %v1551
  %v1554 = vmul.f32 0.5, %v1553
  %v1555 = vsub.f32 1.5, %v1554
  %v1556 = vmul.f32 %v1551, %v1555
  %vm1557 = vweird.f32 %v1508
  %vm1558 = vweird.f32 %v1551
  %vm1559 = vmor %vm1557, %vm1558
  %v1560 = vsel %vm1559, %v1551, %v1556
  %v1561 = vrsqrt.pop %v1511
  %v1562 = vmul.f32 %v1561, %v1511
  %v1563 = vmul.f32 %v1562, %v1561
  %v1564 = vmul.f32 0.5, %v1563
  %v1565 = vsub.f32 1.5, %v1564
  %v1566 = vmul.f32 %v1561, %v1565
  %vm1567 = vweird.f32 %v1511
  %vm1568 = vweird.f32 %v1561
  %vm1569 = vmor %vm1567, %vm1568
  %v1570 = vsel %vm1569, %v1561, %v1566
  %v1571 = vrsqrt.pop %v1514
  %v1572 = vmul.f32 %v1571, %v1514
  %v1573 = vmul.f32 %v1572, %v1571
  %v1574 = vmul.f32 0.5, %v1573
  %v1575 = vsub.f32 1.5, %v1574
  %v1576 = vmul.f32 %v1571, %v1575
  %vm1577 = vweird.f32 %v1514
  %vm1578 = vweird.f32 %v1571
  %vm1579 = vmor %vm1577, %vm1578
  %v1580 = vsel %vm1579, %v1571, %v1576
  %v1581 = vrsqrt.pop %v1517
  %v1582 = vmul.f32 %v1581, %v1517
  %v1583 = vmul.f32 %v1582, %v1581
  %v1584 = vmul.f32 0.5, %v1583
  %v1585 = vsub.f32 1.5, %v1584
  %v1586 = vmul.f32 %v1581, %v1585
  %vm1587 = vweird.f32 %v1517
  %vm1588 = vweird.f32 %v1581
  %vm1589 = vmor %vm1587, %vm1588
  %v1590 = vsel %vm1589, %v1581, %v1586
  %v1591 = vrsqrt.pop %v1520
  %v1592 = vmul.f32 %v1591, %v1520
  %v1593 = vmul.f32 %v1592, %v1591
  %v1594 = vmul.f32 0.5, %v1593
  %v1595 = vsub.f32 1.5, %v1594
  %v1596 = vmul.f32 %v1591, %v1595
  %vm1597 = vweird.f32 %v1520
  %vm1598 = vweird.f32 %v1591
  %vm1599 = vmor %vm1597, %vm1598
  %v1600 = vsel %vm1599, %v1591, %v1596
  %v1601 = vmul.f32 %v1482, %v1530
  %v1602 = vmul.f32 %v1484, %v1540
  %v1603 = vmul.f32 %v1486, %v1550
  %v1604 = vmul.f32 %v1488, %v1560
  %v1605 = vmul.f32 %v1490, %v1570
  %v1606 = vmul.f32 %v1492, %v1580
  %v1607 = vmul.f32 %v1494, %v1590
  %v1608 = vmul.f32 %v1496, %v1600
  %1609 = vrot.lane.b32.xlu0 %v520, 120
  %v1610 = vpop.permute.xlu0 %1609
  %1611 = vrot.lane.b32.xlu0 %v523, 120
  %v1612 = vpop.permute.xlu0 %1611
  %1613 = vrot.lane.b32.xlu0 %v612, 88
  %v1614 = vpop.permute.xlu0 %1613
  %1615 = vrot.lane.b32.xlu0 %v613, 88
  %v1616 = vpop.permute.xlu0 %1615
  %v1617 = vsel %vm767, %v1610, 0
  %v1619 = vsel %vm767, %v1612, 0
  %v1621 = vsel %vm767, %v1614, 0
  %v1623 = vsel %vm767, %v1616, 0
  %1625 = vmatpush.xpose.msra.mxu0 0.0
  %1626 = vmatpush.xpose.msra.mxu0 0.0
  %1627 = vmatpush.xpose.msra.mxu0 0.0
  %1628 = vmatpush.xpose.msra.mxu0 0.0
  %1629 = vmatpush.xpose.msra.mxu0 0.0
  %1630 = vmatpush.xpose.msra.mxu0 0.0
  %1631 = vmatpush.xpose.msra.mxu0 0.0
  %1632 = vmatpush.xpose.msra.mxu0 0.0
  %1633 = vmatpush.xpose.msra.mxu0 0.0
  %1634 = vmatpush.xpose.msra.mxu0 0.0
  %1635 = vmatpush.xpose.msra.mxu0 0.0
  %1636 = vmatpush.xpose.msra.mxu0 0.0
  %1637 = vmatpush.xpose.msra.mxu0 0.0
  %1638 = vmatpush.xpose.msra.mxu0 0.0
  %1639 = vmatpush.xpose.msra.mxu0 %v1623
  %1640 = vmatpush.xpose.msra.mxu0 %v1621
  %1641 = vmatmul.f32.gmra.mxu0 %v1617
  %v1642 = vpop.f32.mrf.mxu0
  %v1643 = vadd.f32 0.0, %v1642
  %1644 = vmatmul.f32.gmra.mxu0 %v1619
  %v1645 = vpop.f32.mrf.mxu0
  %v1646 = vadd.f32 0.0, %v1645
  %1647 = vdwg.mxu0
  %1648 = vrot.lane.b32.xlu0 %v526, 120
  %v1649 = vpop.permute.xlu0 %1648
  %1650 = vrot.lane.b32.xlu0 %v529, 120
  %v1651 = vpop.permute.xlu0 %1650
  %1652 = vrot.lane.b32.xlu0 %v614, 88
  %v1653 = vpop.permute.xlu0 %1652
  %1654 = vrot.lane.b32.xlu0 %v615, 88
  %v1655 = vpop.permute.xlu0 %1654
  %v1656 = vsel %vm767, %v1649, 0
  %v1658 = vsel %vm767, %v1651, 0
  %v1660 = vsel %vm767, %v1653, 0
  %v1662 = vsel %vm767, %v1655, 0
  %1664 = vmatpush.xpose.msra.mxu0 0.0
  %1665 = vmatpush.xpose.msra.mxu0 0.0
  %1666 = vmatpush.xpose.msra.mxu0 0.0
  %1667 = vmatpush.xpose.msra.mxu0 0.0
  %1668 = vmatpush.xpose.msra.mxu0 0.0
  %1669 = vmatpush.xpose.msra.mxu0 0.0
  %1670 = vmatpush.xpose.msra.mxu0 0.0
  %1671 = vmatpush.xpose.msra.mxu0 0.0
  %1672 = vmatpush.xpose.msra.mxu0 0.0
  %1673 = vmatpush.xpose.msra.mxu0 0.0
  %1674 = vmatpush.xpose.msra.mxu0 0.0
  %1675 = vmatpush.xpose.msra.mxu0 0.0
  %1676 = vmatpush.xpose.msra.mxu0 0.0
  %1677 = vmatpush.xpose.msra.mxu0 0.0
  %1678 = vmatpush.xpose.msra.mxu0 %v1662
  %1679 = vmatpush.xpose.msra.mxu0 %v1660
  %1680 = vmatmul.f32.gmra.mxu0 %v1656
  %v1681 = vpop.f32.mrf.mxu0
  %v1682 = vadd.f32 0.0, %v1681
  %1683 = vmatmul.f32.gmra.mxu0 %v1658
  %v1684 = vpop.f32.mrf.mxu0
  %v1685 = vadd.f32 0.0, %v1684
  %1686 = vdwg.mxu0
  %1687 = vrot.lane.b32.xlu0 %v532, 120
  %v1688 = vpop.permute.xlu0 %1687
  %1689 = vrot.lane.b32.xlu0 %v535, 120
  %v1690 = vpop.permute.xlu0 %1689
  %1691 = vrot.lane.b32.xlu0 %v616, 88
  %v1692 = vpop.permute.xlu0 %1691
  %1693 = vrot.lane.b32.xlu0 %v617, 88
  %v1694 = vpop.permute.xlu0 %1693
  %v1695 = vsel %vm767, %v1688, 0
  %v1697 = vsel %vm767, %v1690, 0
  %v1699 = vsel %vm767, %v1692, 0
  %v1701 = vsel %vm767, %v1694, 0
  %1703 = vmatpush.xpose.msra.mxu0 0.0
  %1704 = vmatpush.xpose.msra.mxu0 0.0
  %1705 = vmatpush.xpose.msra.mxu0 0.0
  %1706 = vmatpush.xpose.msra.mxu0 0.0
  %1707 = vmatpush.xpose.msra.mxu0 0.0
  %1708 = vmatpush.xpose.msra.mxu0 0.0
  %1709 = vmatpush.xpose.msra.mxu0 0.0
  %1710 = vmatpush.xpose.msra.mxu0 0.0
  %1711 = vmatpush.xpose.msra.mxu0 0.0
  %1712 = vmatpush.xpose.msra.mxu0 0.0
  %1713 = vmatpush.xpose.msra.mxu0 0.0
  %1714 = vmatpush.xpose.msra.mxu0 0.0
  %1715 = vmatpush.xpose.msra.mxu0 0.0
  %1716 = vmatpush.xpose.msra.mxu0 0.0
  %1717 = vmatpush.xpose.msra.mxu0 %v1701
  %1718 = vmatpush.xpose.msra.mxu0 %v1699
  %1719 = vmatmul.f32.gmra.mxu0 %v1695
  %v1720 = vpop.f32.mrf.mxu0
  %v1721 = vadd.f32 0.0, %v1720
  %1722 = vmatmul.f32.gmra.mxu0 %v1697
  %v1723 = vpop.f32.mrf.mxu0
  %v1724 = vadd.f32 0.0, %v1723
  %1725 = vdwg.mxu0
  %1726 = vrot.lane.b32.xlu0 %v538, 120
  %v1727 = vpop.permute.xlu0 %1726
  %1728 = vrot.lane.b32.xlu0 %v541, 120
  %v1729 = vpop.permute.xlu0 %1728
  %1730 = vrot.lane.b32.xlu0 %v618, 88
  %v1731 = vpop.permute.xlu0 %1730
  %1732 = vrot.lane.b32.xlu0 %v619, 88
  %v1733 = vpop.permute.xlu0 %1732
  %v1734 = vsel %vm767, %v1727, 0
  %v1736 = vsel %vm767, %v1729, 0
  %v1738 = vsel %vm767, %v1731, 0
  %v1740 = vsel %vm767, %v1733, 0
  %1742 = vmatpush.xpose.msra.mxu0 0.0
  %1743 = vmatpush.xpose.msra.mxu0 0.0
  %1744 = vmatpush.xpose.msra.mxu0 0.0
  %1745 = vmatpush.xpose.msra.mxu0 0.0
  %1746 = vmatpush.xpose.msra.mxu0 0.0
  %1747 = vmatpush.xpose.msra.mxu0 0.0
  %1748 = vmatpush.xpose.msra.mxu0 0.0
  %1749 = vmatpush.xpose.msra.mxu0 0.0
  %1750 = vmatpush.xpose.msra.mxu0 0.0
  %1751 = vmatpush.xpose.msra.mxu0 0.0
  %1752 = vmatpush.xpose.msra.mxu0 0.0
  %1753 = vmatpush.xpose.msra.mxu0 0.0
  %1754 = vmatpush.xpose.msra.mxu0 0.0
  %1755 = vmatpush.xpose.msra.mxu0 0.0
  %1756 = vmatpush.xpose.msra.mxu0 %v1740
  %1757 = vmatpush.xpose.msra.mxu0 %v1738
  %1758 = vmatmul.f32.gmra.mxu0 %v1734
  %v1759 = vpop.f32.mrf.mxu0
  %v1760 = vadd.f32 0.0, %v1759
  %1761 = vmatmul.f32.gmra.mxu0 %v1736
  %v1762 = vpop.f32.mrf.mxu0
  %v1763 = vadd.f32 0.0, %v1762
  %1764 = vdwg.mxu0
  %v1765 = vmul.f32 %v1643, %v1601
  %v1766 = vmul.f32 %v1646, %v1602
  %v1767 = vmul.f32 %v1682, %v1603
  %v1768 = vmul.f32 %v1685, %v1604
  %v1769 = vmul.f32 %v1721, %v1605
  %v1770 = vmul.f32 %v1724, %v1606
  %v1771 = vmul.f32 %v1760, %v1607
  %v1772 = vmul.f32 %v1763, %v1608
  %v1773 = vsel %vm648, %v1765, -inf
  %1774 = vmax.xlane.f32.xlu0 %v1773
  %v1775 = vpop.xlane.xlu0 %1774
  %v1776 = vsel %vm648, %v1766, -inf
  %1777 = vmax.xlane.f32.xlu0 %v1776
  %v1778 = vpop.xlane.xlu0 %1777
  %v1779 = vsel %vm648, %v1767, -inf
  %1780 = vmax.xlane.f32.xlu0 %v1779
  %v1781 = vpop.xlane.xlu0 %1780
  %v1782 = vsel %vm648, %v1768, -inf
  %1783 = vmax.xlane.f32.xlu0 %v1782
  %v1784 = vpop.xlane.xlu0 %1783
  %v1785 = vsel %vm648, %v1769, -inf
  %1786 = vmax.xlane.f32.xlu0 %v1785
  %v1787 = vpop.xlane.xlu0 %1786
  %v1788 = vsel %vm648, %v1770, -inf
  %1789 = vmax.xlane.f32.xlu0 %v1788
  %v1790 = vpop.xlane.xlu0 %1789
  %v1791 = vsel %vm648, %v1771, -inf
  %1792 = vmax.xlane.f32.xlu0 %v1791
  %v1793 = vpop.xlane.xlu0 %1792
  %v1794 = vsel %vm648, %v1772, -inf
  %1795 = vmax.xlane.f32.xlu0 %v1794
  %v1796 = vpop.xlane.xlu0 %1795
  %v1797 = vsub.f32 %v1765, %v1775
  %v1798 = vsub.f32 %v1766, %v1778
  %v1799 = vsub.f32 %v1767, %v1781
  %v1800 = vsub.f32 %v1768, %v1784
  %v1801 = vsub.f32 %v1769, %v1787
  %v1802 = vsub.f32 %v1770, %v1790
  %v1803 = vsub.f32 %v1771, %v1793
  %v1804 = vsub.f32 %v1772, %v1796
  %v1805 = vmul.f32 %v1797, 1.442695
  %v1806 = vpow.pop %v1805
  %v1807 = vmul.f32 %v1798, 1.442695
  %v1808 = vpow.pop %v1807
  %v1809 = vmul.f32 %v1799, 1.442695
  %v1810 = vpow.pop %v1809
  %v1811 = vmul.f32 %v1800, 1.442695
  %v1812 = vpow.pop %v1811
  %v1813 = vmul.f32 %v1801, 1.442695
  %v1814 = vpow.pop %v1813
  %v1815 = vmul.f32 %v1802, 1.442695
  %v1816 = vpow.pop %v1815
  %v1817 = vmul.f32 %v1803, 1.442695
  %v1818 = vpow.pop %v1817
  %v1819 = vmul.f32 %v1804, 1.442695
  %v1820 = vpow.pop %v1819
  %v1821 = vsel %vm648, %v1806, 0.0
  %1822 = vadd.xlane.f32.xlu0 %v1821
  %v1823 = vpop.xlane.xlu0 %1822
  %v1824 = vsel %vm648, %v1808, 0.0
  %1825 = vadd.xlane.f32.xlu0 %v1824
  %v1826 = vpop.xlane.xlu0 %1825
  %v1827 = vsel %vm648, %v1810, 0.0
  %1828 = vadd.xlane.f32.xlu0 %v1827
  %v1829 = vpop.xlane.xlu0 %1828
  %v1830 = vsel %vm648, %v1812, 0.0
  %1831 = vadd.xlane.f32.xlu0 %v1830
  %v1832 = vpop.xlane.xlu0 %1831
  %v1833 = vsel %vm648, %v1814, 0.0
  %1834 = vadd.xlane.f32.xlu0 %v1833
  %v1835 = vpop.xlane.xlu0 %1834
  %v1836 = vsel %vm648, %v1816, 0.0
  %1837 = vadd.xlane.f32.xlu0 %v1836
  %v1838 = vpop.xlane.xlu0 %1837
  %v1839 = vsel %vm648, %v1818, 0.0
  %1840 = vadd.xlane.f32.xlu0 %v1839
  %v1841 = vpop.xlane.xlu0 %1840
  %v1842 = vsel %vm648, %v1820, 0.0
  %1843 = vadd.xlane.f32.xlu0 %v1842
  %v1844 = vpop.xlane.xlu0 %1843
  %v1845 = vrcp.pop %v1823
  %v1846 = vrcp.pop %v1826
  %v1847 = vrcp.pop %v1829
  %v1848 = vrcp.pop %v1832
  %v1849 = vrcp.pop %v1835
  %v1850 = vrcp.pop %v1838
  %v1851 = vrcp.pop %v1841
  %v1852 = vrcp.pop %v1844
  %v1853 = vmul.f32 %v1806, %v1845
  %v1854 = vmul.f32 %v1808, %v1846
  %v1855 = vmul.f32 %v1810, %v1847
  %v1856 = vmul.f32 %v1812, %v1848
  %v1857 = vmul.f32 %v1814, %v1849
  %v1858 = vmul.f32 %v1816, %v1850
  %v1859 = vmul.f32 %v1818, %v1851
  %v1860 = vmul.f32 %v1820, %v1852
  %1863 = vrot.lane.b32.xlu0 %v589, 120
  %v1864 = vpop.permute.xlu0 %1863
  %1865 = vrot.lane.b32.xlu0 %v592, 120
  %v1866 = vpop.permute.xlu0 %1865
  %v1870 = vsel %vm648, %v1853, 0
  %v1873 = vsel %vm648, %v1854, 0
  %1875 = vmatpush.msra.mxu0 0.0
  %1876 = vmatpush.msra.mxu0 0.0
  %1877 = vmatpush.msra.mxu0 0.0
  %1878 = vmatpush.msra.mxu0 0.0
  %1879 = vmatpush.msra.mxu0 0.0
  %1880 = vmatpush.msra.mxu0 0.0
  %1881 = vmatpush.msra.mxu0 0.0
  %1882 = vmatpush.msra.mxu0 0.0
  %1883 = vmatpush.msra.mxu0 0.0
  %1884 = vmatpush.msra.mxu0 0.0
  %1885 = vmatpush.msra.mxu0 0.0
  %1886 = vmatpush.msra.mxu0 0.0
  %1887 = vmatpush.msra.mxu0 0.0
  %1888 = vmatpush.msra.mxu0 0.0
  %1889 = vmatpush.msra.mxu0 %v1866
  %1890 = vmatpush.msra.mxu0 %v1864
  %1891 = vmatmul.f32.gmra.mxu0 %v1870
  %v1892 = vpop.f32.mrf.mxu0
  %v1893 = vadd.f32 0.0, %v1892
  %1894 = vmatmul.f32.gmra.mxu0 %v1873
  %v1895 = vpop.f32.mrf.mxu0
  %v1896 = vadd.f32 0.0, %v1895
  %1897 = vdwg.mxu0
  %1900 = vrot.lane.b32.xlu0 %v595, 120
  %v1901 = vpop.permute.xlu0 %1900
  %1902 = vrot.lane.b32.xlu0 %v598, 120
  %v1903 = vpop.permute.xlu0 %1902
  %v1907 = vsel %vm648, %v1855, 0
  %v1910 = vsel %vm648, %v1856, 0
  %1912 = vmatpush.msra.mxu0 0.0
  %1913 = vmatpush.msra.mxu0 0.0
  %1914 = vmatpush.msra.mxu0 0.0
  %1915 = vmatpush.msra.mxu0 0.0
  %1916 = vmatpush.msra.mxu0 0.0
  %1917 = vmatpush.msra.mxu0 0.0
  %1918 = vmatpush.msra.mxu0 0.0
  %1919 = vmatpush.msra.mxu0 0.0
  %1920 = vmatpush.msra.mxu0 0.0
  %1921 = vmatpush.msra.mxu0 0.0
  %1922 = vmatpush.msra.mxu0 0.0
  %1923 = vmatpush.msra.mxu0 0.0
  %1924 = vmatpush.msra.mxu0 0.0
  %1925 = vmatpush.msra.mxu0 0.0
  %1926 = vmatpush.msra.mxu0 %v1903
  %1927 = vmatpush.msra.mxu0 %v1901
  %1928 = vmatmul.f32.gmra.mxu0 %v1907
  %v1929 = vpop.f32.mrf.mxu0
  %v1930 = vadd.f32 0.0, %v1929
  %1931 = vmatmul.f32.gmra.mxu0 %v1910
  %v1932 = vpop.f32.mrf.mxu0
  %v1933 = vadd.f32 0.0, %v1932
  %1934 = vdwg.mxu0
  %1937 = vrot.lane.b32.xlu0 %v601, 120
  %v1938 = vpop.permute.xlu0 %1937
  %1939 = vrot.lane.b32.xlu0 %v604, 120
  %v1940 = vpop.permute.xlu0 %1939
  %v1944 = vsel %vm648, %v1857, 0
  %v1947 = vsel %vm648, %v1858, 0
  %1949 = vmatpush.msra.mxu0 0.0
  %1950 = vmatpush.msra.mxu0 0.0
  %1951 = vmatpush.msra.mxu0 0.0
  %1952 = vmatpush.msra.mxu0 0.0
  %1953 = vmatpush.msra.mxu0 0.0
  %1954 = vmatpush.msra.mxu0 0.0
  %1955 = vmatpush.msra.mxu0 0.0
  %1956 = vmatpush.msra.mxu0 0.0
  %1957 = vmatpush.msra.mxu0 0.0
  %1958 = vmatpush.msra.mxu0 0.0
  %1959 = vmatpush.msra.mxu0 0.0
  %1960 = vmatpush.msra.mxu0 0.0
  %1961 = vmatpush.msra.mxu0 0.0
  %1962 = vmatpush.msra.mxu0 0.0
  %1963 = vmatpush.msra.mxu0 %v1940
  %1964 = vmatpush.msra.mxu0 %v1938
  %1965 = vmatmul.f32.gmra.mxu0 %v1944
  %v1966 = vpop.f32.mrf.mxu0
  %v1967 = vadd.f32 0.0, %v1966
  %1968 = vmatmul.f32.gmra.mxu0 %v1947
  %v1969 = vpop.f32.mrf.mxu0
  %v1970 = vadd.f32 0.0, %v1969
  %1971 = vdwg.mxu0
  %1974 = vrot.lane.b32.xlu0 %v607, 120
  %v1975 = vpop.permute.xlu0 %1974
  %1976 = vrot.lane.b32.xlu0 %v610, 120
  %v1977 = vpop.permute.xlu0 %1976
  %v1981 = vsel %vm648, %v1859, 0
  %v1984 = vsel %vm648, %v1860, 0
  %1986 = vmatpush.msra.mxu0 0.0
  %1987 = vmatpush.msra.mxu0 0.0
  %1988 = vmatpush.msra.mxu0 0.0
  %1989 = vmatpush.msra.mxu0 0.0
  %1990 = vmatpush.msra.mxu0 0.0
  %1991 = vmatpush.msra.mxu0 0.0
  %1992 = vmatpush.msra.mxu0 0.0
  %1993 = vmatpush.msra.mxu0 0.0
  %1994 = vmatpush.msra.mxu0 0.0
  %1995 = vmatpush.msra.mxu0 0.0
  %1996 = vmatpush.msra.mxu0 0.0
  %1997 = vmatpush.msra.mxu0 0.0
  %1998 = vmatpush.msra.mxu0 0.0
  %1999 = vmatpush.msra.mxu0 0.0
  %2000 = vmatpush.msra.mxu0 %v1977
  %2001 = vmatpush.msra.mxu0 %v1975
  %2002 = vmatmul.f32.gmra.mxu0 %v1981
  %v2003 = vpop.f32.mrf.mxu0
  %v2004 = vadd.f32 0.0, %v2003
  %2005 = vmatmul.f32.gmra.mxu0 %v1984
  %v2006 = vpop.f32.mrf.mxu0
  %v2007 = vadd.f32 0.0, %v2006
  %2008 = vdwg.mxu0
  %v2009 = vmul.f32 %v1893, %v1893
  %v2010 = vmul.f32 %v1896, %v1896
  %v2011 = vmul.f32 %v1930, %v1930
  %v2012 = vmul.f32 %v1933, %v1933
  %v2013 = vmul.f32 %v1967, %v1967
  %v2014 = vmul.f32 %v1970, %v1970
  %v2015 = vmul.f32 %v2004, %v2004
  %v2016 = vmul.f32 %v2007, %v2007
  %v2017 = vsel %vm767, %v2009, 0.0
  %2018 = vadd.xlane.f32.xlu0 %v2017
  %v2019 = vpop.xlane.xlu0 %2018
  %v2020 = vsel %vm767, %v2010, 0.0
  %2021 = vadd.xlane.f32.xlu0 %v2020
  %v2022 = vpop.xlane.xlu0 %2021
  %v2023 = vsel %vm767, %v2011, 0.0
  %2024 = vadd.xlane.f32.xlu0 %v2023
  %v2025 = vpop.xlane.xlu0 %2024
  %v2026 = vsel %vm767, %v2012, 0.0
  %2027 = vadd.xlane.f32.xlu0 %v2026
  %v2028 = vpop.xlane.xlu0 %2027
  %v2029 = vsel %vm767, %v2013, 0.0
  %2030 = vadd.xlane.f32.xlu0 %v2029
  %v2031 = vpop.xlane.xlu0 %2030
  %v2032 = vsel %vm767, %v2014, 0.0
  %2033 = vadd.xlane.f32.xlu0 %v2032
  %v2034 = vpop.xlane.xlu0 %2033
  %v2035 = vsel %vm767, %v2015, 0.0
  %2036 = vadd.xlane.f32.xlu0 %v2035
  %v2037 = vpop.xlane.xlu0 %2036
  %v2038 = vsel %vm767, %v2016, 0.0
  %2039 = vadd.xlane.f32.xlu0 %v2038
  %v2040 = vpop.xlane.xlu0 %2039
  %v2041 = vmul.f32 %v2019, %v1168
  %v2042 = vmul.f32 %v2022, %v1168
  %v2043 = vmul.f32 %v2025, %v1168
  %v2044 = vmul.f32 %v2028, %v1168
  %v2045 = vmul.f32 %v2031, %v1168
  %v2046 = vmul.f32 %v2034, %v1168
  %v2047 = vmul.f32 %v2037, %v1168
  %v2048 = vmul.f32 %v2040, %v1168
  %v2049 = vadd.f32 %v2041, 1e-06
  %v2050 = vadd.f32 %v2042, 1e-06
  %v2051 = vadd.f32 %v2043, 1e-06
  %v2052 = vadd.f32 %v2044, 1e-06
  %v2053 = vadd.f32 %v2045, 1e-06
  %v2054 = vadd.f32 %v2046, 1e-06
  %v2055 = vadd.f32 %v2047, 1e-06
  %v2056 = vadd.f32 %v2048, 1e-06
  %v2057 = vrsqrt.pop %v2049
  %v2058 = vmul.f32 %v2057, %v2049
  %v2059 = vmul.f32 %v2058, %v2057
  %v2060 = vmul.f32 0.5, %v2059
  %v2061 = vsub.f32 1.5, %v2060
  %v2062 = vmul.f32 %v2057, %v2061
  %vm2063 = vweird.f32 %v2049
  %vm2064 = vweird.f32 %v2057
  %vm2065 = vmor %vm2063, %vm2064
  %v2066 = vsel %vm2065, %v2057, %v2062
  %v2067 = vrsqrt.pop %v2050
  %v2068 = vmul.f32 %v2067, %v2050
  %v2069 = vmul.f32 %v2068, %v2067
  %v2070 = vmul.f32 0.5, %v2069
  %v2071 = vsub.f32 1.5, %v2070
  %v2072 = vmul.f32 %v2067, %v2071
  %vm2073 = vweird.f32 %v2050
  %vm2074 = vweird.f32 %v2067
  %vm2075 = vmor %vm2073, %vm2074
  %v2076 = vsel %vm2075, %v2067, %v2072
  %v2077 = vrsqrt.pop %v2051
  %v2078 = vmul.f32 %v2077, %v2051
  %v2079 = vmul.f32 %v2078, %v2077
  %v2080 = vmul.f32 0.5, %v2079
  %v2081 = vsub.f32 1.5, %v2080
  %v2082 = vmul.f32 %v2077, %v2081
  %vm2083 = vweird.f32 %v2051
  %vm2084 = vweird.f32 %v2077
  %vm2085 = vmor %vm2083, %vm2084
  %v2086 = vsel %vm2085, %v2077, %v2082
  %v2087 = vrsqrt.pop %v2052
  %v2088 = vmul.f32 %v2087, %v2052
  %v2089 = vmul.f32 %v2088, %v2087
  %v2090 = vmul.f32 0.5, %v2089
  %v2091 = vsub.f32 1.5, %v2090
  %v2092 = vmul.f32 %v2087, %v2091
  %vm2093 = vweird.f32 %v2052
  %vm2094 = vweird.f32 %v2087
  %vm2095 = vmor %vm2093, %vm2094
  %v2096 = vsel %vm2095, %v2087, %v2092
  %v2097 = vrsqrt.pop %v2053
  %v2098 = vmul.f32 %v2097, %v2053
  %v2099 = vmul.f32 %v2098, %v2097
  %v2100 = vmul.f32 0.5, %v2099
  %v2101 = vsub.f32 1.5, %v2100
  %v2102 = vmul.f32 %v2097, %v2101
  %vm2103 = vweird.f32 %v2053
  %vm2104 = vweird.f32 %v2097
  %vm2105 = vmor %vm2103, %vm2104
  %v2106 = vsel %vm2105, %v2097, %v2102
  %v2107 = vrsqrt.pop %v2054
  %v2108 = vmul.f32 %v2107, %v2054
  %v2109 = vmul.f32 %v2108, %v2107
  %v2110 = vmul.f32 0.5, %v2109
  %v2111 = vsub.f32 1.5, %v2110
  %v2112 = vmul.f32 %v2107, %v2111
  %vm2113 = vweird.f32 %v2054
  %vm2114 = vweird.f32 %v2107
  %vm2115 = vmor %vm2113, %vm2114
  %v2116 = vsel %vm2115, %v2107, %v2112
  %v2117 = vrsqrt.pop %v2055
  %v2118 = vmul.f32 %v2117, %v2055
  %v2119 = vmul.f32 %v2118, %v2117
  %v2120 = vmul.f32 0.5, %v2119
  %v2121 = vsub.f32 1.5, %v2120
  %v2122 = vmul.f32 %v2117, %v2121
  %vm2123 = vweird.f32 %v2055
  %vm2124 = vweird.f32 %v2117
  %vm2125 = vmor %vm2123, %vm2124
  %v2126 = vsel %vm2125, %v2117, %v2122
  %v2127 = vrsqrt.pop %v2056
  %v2128 = vmul.f32 %v2127, %v2056
  %v2129 = vmul.f32 %v2128, %v2127
  %v2130 = vmul.f32 0.5, %v2129
  %v2131 = vsub.f32 1.5, %v2130
  %v2132 = vmul.f32 %v2127, %v2131
  %vm2133 = vweird.f32 %v2056
  %vm2134 = vweird.f32 %v2127
  %vm2135 = vmor %vm2133, %vm2134
  %v2136 = vsel %vm2135, %v2127, %v2132
  %v2137 = vmul.f32 %v1893, %v2066
  %v2138 = vmul.f32 %v1896, %v2076
  %v2139 = vmul.f32 %v1930, %v2086
  %v2140 = vmul.f32 %v1933, %v2096
  %v2141 = vmul.f32 %v1967, %v2106
  %v2142 = vmul.f32 %v1970, %v2116
  %v2143 = vmul.f32 %v2004, %v2126
  %v2144 = vmul.f32 %v2007, %v2136
  %2153 = vrot.lane.b32.xlu0 %v2137, 40
  %v2154 = vpop.permute.xlu0 %2153
  %2155 = vrot.lane.b32.xlu0 %v2138, 40
  %v2156 = vpop.permute.xlu0 %2155
  %2157 = vrot.lane.b32.xlu0 %v2139, 40
  %v2158 = vpop.permute.xlu0 %2157
  %2159 = vrot.lane.b32.xlu0 %v2140, 40
  %v2160 = vpop.permute.xlu0 %2159
  %2161 = vrot.lane.b32.xlu0 %v2141, 40
  %v2162 = vpop.permute.xlu0 %2161
  %2163 = vrot.lane.b32.xlu0 %v2142, 40
  %v2164 = vpop.permute.xlu0 %2163
  %2165 = vrot.lane.b32.xlu0 %v2143, 40
  %v2166 = vpop.permute.xlu0 %2165
  %2167 = vrot.lane.b32.xlu0 %v2144, 40
  %v2168 = vpop.permute.xlu0 %2167
  %v2177 = vmul.f32 %v1425, %v2154
  %v2178 = vmul.f32 %v1426, %v2156
  %v2179 = vmul.f32 %v1427, %v2158
  %v2180 = vmul.f32 %v1428, %v2160
  %v2181 = vmul.f32 %v1429, %v2162
  %v2182 = vmul.f32 %v1430, %v2164
  %v2183 = vmul.f32 %v1431, %v2166
  %v2184 = vmul.f32 %v1432, %v2168
  %2193 = vrot.lane.b32.xlu0 %v2177, 88
  %v2194 = vpop.permute.xlu0 %2193
  %2195 = vrot.lane.b32.xlu0 %v2178, 88
  %v2196 = vpop.permute.xlu0 %2195
  %2197 = vrot.lane.b32.xlu0 %v2179, 88
  %v2198 = vpop.permute.xlu0 %2197
  %2199 = vrot.lane.b32.xlu0 %v2180, 88
  %v2200 = vpop.permute.xlu0 %2199
  %2201 = vrot.lane.b32.xlu0 %v2181, 88
  %v2202 = vpop.permute.xlu0 %2201
  %2203 = vrot.lane.b32.xlu0 %v2182, 88
  %v2204 = vpop.permute.xlu0 %2203
  %2205 = vrot.lane.b32.xlu0 %v2183, 88
  %v2206 = vpop.permute.xlu0 %2205
  %2207 = vrot.lane.b32.xlu0 %v2184, 88
  %v2208 = vpop.permute.xlu0 %2207
  %v2209 = vsel %vm767, %v2194, 0
  %v2211 = vsel %vm767, %v2196, 0
  %v2213 = vsel %vm767, %v2198, 0
  %v2215 = vsel %vm767, %v2200, 0
  %v2217 = vsel %vm767, %v2202, 0
  %v2219 = vsel %vm767, %v2204, 0
  %v2221 = vsel %vm767, %v2206, 0
  %v2223 = vsel %vm767, %v2208, 0
  %2225 = vmatpush.msra.mxu0 0.0
  %2226 = vmatpush.msra.mxu0 0.0
  %2227 = vmatpush.msra.mxu0 0.0
  %2228 = vmatpush.msra.mxu0 0.0
  %2229 = vmatpush.msra.mxu0 0.0
  %2230 = vmatpush.msra.mxu0 0.0
  %2231 = vmatpush.msra.mxu0 0.0
  %2232 = vmatpush.msra.mxu0 0.0
  %2233 = vmatpush.msra.mxu0 0.0
  %2234 = vmatpush.msra.mxu0 0.0
  %2235 = vmatpush.msra.mxu0 0.0
  %2236 = vmatpush.msra.mxu0 0.0
  %2237 = vmatpush.msra.mxu0 0.0
  %2238 = vmatpush.msra.mxu0 0.0
  %2239 = vmatpush.msra.mxu0 0.0
  %2240 = vmatpush.msra.mxu0 %v621
  %2241 = vmatmul.f32.gmra.mxu0 %v2209
  %v2242 = vpop.f32.mrf.mxu0
  %v2243 = vadd.f32 0.0, %v2242
  %2244 = vmatmul.f32.gmra.mxu0 %v2211
  %v2245 = vpop.f32.mrf.mxu0
  %v2246 = vadd.f32 0.0, %v2245
  %2247 = vmatmul.f32.gmra.mxu0 %v2213
  %v2248 = vpop.f32.mrf.mxu0
  %v2249 = vadd.f32 0.0, %v2248
  %2250 = vmatmul.f32.gmra.mxu0 %v2215
  %v2251 = vpop.f32.mrf.mxu0
  %v2252 = vadd.f32 0.0, %v2251
  %2253 = vmatmul.f32.gmra.mxu0 %v2217
  %v2254 = vpop.f32.mrf.mxu0
  %v2255 = vadd.f32 0.0, %v2254
  %2256 = vmatmul.f32.gmra.mxu0 %v2219
  %v2257 = vpop.f32.mrf.mxu0
  %v2258 = vadd.f32 0.0, %v2257
  %2259 = vmatmul.f32.gmra.mxu0 %v2221
  %v2260 = vpop.f32.mrf.mxu0
  %v2261 = vadd.f32 0.0, %v2260
  %2262 = vmatmul.f32.gmra.mxu0 %v2223
  %v2263 = vpop.f32.mrf.mxu0
  %v2264 = vadd.f32 0.0, %v2263
  %2265 = vdwg.mxu0
  %2274 = vrot.lane.b32.xlu0 %v1465, 96
  %v2275 = vpop.permute.xlu0 %2274
  %2276 = vrot.lane.b32.xlu0 %v1466, 96
  %v2277 = vpop.permute.xlu0 %2276
  %2278 = vrot.lane.b32.xlu0 %v1467, 96
  %v2279 = vpop.permute.xlu0 %2278
  %2280 = vrot.lane.b32.xlu0 %v1468, 96
  %v2281 = vpop.permute.xlu0 %2280
  %2282 = vrot.lane.b32.xlu0 %v1469, 96
  %v2283 = vpop.permute.xlu0 %2282
  %2284 = vrot.lane.b32.xlu0 %v1470, 96
  %v2285 = vpop.permute.xlu0 %2284
  %2286 = vrot.lane.b32.xlu0 %v1471, 96
  %v2287 = vpop.permute.xlu0 %2286
  %2288 = vrot.lane.b32.xlu0 %v1472, 96
  %v2289 = vpop.permute.xlu0 %2288
  %v2290 = vsel %vm767, %v2275, 0
  %v2292 = vsel %vm767, %v2277, 0
  %v2294 = vsel %vm767, %v2279, 0
  %v2296 = vsel %vm767, %v2281, 0
  %v2298 = vsel %vm767, %v2283, 0
  %v2300 = vsel %vm767, %v2285, 0
  %v2302 = vsel %vm767, %v2287, 0
  %v2304 = vsel %vm767, %v2289, 0
  %2306 = vmatpush.msra.mxu0 0.0
  %2307 = vmatpush.msra.mxu0 0.0
  %2308 = vmatpush.msra.mxu0 0.0
  %2309 = vmatpush.msra.mxu0 0.0
  %2310 = vmatpush.msra.mxu0 0.0
  %2311 = vmatpush.msra.mxu0 0.0
  %2312 = vmatpush.msra.mxu0 0.0
  %2313 = vmatpush.msra.mxu0 0.0
  %2314 = vmatpush.msra.mxu0 0.0
  %2315 = vmatpush.msra.mxu0 0.0
  %2316 = vmatpush.msra.mxu0 0.0
  %2317 = vmatpush.msra.mxu0 0.0
  %2318 = vmatpush.msra.mxu0 0.0
  %2319 = vmatpush.msra.mxu0 0.0
  %2320 = vmatpush.msra.mxu0 0.0
  %2321 = vmatpush.msra.mxu0 %v620
  %2322 = vmatmul.f32.gmra.mxu0 %v2290
  %v2323 = vpop.f32.mrf.mxu0
  %v2324 = vadd.f32 %v2243, %v2323
  %2325 = vmatmul.f32.gmra.mxu0 %v2292
  %v2326 = vpop.f32.mrf.mxu0
  %v2327 = vadd.f32 %v2246, %v2326
  %2328 = vmatmul.f32.gmra.mxu0 %v2294
  %v2329 = vpop.f32.mrf.mxu0
  %v2330 = vadd.f32 %v2249, %v2329
  %2331 = vmatmul.f32.gmra.mxu0 %v2296
  %v2332 = vpop.f32.mrf.mxu0
  %v2333 = vadd.f32 %v2252, %v2332
  %2334 = vmatmul.f32.gmra.mxu0 %v2298
  %v2335 = vpop.f32.mrf.mxu0
  %v2336 = vadd.f32 %v2255, %v2335
  %2337 = vmatmul.f32.gmra.mxu0 %v2300
  %v2338 = vpop.f32.mrf.mxu0
  %v2339 = vadd.f32 %v2258, %v2338
  %2340 = vmatmul.f32.gmra.mxu0 %v2302
  %v2341 = vpop.f32.mrf.mxu0
  %v2342 = vadd.f32 %v2261, %v2341
  %2343 = vmatmul.f32.gmra.mxu0 %v2304
  %v2344 = vpop.f32.mrf.mxu0
  %v2345 = vadd.f32 %v2264, %v2344
  %2346 = vdwg.mxu0
  %v2347 = vmul.f32 %v302, -0.007843178
  %v2348 = vmul.f32 %v303, -0.007843178
  %v2349 = vmul.f32 %v304, -0.007843178
  %v2350 = vmul.f32 %v305, -0.007843178
  %v2351 = vmul.f32 %v306, -0.007843178
  %v2352 = vmul.f32 %v307, -0.007843178
  %v2353 = vmul.f32 %v308, -0.007843178
  %v2354 = vmul.f32 %v309, -0.007843178
  %v2355 = vmul.f32 %v2347, 1.442695
  %v2356 = vpow.pop %v2355
  %v2357 = vmul.f32 %v2348, 1.442695
  %v2358 = vpow.pop %v2357
  %v2359 = vmul.f32 %v2349, 1.442695
  %v2360 = vpow.pop %v2359
  %v2361 = vmul.f32 %v2350, 1.442695
  %v2362 = vpow.pop %v2361
  %v2363 = vmul.f32 %v2351, 1.442695
  %v2364 = vpow.pop %v2363
  %v2365 = vmul.f32 %v2352, 1.442695
  %v2366 = vpow.pop %v2365
  %v2367 = vmul.f32 %v2353, 1.442695
  %v2368 = vpow.pop %v2367
  %v2369 = vmul.f32 %v2354, 1.442695
  %v2370 = vpow.pop %v2369
  %v2371 = vsel %vm648, %v2356, 0.0
  %2372 = vadd.xlane.f32.xlu0 %v2371
  %v2373 = vpop.xlane.xlu0 %2372
  %v2374 = vsel %vm648, %v2358, 0.0
  %2375 = vadd.xlane.f32.xlu0 %v2374
  %v2376 = vpop.xlane.xlu0 %2375
  %v2377 = vsel %vm648, %v2360, 0.0
  %2378 = vadd.xlane.f32.xlu0 %v2377
  %v2379 = vpop.xlane.xlu0 %2378
  %v2380 = vsel %vm648, %v2362, 0.0
  %2381 = vadd.xlane.f32.xlu0 %v2380
  %v2382 = vpop.xlane.xlu0 %2381
  %v2383 = vsel %vm648, %v2364, 0.0
  %2384 = vadd.xlane.f32.xlu0 %v2383
  %v2385 = vpop.xlane.xlu0 %2384
  %v2386 = vsel %vm648, %v2366, 0.0
  %2387 = vadd.xlane.f32.xlu0 %v2386
  %v2388 = vpop.xlane.xlu0 %2387
  %v2389 = vsel %vm648, %v2368, 0.0
  %2390 = vadd.xlane.f32.xlu0 %v2389
  %v2391 = vpop.xlane.xlu0 %2390
  %v2392 = vsel %vm648, %v2370, 0.0
  %2393 = vadd.xlane.f32.xlu0 %v2392
  %v2394 = vpop.xlane.xlu0 %2393
  %v2395 = vrsqrt.pop %v2373
  %v2396 = vmul.f32 %v2395, %v2373
  %v2397 = vmul.f32 %v2396, %v2395
  %v2398 = vmul.f32 0.5, %v2397
  %v2399 = vsub.f32 1.5, %v2398
  %v2400 = vmul.f32 %v2395, %v2399
  %vm2401 = vweird.f32 %v2373
  %vm2402 = vweird.f32 %v2395
  %vm2403 = vmor %vm2401, %vm2402
  %v2404 = vsel %vm2403, %v2395, %v2400
  %v2405 = vrsqrt.pop %v2376
  %v2406 = vmul.f32 %v2405, %v2376
  %v2407 = vmul.f32 %v2406, %v2405
  %v2408 = vmul.f32 0.5, %v2407
  %v2409 = vsub.f32 1.5, %v2408
  %v2410 = vmul.f32 %v2405, %v2409
  %vm2411 = vweird.f32 %v2376
  %vm2412 = vweird.f32 %v2405
  %vm2413 = vmor %vm2411, %vm2412
  %v2414 = vsel %vm2413, %v2405, %v2410
  %v2415 = vrsqrt.pop %v2379
  %v2416 = vmul.f32 %v2415, %v2379
  %v2417 = vmul.f32 %v2416, %v2415
  %v2418 = vmul.f32 0.5, %v2417
  %v2419 = vsub.f32 1.5, %v2418
  %v2420 = vmul.f32 %v2415, %v2419
  %vm2421 = vweird.f32 %v2379
  %vm2422 = vweird.f32 %v2415
  %vm2423 = vmor %vm2421, %vm2422
  %v2424 = vsel %vm2423, %v2415, %v2420
  %v2425 = vrsqrt.pop %v2382
  %v2426 = vmul.f32 %v2425, %v2382
  %v2427 = vmul.f32 %v2426, %v2425
  %v2428 = vmul.f32 0.5, %v2427
  %v2429 = vsub.f32 1.5, %v2428
  %v2430 = vmul.f32 %v2425, %v2429
  %vm2431 = vweird.f32 %v2382
  %vm2432 = vweird.f32 %v2425
  %vm2433 = vmor %vm2431, %vm2432
  %v2434 = vsel %vm2433, %v2425, %v2430
  %v2435 = vrsqrt.pop %v2385
  %v2436 = vmul.f32 %v2435, %v2385
  %v2437 = vmul.f32 %v2436, %v2435
  %v2438 = vmul.f32 0.5, %v2437
  %v2439 = vsub.f32 1.5, %v2438
  %v2440 = vmul.f32 %v2435, %v2439
  %vm2441 = vweird.f32 %v2385
  %vm2442 = vweird.f32 %v2435
  %vm2443 = vmor %vm2441, %vm2442
  %v2444 = vsel %vm2443, %v2435, %v2440
  %v2445 = vrsqrt.pop %v2388
  %v2446 = vmul.f32 %v2445, %v2388
  %v2447 = vmul.f32 %v2446, %v2445
  %v2448 = vmul.f32 0.5, %v2447
  %v2449 = vsub.f32 1.5, %v2448
  %v2450 = vmul.f32 %v2445, %v2449
  %vm2451 = vweird.f32 %v2388
  %vm2452 = vweird.f32 %v2445
  %vm2453 = vmor %vm2451, %vm2452
  %v2454 = vsel %vm2453, %v2445, %v2450
  %v2455 = vrsqrt.pop %v2391
  %v2456 = vmul.f32 %v2455, %v2391
  %v2457 = vmul.f32 %v2456, %v2455
  %v2458 = vmul.f32 0.5, %v2457
  %v2459 = vsub.f32 1.5, %v2458
  %v2460 = vmul.f32 %v2455, %v2459
  %vm2461 = vweird.f32 %v2391
  %vm2462 = vweird.f32 %v2455
  %vm2463 = vmor %vm2461, %vm2462
  %v2464 = vsel %vm2463, %v2455, %v2460
  %v2465 = vrsqrt.pop %v2394
  %v2466 = vmul.f32 %v2465, %v2394
  %v2467 = vmul.f32 %v2466, %v2465
  %v2468 = vmul.f32 0.5, %v2467
  %v2469 = vsub.f32 1.5, %v2468
  %v2470 = vmul.f32 %v2465, %v2469
  %vm2471 = vweird.f32 %v2394
  %vm2472 = vweird.f32 %v2465
  %vm2473 = vmor %vm2471, %vm2472
  %v2474 = vsel %vm2473, %v2465, %v2470
  %v2475 = vmul.f32 %v2356, %v2404
  %v2476 = vmul.f32 %v2358, %v2414
  %v2477 = vmul.f32 %v2360, %v2424
  %v2478 = vmul.f32 %v2362, %v2434
  %v2479 = vmul.f32 %v2364, %v2444
  %v2480 = vmul.f32 %v2366, %v2454
  %v2481 = vmul.f32 %v2368, %v2464
  %v2482 = vmul.f32 %v2370, %v2474
  %2483 = vrot.lane.b32.xlu0 %v520, 112
  %v2484 = vpop.permute.xlu0 %2483
  %2485 = vrot.lane.b32.xlu0 %v523, 112
  %v2486 = vpop.permute.xlu0 %2485
  %2487 = vrot.lane.b32.xlu0 %v612, 80
  %v2488 = vpop.permute.xlu0 %2487
  %2489 = vrot.lane.b32.xlu0 %v613, 80
  %v2490 = vpop.permute.xlu0 %2489
  %v2491 = vsel %vm767, %v2484, 0
  %v2493 = vsel %vm767, %v2486, 0
  %v2495 = vsel %vm767, %v2488, 0
  %v2497 = vsel %vm767, %v2490, 0
  %2499 = vmatpush.xpose.msra.mxu0 0.0
  %2500 = vmatpush.xpose.msra.mxu0 0.0
  %2501 = vmatpush.xpose.msra.mxu0 0.0
  %2502 = vmatpush.xpose.msra.mxu0 0.0
  %2503 = vmatpush.xpose.msra.mxu0 0.0
  %2504 = vmatpush.xpose.msra.mxu0 0.0
  %2505 = vmatpush.xpose.msra.mxu0 0.0
  %2506 = vmatpush.xpose.msra.mxu0 0.0
  %2507 = vmatpush.xpose.msra.mxu0 0.0
  %2508 = vmatpush.xpose.msra.mxu0 0.0
  %2509 = vmatpush.xpose.msra.mxu0 0.0
  %2510 = vmatpush.xpose.msra.mxu0 0.0
  %2511 = vmatpush.xpose.msra.mxu0 0.0
  %2512 = vmatpush.xpose.msra.mxu0 0.0
  %2513 = vmatpush.xpose.msra.mxu0 %v2497
  %2514 = vmatpush.xpose.msra.mxu0 %v2495
  %2515 = vmatmul.f32.gmra.mxu0 %v2491
  %v2516 = vpop.f32.mrf.mxu0
  %v2517 = vadd.f32 0.0, %v2516
  %2518 = vmatmul.f32.gmra.mxu0 %v2493
  %v2519 = vpop.f32.mrf.mxu0
  %v2520 = vadd.f32 0.0, %v2519
  %2521 = vdwg.mxu0
  %2522 = vrot.lane.b32.xlu0 %v526, 112
  %v2523 = vpop.permute.xlu0 %2522
  %2524 = vrot.lane.b32.xlu0 %v529, 112
  %v2525 = vpop.permute.xlu0 %2524
  %2526 = vrot.lane.b32.xlu0 %v614, 80
  %v2527 = vpop.permute.xlu0 %2526
  %2528 = vrot.lane.b32.xlu0 %v615, 80
  %v2529 = vpop.permute.xlu0 %2528
  %v2530 = vsel %vm767, %v2523, 0
  %v2532 = vsel %vm767, %v2525, 0
  %v2534 = vsel %vm767, %v2527, 0
  %v2536 = vsel %vm767, %v2529, 0
  %2538 = vmatpush.xpose.msra.mxu0 0.0
  %2539 = vmatpush.xpose.msra.mxu0 0.0
  %2540 = vmatpush.xpose.msra.mxu0 0.0
  %2541 = vmatpush.xpose.msra.mxu0 0.0
  %2542 = vmatpush.xpose.msra.mxu0 0.0
  %2543 = vmatpush.xpose.msra.mxu0 0.0
  %2544 = vmatpush.xpose.msra.mxu0 0.0
  %2545 = vmatpush.xpose.msra.mxu0 0.0
  %2546 = vmatpush.xpose.msra.mxu0 0.0
  %2547 = vmatpush.xpose.msra.mxu0 0.0
  %2548 = vmatpush.xpose.msra.mxu0 0.0
  %2549 = vmatpush.xpose.msra.mxu0 0.0
  %2550 = vmatpush.xpose.msra.mxu0 0.0
  %2551 = vmatpush.xpose.msra.mxu0 0.0
  %2552 = vmatpush.xpose.msra.mxu0 %v2536
  %2553 = vmatpush.xpose.msra.mxu0 %v2534
  %2554 = vmatmul.f32.gmra.mxu0 %v2530
  %v2555 = vpop.f32.mrf.mxu0
  %v2556 = vadd.f32 0.0, %v2555
  %2557 = vmatmul.f32.gmra.mxu0 %v2532
  %v2558 = vpop.f32.mrf.mxu0
  %v2559 = vadd.f32 0.0, %v2558
  %2560 = vdwg.mxu0
  %2561 = vrot.lane.b32.xlu0 %v532, 112
  %v2562 = vpop.permute.xlu0 %2561
  %2563 = vrot.lane.b32.xlu0 %v535, 112
  %v2564 = vpop.permute.xlu0 %2563
  %2565 = vrot.lane.b32.xlu0 %v616, 80
  %v2566 = vpop.permute.xlu0 %2565
  %2567 = vrot.lane.b32.xlu0 %v617, 80
  %v2568 = vpop.permute.xlu0 %2567
  %v2569 = vsel %vm767, %v2562, 0
  %v2571 = vsel %vm767, %v2564, 0
  %v2573 = vsel %vm767, %v2566, 0
  %v2575 = vsel %vm767, %v2568, 0
  %2577 = vmatpush.xpose.msra.mxu0 0.0
  %2578 = vmatpush.xpose.msra.mxu0 0.0
  %2579 = vmatpush.xpose.msra.mxu0 0.0
  %2580 = vmatpush.xpose.msra.mxu0 0.0
  %2581 = vmatpush.xpose.msra.mxu0 0.0
  %2582 = vmatpush.xpose.msra.mxu0 0.0
  %2583 = vmatpush.xpose.msra.mxu0 0.0
  %2584 = vmatpush.xpose.msra.mxu0 0.0
  %2585 = vmatpush.xpose.msra.mxu0 0.0
  %2586 = vmatpush.xpose.msra.mxu0 0.0
  %2587 = vmatpush.xpose.msra.mxu0 0.0
  %2588 = vmatpush.xpose.msra.mxu0 0.0
  %2589 = vmatpush.xpose.msra.mxu0 0.0
  %2590 = vmatpush.xpose.msra.mxu0 0.0
  %2591 = vmatpush.xpose.msra.mxu0 %v2575
  %2592 = vmatpush.xpose.msra.mxu0 %v2573
  %2593 = vmatmul.f32.gmra.mxu0 %v2569
  %v2594 = vpop.f32.mrf.mxu0
  %v2595 = vadd.f32 0.0, %v2594
  %2596 = vmatmul.f32.gmra.mxu0 %v2571
  %v2597 = vpop.f32.mrf.mxu0
  %v2598 = vadd.f32 0.0, %v2597
  %2599 = vdwg.mxu0
  %2600 = vrot.lane.b32.xlu0 %v538, 112
  %v2601 = vpop.permute.xlu0 %2600
  %2602 = vrot.lane.b32.xlu0 %v541, 112
  %v2603 = vpop.permute.xlu0 %2602
  %2604 = vrot.lane.b32.xlu0 %v618, 80
  %v2605 = vpop.permute.xlu0 %2604
  %2606 = vrot.lane.b32.xlu0 %v619, 80
  %v2607 = vpop.permute.xlu0 %2606
  %v2608 = vsel %vm767, %v2601, 0
  %v2610 = vsel %vm767, %v2603, 0
  %v2612 = vsel %vm767, %v2605, 0
  %v2614 = vsel %vm767, %v2607, 0
  %2616 = vmatpush.xpose.msra.mxu0 0.0
  %2617 = vmatpush.xpose.msra.mxu0 0.0
  %2618 = vmatpush.xpose.msra.mxu0 0.0
  %2619 = vmatpush.xpose.msra.mxu0 0.0
  %2620 = vmatpush.xpose.msra.mxu0 0.0
  %2621 = vmatpush.xpose.msra.mxu0 0.0
  %2622 = vmatpush.xpose.msra.mxu0 0.0
  %2623 = vmatpush.xpose.msra.mxu0 0.0
  %2624 = vmatpush.xpose.msra.mxu0 0.0
  %2625 = vmatpush.xpose.msra.mxu0 0.0
  %2626 = vmatpush.xpose.msra.mxu0 0.0
  %2627 = vmatpush.xpose.msra.mxu0 0.0
  %2628 = vmatpush.xpose.msra.mxu0 0.0
  %2629 = vmatpush.xpose.msra.mxu0 0.0
  %2630 = vmatpush.xpose.msra.mxu0 %v2614
  %2631 = vmatpush.xpose.msra.mxu0 %v2612
  %2632 = vmatmul.f32.gmra.mxu0 %v2608
  %v2633 = vpop.f32.mrf.mxu0
  %v2634 = vadd.f32 0.0, %v2633
  %2635 = vmatmul.f32.gmra.mxu0 %v2610
  %v2636 = vpop.f32.mrf.mxu0
  %v2637 = vadd.f32 0.0, %v2636
  %2638 = vdwg.mxu0
  %v2639 = vmul.f32 %v2517, %v2475
  %v2640 = vmul.f32 %v2520, %v2476
  %v2641 = vmul.f32 %v2556, %v2477
  %v2642 = vmul.f32 %v2559, %v2478
  %v2643 = vmul.f32 %v2595, %v2479
  %v2644 = vmul.f32 %v2598, %v2480
  %v2645 = vmul.f32 %v2634, %v2481
  %v2646 = vmul.f32 %v2637, %v2482
  %v2647 = vsel %vm648, %v2639, -inf
  %2648 = vmax.xlane.f32.xlu0 %v2647
  %v2649 = vpop.xlane.xlu0 %2648
  %v2650 = vsel %vm648, %v2640, -inf
  %2651 = vmax.xlane.f32.xlu0 %v2650
  %v2652 = vpop.xlane.xlu0 %2651
  %v2653 = vsel %vm648, %v2641, -inf
  %2654 = vmax.xlane.f32.xlu0 %v2653
  %v2655 = vpop.xlane.xlu0 %2654
  %v2656 = vsel %vm648, %v2642, -inf
  %2657 = vmax.xlane.f32.xlu0 %v2656
  %v2658 = vpop.xlane.xlu0 %2657
  %v2659 = vsel %vm648, %v2643, -inf
  %2660 = vmax.xlane.f32.xlu0 %v2659
  %v2661 = vpop.xlane.xlu0 %2660
  %v2662 = vsel %vm648, %v2644, -inf
  %2663 = vmax.xlane.f32.xlu0 %v2662
  %v2664 = vpop.xlane.xlu0 %2663
  %v2665 = vsel %vm648, %v2645, -inf
  %2666 = vmax.xlane.f32.xlu0 %v2665
  %v2667 = vpop.xlane.xlu0 %2666
  %v2668 = vsel %vm648, %v2646, -inf
  %2669 = vmax.xlane.f32.xlu0 %v2668
  %v2670 = vpop.xlane.xlu0 %2669
  %v2671 = vsub.f32 %v2639, %v2649
  %v2672 = vsub.f32 %v2640, %v2652
  %v2673 = vsub.f32 %v2641, %v2655
  %v2674 = vsub.f32 %v2642, %v2658
  %v2675 = vsub.f32 %v2643, %v2661
  %v2676 = vsub.f32 %v2644, %v2664
  %v2677 = vsub.f32 %v2645, %v2667
  %v2678 = vsub.f32 %v2646, %v2670
  %v2679 = vmul.f32 %v2671, 1.442695
  %v2680 = vpow.pop %v2679
  %v2681 = vmul.f32 %v2672, 1.442695
  %v2682 = vpow.pop %v2681
  %v2683 = vmul.f32 %v2673, 1.442695
  %v2684 = vpow.pop %v2683
  %v2685 = vmul.f32 %v2674, 1.442695
  %v2686 = vpow.pop %v2685
  %v2687 = vmul.f32 %v2675, 1.442695
  %v2688 = vpow.pop %v2687
  %v2689 = vmul.f32 %v2676, 1.442695
  %v2690 = vpow.pop %v2689
  %v2691 = vmul.f32 %v2677, 1.442695
  %v2692 = vpow.pop %v2691
  %v2693 = vmul.f32 %v2678, 1.442695
  %v2694 = vpow.pop %v2693
  %v2695 = vsel %vm648, %v2680, 0.0
  %2696 = vadd.xlane.f32.xlu0 %v2695
  %v2697 = vpop.xlane.xlu0 %2696
  %v2698 = vsel %vm648, %v2682, 0.0
  %2699 = vadd.xlane.f32.xlu0 %v2698
  %v2700 = vpop.xlane.xlu0 %2699
  %v2701 = vsel %vm648, %v2684, 0.0
  %2702 = vadd.xlane.f32.xlu0 %v2701
  %v2703 = vpop.xlane.xlu0 %2702
  %v2704 = vsel %vm648, %v2686, 0.0
  %2705 = vadd.xlane.f32.xlu0 %v2704
  %v2706 = vpop.xlane.xlu0 %2705
  %v2707 = vsel %vm648, %v2688, 0.0
  %2708 = vadd.xlane.f32.xlu0 %v2707
  %v2709 = vpop.xlane.xlu0 %2708
  %v2710 = vsel %vm648, %v2690, 0.0
  %2711 = vadd.xlane.f32.xlu0 %v2710
  %v2712 = vpop.xlane.xlu0 %2711
  %v2713 = vsel %vm648, %v2692, 0.0
  %2714 = vadd.xlane.f32.xlu0 %v2713
  %v2715 = vpop.xlane.xlu0 %2714
  %v2716 = vsel %vm648, %v2694, 0.0
  %2717 = vadd.xlane.f32.xlu0 %v2716
  %v2718 = vpop.xlane.xlu0 %2717
  %v2719 = vrcp.pop %v2697
  %v2720 = vrcp.pop %v2700
  %v2721 = vrcp.pop %v2703
  %v2722 = vrcp.pop %v2706
  %v2723 = vrcp.pop %v2709
  %v2724 = vrcp.pop %v2712
  %v2725 = vrcp.pop %v2715
  %v2726 = vrcp.pop %v2718
  %v2727 = vmul.f32 %v2680, %v2719
  %v2728 = vmul.f32 %v2682, %v2720
  %v2729 = vmul.f32 %v2684, %v2721
  %v2730 = vmul.f32 %v2686, %v2722
  %v2731 = vmul.f32 %v2688, %v2723
  %v2732 = vmul.f32 %v2690, %v2724
  %v2733 = vmul.f32 %v2692, %v2725
  %v2734 = vmul.f32 %v2694, %v2726
  %2735 = vrot.lane.b32.xlu0 %v589, 112
  %v2736 = vpop.permute.xlu0 %2735
  %2737 = vrot.lane.b32.xlu0 %v592, 112
  %v2738 = vpop.permute.xlu0 %2737
  %v2742 = vsel %vm648, %v2727, 0
  %v2745 = vsel %vm648, %v2728, 0
  %2747 = vmatpush.msra.mxu0 0.0
  %2748 = vmatpush.msra.mxu0 0.0
  %2749 = vmatpush.msra.mxu0 0.0
  %2750 = vmatpush.msra.mxu0 0.0
  %2751 = vmatpush.msra.mxu0 0.0
  %2752 = vmatpush.msra.mxu0 0.0
  %2753 = vmatpush.msra.mxu0 0.0
  %2754 = vmatpush.msra.mxu0 0.0
  %2755 = vmatpush.msra.mxu0 0.0
  %2756 = vmatpush.msra.mxu0 0.0
  %2757 = vmatpush.msra.mxu0 0.0
  %2758 = vmatpush.msra.mxu0 0.0
  %2759 = vmatpush.msra.mxu0 0.0
  %2760 = vmatpush.msra.mxu0 0.0
  %2761 = vmatpush.msra.mxu0 %v2738
  %2762 = vmatpush.msra.mxu0 %v2736
  %2763 = vmatmul.f32.gmra.mxu0 %v2742
  %v2764 = vpop.f32.mrf.mxu0
  %v2765 = vadd.f32 0.0, %v2764
  %2766 = vmatmul.f32.gmra.mxu0 %v2745
  %v2767 = vpop.f32.mrf.mxu0
  %v2768 = vadd.f32 0.0, %v2767
  %2769 = vdwg.mxu0
  %2770 = vrot.lane.b32.xlu0 %v595, 112
  %v2771 = vpop.permute.xlu0 %2770
  %2772 = vrot.lane.b32.xlu0 %v598, 112
  %v2773 = vpop.permute.xlu0 %2772
  %v2777 = vsel %vm648, %v2729, 0
  %v2780 = vsel %vm648, %v2730, 0
  %2782 = vmatpush.msra.mxu0 0.0
  %2783 = vmatpush.msra.mxu0 0.0
  %2784 = vmatpush.msra.mxu0 0.0
  %2785 = vmatpush.msra.mxu0 0.0
  %2786 = vmatpush.msra.mxu0 0.0
  %2787 = vmatpush.msra.mxu0 0.0
  %2788 = vmatpush.msra.mxu0 0.0
  %2789 = vmatpush.msra.mxu0 0.0
  %2790 = vmatpush.msra.mxu0 0.0
  %2791 = vmatpush.msra.mxu0 0.0
  %2792 = vmatpush.msra.mxu0 0.0
  %2793 = vmatpush.msra.mxu0 0.0
  %2794 = vmatpush.msra.mxu0 0.0
  %2795 = vmatpush.msra.mxu0 0.0
  %2796 = vmatpush.msra.mxu0 %v2773
  %2797 = vmatpush.msra.mxu0 %v2771
  %2798 = vmatmul.f32.gmra.mxu0 %v2777
  %v2799 = vpop.f32.mrf.mxu0
  %v2800 = vadd.f32 0.0, %v2799
  %2801 = vmatmul.f32.gmra.mxu0 %v2780
  %v2802 = vpop.f32.mrf.mxu0
  %v2803 = vadd.f32 0.0, %v2802
  %2804 = vdwg.mxu0
  %2805 = vrot.lane.b32.xlu0 %v601, 112
  %v2806 = vpop.permute.xlu0 %2805
  %2807 = vrot.lane.b32.xlu0 %v604, 112
  %v2808 = vpop.permute.xlu0 %2807
  %v2812 = vsel %vm648, %v2731, 0
  %v2815 = vsel %vm648, %v2732, 0
  %2817 = vmatpush.msra.mxu0 0.0
  %2818 = vmatpush.msra.mxu0 0.0
  %2819 = vmatpush.msra.mxu0 0.0
  %2820 = vmatpush.msra.mxu0 0.0
  %2821 = vmatpush.msra.mxu0 0.0
  %2822 = vmatpush.msra.mxu0 0.0
  %2823 = vmatpush.msra.mxu0 0.0
  %2824 = vmatpush.msra.mxu0 0.0
  %2825 = vmatpush.msra.mxu0 0.0
  %2826 = vmatpush.msra.mxu0 0.0
  %2827 = vmatpush.msra.mxu0 0.0
  %2828 = vmatpush.msra.mxu0 0.0
  %2829 = vmatpush.msra.mxu0 0.0
  %2830 = vmatpush.msra.mxu0 0.0
  %2831 = vmatpush.msra.mxu0 %v2808
  %2832 = vmatpush.msra.mxu0 %v2806
  %2833 = vmatmul.f32.gmra.mxu0 %v2812
  %v2834 = vpop.f32.mrf.mxu0
  %v2835 = vadd.f32 0.0, %v2834
  %2836 = vmatmul.f32.gmra.mxu0 %v2815
  %v2837 = vpop.f32.mrf.mxu0
  %v2838 = vadd.f32 0.0, %v2837
  %2839 = vdwg.mxu0
  %2840 = vrot.lane.b32.xlu0 %v607, 112
  %v2841 = vpop.permute.xlu0 %2840
  %2842 = vrot.lane.b32.xlu0 %v610, 112
  %v2843 = vpop.permute.xlu0 %2842
  %v2847 = vsel %vm648, %v2733, 0
  %v2850 = vsel %vm648, %v2734, 0
  %2852 = vmatpush.msra.mxu0 0.0
  %2853 = vmatpush.msra.mxu0 0.0
  %2854 = vmatpush.msra.mxu0 0.0
  %2855 = vmatpush.msra.mxu0 0.0
  %2856 = vmatpush.msra.mxu0 0.0
  %2857 = vmatpush.msra.mxu0 0.0
  %2858 = vmatpush.msra.mxu0 0.0
  %2859 = vmatpush.msra.mxu0 0.0
  %2860 = vmatpush.msra.mxu0 0.0
  %2861 = vmatpush.msra.mxu0 0.0
  %2862 = vmatpush.msra.mxu0 0.0
  %2863 = vmatpush.msra.mxu0 0.0
  %2864 = vmatpush.msra.mxu0 0.0
  %2865 = vmatpush.msra.mxu0 0.0
  %2866 = vmatpush.msra.mxu0 %v2843
  %2867 = vmatpush.msra.mxu0 %v2841
  %2868 = vmatmul.f32.gmra.mxu0 %v2847
  %v2869 = vpop.f32.mrf.mxu0
  %v2870 = vadd.f32 0.0, %v2869
  %2871 = vmatmul.f32.gmra.mxu0 %v2850
  %v2872 = vpop.f32.mrf.mxu0
  %v2873 = vadd.f32 0.0, %v2872
  %2874 = vdwg.mxu0
  %v2875 = vmul.f32 %v2765, %v2765
  %v2876 = vmul.f32 %v2768, %v2768
  %v2877 = vmul.f32 %v2800, %v2800
  %v2878 = vmul.f32 %v2803, %v2803
  %v2879 = vmul.f32 %v2835, %v2835
  %v2880 = vmul.f32 %v2838, %v2838
  %v2881 = vmul.f32 %v2870, %v2870
  %v2882 = vmul.f32 %v2873, %v2873
  %v2883 = vsel %vm767, %v2875, 0.0
  %2884 = vadd.xlane.f32.xlu0 %v2883
  %v2885 = vpop.xlane.xlu0 %2884
  %v2886 = vsel %vm767, %v2876, 0.0
  %2887 = vadd.xlane.f32.xlu0 %v2886
  %v2888 = vpop.xlane.xlu0 %2887
  %v2889 = vsel %vm767, %v2877, 0.0
  %2890 = vadd.xlane.f32.xlu0 %v2889
  %v2891 = vpop.xlane.xlu0 %2890
  %v2892 = vsel %vm767, %v2878, 0.0
  %2893 = vadd.xlane.f32.xlu0 %v2892
  %v2894 = vpop.xlane.xlu0 %2893
  %v2895 = vsel %vm767, %v2879, 0.0
  %2896 = vadd.xlane.f32.xlu0 %v2895
  %v2897 = vpop.xlane.xlu0 %2896
  %v2898 = vsel %vm767, %v2880, 0.0
  %2899 = vadd.xlane.f32.xlu0 %v2898
  %v2900 = vpop.xlane.xlu0 %2899
  %v2901 = vsel %vm767, %v2881, 0.0
  %2902 = vadd.xlane.f32.xlu0 %v2901
  %v2903 = vpop.xlane.xlu0 %2902
  %v2904 = vsel %vm767, %v2882, 0.0
  %2905 = vadd.xlane.f32.xlu0 %v2904
  %v2906 = vpop.xlane.xlu0 %2905
  %v2907 = vmul.f32 %v2885, %v1168
  %v2908 = vmul.f32 %v2888, %v1168
  %v2909 = vmul.f32 %v2891, %v1168
  %v2910 = vmul.f32 %v2894, %v1168
  %v2911 = vmul.f32 %v2897, %v1168
  %v2912 = vmul.f32 %v2900, %v1168
  %v2913 = vmul.f32 %v2903, %v1168
  %v2914 = vmul.f32 %v2906, %v1168
  %v2915 = vadd.f32 %v2907, 1e-06
  %v2916 = vadd.f32 %v2908, 1e-06
  %v2917 = vadd.f32 %v2909, 1e-06
  %v2918 = vadd.f32 %v2910, 1e-06
  %v2919 = vadd.f32 %v2911, 1e-06
  %v2920 = vadd.f32 %v2912, 1e-06
  %v2921 = vadd.f32 %v2913, 1e-06
  %v2922 = vadd.f32 %v2914, 1e-06
  %v2923 = vrsqrt.pop %v2915
  %v2924 = vmul.f32 %v2923, %v2915
  %v2925 = vmul.f32 %v2924, %v2923
  %v2926 = vmul.f32 0.5, %v2925
  %v2927 = vsub.f32 1.5, %v2926
  %v2928 = vmul.f32 %v2923, %v2927
  %vm2929 = vweird.f32 %v2915
  %vm2930 = vweird.f32 %v2923
  %vm2931 = vmor %vm2929, %vm2930
  %v2932 = vsel %vm2931, %v2923, %v2928
  %v2933 = vrsqrt.pop %v2916
  %v2934 = vmul.f32 %v2933, %v2916
  %v2935 = vmul.f32 %v2934, %v2933
  %v2936 = vmul.f32 0.5, %v2935
  %v2937 = vsub.f32 1.5, %v2936
  %v2938 = vmul.f32 %v2933, %v2937
  %vm2939 = vweird.f32 %v2916
  %vm2940 = vweird.f32 %v2933
  %vm2941 = vmor %vm2939, %vm2940
  %v2942 = vsel %vm2941, %v2933, %v2938
  %v2943 = vrsqrt.pop %v2917
  %v2944 = vmul.f32 %v2943, %v2917
  %v2945 = vmul.f32 %v2944, %v2943
  %v2946 = vmul.f32 0.5, %v2945
  %v2947 = vsub.f32 1.5, %v2946
  %v2948 = vmul.f32 %v2943, %v2947
  %vm2949 = vweird.f32 %v2917
  %vm2950 = vweird.f32 %v2943
  %vm2951 = vmor %vm2949, %vm2950
  %v2952 = vsel %vm2951, %v2943, %v2948
  %v2953 = vrsqrt.pop %v2918
  %v2954 = vmul.f32 %v2953, %v2918
  %v2955 = vmul.f32 %v2954, %v2953
  %v2956 = vmul.f32 0.5, %v2955
  %v2957 = vsub.f32 1.5, %v2956
  %v2958 = vmul.f32 %v2953, %v2957
  %vm2959 = vweird.f32 %v2918
  %vm2960 = vweird.f32 %v2953
  %vm2961 = vmor %vm2959, %vm2960
  %v2962 = vsel %vm2961, %v2953, %v2958
  %v2963 = vrsqrt.pop %v2919
  %v2964 = vmul.f32 %v2963, %v2919
  %v2965 = vmul.f32 %v2964, %v2963
  %v2966 = vmul.f32 0.5, %v2965
  %v2967 = vsub.f32 1.5, %v2966
  %v2968 = vmul.f32 %v2963, %v2967
  %vm2969 = vweird.f32 %v2919
  %vm2970 = vweird.f32 %v2963
  %vm2971 = vmor %vm2969, %vm2970
  %v2972 = vsel %vm2971, %v2963, %v2968
  %v2973 = vrsqrt.pop %v2920
  %v2974 = vmul.f32 %v2973, %v2920
  %v2975 = vmul.f32 %v2974, %v2973
  %v2976 = vmul.f32 0.5, %v2975
  %v2977 = vsub.f32 1.5, %v2976
  %v2978 = vmul.f32 %v2973, %v2977
  %vm2979 = vweird.f32 %v2920
  %vm2980 = vweird.f32 %v2973
  %vm2981 = vmor %vm2979, %vm2980
  %v2982 = vsel %vm2981, %v2973, %v2978
  %v2983 = vrsqrt.pop %v2921
  %v2984 = vmul.f32 %v2983, %v2921
  %v2985 = vmul.f32 %v2984, %v2983
  %v2986 = vmul.f32 0.5, %v2985
  %v2987 = vsub.f32 1.5, %v2986
  %v2988 = vmul.f32 %v2983, %v2987
  %vm2989 = vweird.f32 %v2921
  %vm2990 = vweird.f32 %v2983
  %vm2991 = vmor %vm2989, %vm2990
  %v2992 = vsel %vm2991, %v2983, %v2988
  %v2993 = vrsqrt.pop %v2922
  %v2994 = vmul.f32 %v2993, %v2922
  %v2995 = vmul.f32 %v2994, %v2993
  %v2996 = vmul.f32 0.5, %v2995
  %v2997 = vsub.f32 1.5, %v2996
  %v2998 = vmul.f32 %v2993, %v2997
  %vm2999 = vweird.f32 %v2922
  %vm3000 = vweird.f32 %v2993
  %vm3001 = vmor %vm2999, %vm3000
  %v3002 = vsel %vm3001, %v2993, %v2998
  %v3003 = vmul.f32 %v2765, %v2932
  %v3004 = vmul.f32 %v2768, %v2942
  %v3005 = vmul.f32 %v2800, %v2952
  %v3006 = vmul.f32 %v2803, %v2962
  %v3007 = vmul.f32 %v2835, %v2972
  %v3008 = vmul.f32 %v2838, %v2982
  %v3009 = vmul.f32 %v2870, %v2992
  %v3010 = vmul.f32 %v2873, %v3002
  %3019 = vrot.lane.b32.xlu0 %v3003, 48
  %v3020 = vpop.permute.xlu0 %3019
  %3021 = vrot.lane.b32.xlu0 %v3004, 48
  %v3022 = vpop.permute.xlu0 %3021
  %3023 = vrot.lane.b32.xlu0 %v3005, 48
  %v3024 = vpop.permute.xlu0 %3023
  %3025 = vrot.lane.b32.xlu0 %v3006, 48
  %v3026 = vpop.permute.xlu0 %3025
  %3027 = vrot.lane.b32.xlu0 %v3007, 48
  %v3028 = vpop.permute.xlu0 %3027
  %3029 = vrot.lane.b32.xlu0 %v3008, 48
  %v3030 = vpop.permute.xlu0 %3029
  %3031 = vrot.lane.b32.xlu0 %v3009, 48
  %v3032 = vpop.permute.xlu0 %3031
  %3033 = vrot.lane.b32.xlu0 %v3010, 48
  %v3034 = vpop.permute.xlu0 %3033
  %v3043 = vmul.f32 %v1425, %v3020
  %v3044 = vmul.f32 %v1426, %v3022
  %v3045 = vmul.f32 %v1427, %v3024
  %v3046 = vmul.f32 %v1428, %v3026
  %v3047 = vmul.f32 %v1429, %v3028
  %v3048 = vmul.f32 %v1430, %v3030
  %v3049 = vmul.f32 %v1431, %v3032
  %v3050 = vmul.f32 %v1432, %v3034
  %3059 = vrot.lane.b32.xlu0 %v3043, 80
  %v3060 = vpop.permute.xlu0 %3059
  %3061 = vrot.lane.b32.xlu0 %v3044, 80
  %v3062 = vpop.permute.xlu0 %3061
  %3063 = vrot.lane.b32.xlu0 %v3045, 80
  %v3064 = vpop.permute.xlu0 %3063
  %3065 = vrot.lane.b32.xlu0 %v3046, 80
  %v3066 = vpop.permute.xlu0 %3065
  %3067 = vrot.lane.b32.xlu0 %v3047, 80
  %v3068 = vpop.permute.xlu0 %3067
  %3069 = vrot.lane.b32.xlu0 %v3048, 80
  %v3070 = vpop.permute.xlu0 %3069
  %3071 = vrot.lane.b32.xlu0 %v3049, 80
  %v3072 = vpop.permute.xlu0 %3071
  %3073 = vrot.lane.b32.xlu0 %v3050, 80
  %v3074 = vpop.permute.xlu0 %3073
  %v3075 = vsel %vm767, %v3060, 0
  %v3077 = vsel %vm767, %v3062, 0
  %v3079 = vsel %vm767, %v3064, 0
  %v3081 = vsel %vm767, %v3066, 0
  %v3083 = vsel %vm767, %v3068, 0
  %v3085 = vsel %vm767, %v3070, 0
  %v3087 = vsel %vm767, %v3072, 0
  %v3089 = vsel %vm767, %v3074, 0
  %3091 = vmatpush.msra.mxu0 0.0
  %3092 = vmatpush.msra.mxu0 0.0
  %3093 = vmatpush.msra.mxu0 0.0
  %3094 = vmatpush.msra.mxu0 0.0
  %3095 = vmatpush.msra.mxu0 0.0
  %3096 = vmatpush.msra.mxu0 0.0
  %3097 = vmatpush.msra.mxu0 0.0
  %3098 = vmatpush.msra.mxu0 0.0
  %3099 = vmatpush.msra.mxu0 0.0
  %3100 = vmatpush.msra.mxu0 0.0
  %3101 = vmatpush.msra.mxu0 0.0
  %3102 = vmatpush.msra.mxu0 0.0
  %3103 = vmatpush.msra.mxu0 0.0
  %3104 = vmatpush.msra.mxu0 0.0
  %3105 = vmatpush.msra.mxu0 0.0
  %3106 = vmatpush.msra.mxu0 %v622
  %3107 = vmatmul.f32.gmra.mxu0 %v3075
  %v3108 = vpop.f32.mrf.mxu0
  %v3109 = vadd.f32 0.0, %v3108
  %3110 = vmatmul.f32.gmra.mxu0 %v3077
  %v3111 = vpop.f32.mrf.mxu0
  %v3112 = vadd.f32 0.0, %v3111
  %3113 = vmatmul.f32.gmra.mxu0 %v3079
  %v3114 = vpop.f32.mrf.mxu0
  %v3115 = vadd.f32 0.0, %v3114
  %3116 = vmatmul.f32.gmra.mxu0 %v3081
  %v3117 = vpop.f32.mrf.mxu0
  %v3118 = vadd.f32 0.0, %v3117
  %3119 = vmatmul.f32.gmra.mxu0 %v3083
  %v3120 = vpop.f32.mrf.mxu0
  %v3121 = vadd.f32 0.0, %v3120
  %3122 = vmatmul.f32.gmra.mxu0 %v3085
  %v3123 = vpop.f32.mrf.mxu0
  %v3124 = vadd.f32 0.0, %v3123
  %3125 = vmatmul.f32.gmra.mxu0 %v3087
  %v3126 = vpop.f32.mrf.mxu0
  %v3127 = vadd.f32 0.0, %v3126
  %3128 = vmatmul.f32.gmra.mxu0 %v3089
  %v3129 = vpop.f32.mrf.mxu0
  %v3130 = vadd.f32 0.0, %v3129
  %3131 = vdwg.mxu0
  %v3132 = vadd.f32 %v2324, %v3109
  %v3133 = vadd.f32 %v2327, %v3112
  %v3134 = vadd.f32 %v2330, %v3115
  %v3135 = vadd.f32 %v2333, %v3118
  %v3136 = vadd.f32 %v2336, %v3121
  %v3137 = vadd.f32 %v2339, %v3124
  %v3138 = vadd.f32 %v2342, %v3127
  %v3139 = vadd.f32 %v2345, %v3130
  %v3140 = vmul.f32 %v302, -0.0039138994
  %v3141 = vmul.f32 %v303, -0.0039138994
  %v3142 = vmul.f32 %v304, -0.0039138994
  %v3143 = vmul.f32 %v305, -0.0039138994
  %v3144 = vmul.f32 %v306, -0.0039138994
  %v3145 = vmul.f32 %v307, -0.0039138994
  %v3146 = vmul.f32 %v308, -0.0039138994
  %v3147 = vmul.f32 %v309, -0.0039138994
  %v3148 = vmul.f32 %v3140, 1.442695
  %v3149 = vpow.pop %v3148
  %v3150 = vmul.f32 %v3141, 1.442695
  %v3151 = vpow.pop %v3150
  %v3152 = vmul.f32 %v3142, 1.442695
  %v3153 = vpow.pop %v3152
  %v3154 = vmul.f32 %v3143, 1.442695
  %v3155 = vpow.pop %v3154
  %v3156 = vmul.f32 %v3144, 1.442695
  %v3157 = vpow.pop %v3156
  %v3158 = vmul.f32 %v3145, 1.442695
  %v3159 = vpow.pop %v3158
  %v3160 = vmul.f32 %v3146, 1.442695
  %v3161 = vpow.pop %v3160
  %v3162 = vmul.f32 %v3147, 1.442695
  %v3163 = vpow.pop %v3162
  %v3164 = vsel %vm648, %v3149, 0.0
  %3165 = vadd.xlane.f32.xlu0 %v3164
  %v3166 = vpop.xlane.xlu0 %3165
  %v3167 = vsel %vm648, %v3151, 0.0
  %3168 = vadd.xlane.f32.xlu0 %v3167
  %v3169 = vpop.xlane.xlu0 %3168
  %v3170 = vsel %vm648, %v3153, 0.0
  %3171 = vadd.xlane.f32.xlu0 %v3170
  %v3172 = vpop.xlane.xlu0 %3171
  %v3173 = vsel %vm648, %v3155, 0.0
  %3174 = vadd.xlane.f32.xlu0 %v3173
  %v3175 = vpop.xlane.xlu0 %3174
  %v3176 = vsel %vm648, %v3157, 0.0
  %3177 = vadd.xlane.f32.xlu0 %v3176
  %v3178 = vpop.xlane.xlu0 %3177
  %v3179 = vsel %vm648, %v3159, 0.0
  %3180 = vadd.xlane.f32.xlu0 %v3179
  %v3181 = vpop.xlane.xlu0 %3180
  %v3182 = vsel %vm648, %v3161, 0.0
  %3183 = vadd.xlane.f32.xlu0 %v3182
  %v3184 = vpop.xlane.xlu0 %3183
  %v3185 = vsel %vm648, %v3163, 0.0
  %3186 = vadd.xlane.f32.xlu0 %v3185
  %v3187 = vpop.xlane.xlu0 %3186
  %v3188 = vrsqrt.pop %v3166
  %v3189 = vmul.f32 %v3188, %v3166
  %v3190 = vmul.f32 %v3189, %v3188
  %v3191 = vmul.f32 0.5, %v3190
  %v3192 = vsub.f32 1.5, %v3191
  %v3193 = vmul.f32 %v3188, %v3192
  %vm3194 = vweird.f32 %v3166
  %vm3195 = vweird.f32 %v3188
  %vm3196 = vmor %vm3194, %vm3195
  %v3197 = vsel %vm3196, %v3188, %v3193
  %v3198 = vrsqrt.pop %v3169
  %v3199 = vmul.f32 %v3198, %v3169
  %v3200 = vmul.f32 %v3199, %v3198
  %v3201 = vmul.f32 0.5, %v3200
  %v3202 = vsub.f32 1.5, %v3201
  %v3203 = vmul.f32 %v3198, %v3202
  %vm3204 = vweird.f32 %v3169
  %vm3205 = vweird.f32 %v3198
  %vm3206 = vmor %vm3204, %vm3205
  %v3207 = vsel %vm3206, %v3198, %v3203
  %v3208 = vrsqrt.pop %v3172
  %v3209 = vmul.f32 %v3208, %v3172
  %v3210 = vmul.f32 %v3209, %v3208
  %v3211 = vmul.f32 0.5, %v3210
  %v3212 = vsub.f32 1.5, %v3211
  %v3213 = vmul.f32 %v3208, %v3212
  %vm3214 = vweird.f32 %v3172
  %vm3215 = vweird.f32 %v3208
  %vm3216 = vmor %vm3214, %vm3215
  %v3217 = vsel %vm3216, %v3208, %v3213
  %v3218 = vrsqrt.pop %v3175
  %v3219 = vmul.f32 %v3218, %v3175
  %v3220 = vmul.f32 %v3219, %v3218
  %v3221 = vmul.f32 0.5, %v3220
  %v3222 = vsub.f32 1.5, %v3221
  %v3223 = vmul.f32 %v3218, %v3222
  %vm3224 = vweird.f32 %v3175
  %vm3225 = vweird.f32 %v3218
  %vm3226 = vmor %vm3224, %vm3225
  %v3227 = vsel %vm3226, %v3218, %v3223
  %v3228 = vrsqrt.pop %v3178
  %v3229 = vmul.f32 %v3228, %v3178
  %v3230 = vmul.f32 %v3229, %v3228
  %v3231 = vmul.f32 0.5, %v3230
  %v3232 = vsub.f32 1.5, %v3231
  %v3233 = vmul.f32 %v3228, %v3232
  %vm3234 = vweird.f32 %v3178
  %vm3235 = vweird.f32 %v3228
  %vm3236 = vmor %vm3234, %vm3235
  %v3237 = vsel %vm3236, %v3228, %v3233
  %v3238 = vrsqrt.pop %v3181
  %v3239 = vmul.f32 %v3238, %v3181
  %v3240 = vmul.f32 %v3239, %v3238
  %v3241 = vmul.f32 0.5, %v3240
  %v3242 = vsub.f32 1.5, %v3241
  %v3243 = vmul.f32 %v3238, %v3242
  %vm3244 = vweird.f32 %v3181
  %vm3245 = vweird.f32 %v3238
  %vm3246 = vmor %vm3244, %vm3245
  %v3247 = vsel %vm3246, %v3238, %v3243
  %v3248 = vrsqrt.pop %v3184
  %v3249 = vmul.f32 %v3248, %v3184
  %v3250 = vmul.f32 %v3249, %v3248
  %v3251 = vmul.f32 0.5, %v3250
  %v3252 = vsub.f32 1.5, %v3251
  %v3253 = vmul.f32 %v3248, %v3252
  %vm3254 = vweird.f32 %v3184
  %vm3255 = vweird.f32 %v3248
  %vm3256 = vmor %vm3254, %vm3255
  %v3257 = vsel %vm3256, %v3248, %v3253
  %v3258 = vrsqrt.pop %v3187
  %v3259 = vmul.f32 %v3258, %v3187
  %v3260 = vmul.f32 %v3259, %v3258
  %v3261 = vmul.f32 0.5, %v3260
  %v3262 = vsub.f32 1.5, %v3261
  %v3263 = vmul.f32 %v3258, %v3262
  %vm3264 = vweird.f32 %v3187
  %vm3265 = vweird.f32 %v3258
  %vm3266 = vmor %vm3264, %vm3265
  %v3267 = vsel %vm3266, %v3258, %v3263
  %v3268 = vmul.f32 %v3149, %v3197
  %v3269 = vmul.f32 %v3151, %v3207
  %v3270 = vmul.f32 %v3153, %v3217
  %v3271 = vmul.f32 %v3155, %v3227
  %v3272 = vmul.f32 %v3157, %v3237
  %v3273 = vmul.f32 %v3159, %v3247
  %v3274 = vmul.f32 %v3161, %v3257
  %v3275 = vmul.f32 %v3163, %v3267
  %3276 = vrot.lane.b32.xlu0 %v520, 104
  %v3277 = vpop.permute.xlu0 %3276
  %3278 = vrot.lane.b32.xlu0 %v523, 104
  %v3279 = vpop.permute.xlu0 %3278
  %3280 = vrot.lane.b32.xlu0 %v612, 72
  %v3281 = vpop.permute.xlu0 %3280
  %3282 = vrot.lane.b32.xlu0 %v613, 72
  %v3283 = vpop.permute.xlu0 %3282
  %v3284 = vsel %vm767, %v3277, 0
  %v3286 = vsel %vm767, %v3279, 0
  %v3288 = vsel %vm767, %v3281, 0
  %v3290 = vsel %vm767, %v3283, 0
  %3292 = vmatpush.xpose.msra.mxu0 0.0
  %3293 = vmatpush.xpose.msra.mxu0 0.0
  %3294 = vmatpush.xpose.msra.mxu0 0.0
  %3295 = vmatpush.xpose.msra.mxu0 0.0
  %3296 = vmatpush.xpose.msra.mxu0 0.0
  %3297 = vmatpush.xpose.msra.mxu0 0.0
  %3298 = vmatpush.xpose.msra.mxu0 0.0
  %3299 = vmatpush.xpose.msra.mxu0 0.0
  %3300 = vmatpush.xpose.msra.mxu0 0.0
  %3301 = vmatpush.xpose.msra.mxu0 0.0
  %3302 = vmatpush.xpose.msra.mxu0 0.0
  %3303 = vmatpush.xpose.msra.mxu0 0.0
  %3304 = vmatpush.xpose.msra.mxu0 0.0
  %3305 = vmatpush.xpose.msra.mxu0 0.0
  %3306 = vmatpush.xpose.msra.mxu0 %v3290
  %3307 = vmatpush.xpose.msra.mxu0 %v3288
  %3308 = vmatmul.f32.gmra.mxu0 %v3284
  %v3309 = vpop.f32.mrf.mxu0
  %v3310 = vadd.f32 0.0, %v3309
  %3311 = vmatmul.f32.gmra.mxu0 %v3286
  %v3312 = vpop.f32.mrf.mxu0
  %v3313 = vadd.f32 0.0, %v3312
  %3314 = vdwg.mxu0
  %3315 = vrot.lane.b32.xlu0 %v526, 104
  %v3316 = vpop.permute.xlu0 %3315
  %3317 = vrot.lane.b32.xlu0 %v529, 104
  %v3318 = vpop.permute.xlu0 %3317
  %3319 = vrot.lane.b32.xlu0 %v614, 72
  %v3320 = vpop.permute.xlu0 %3319
  %3321 = vrot.lane.b32.xlu0 %v615, 72
  %v3322 = vpop.permute.xlu0 %3321
  %v3323 = vsel %vm767, %v3316, 0
  %v3325 = vsel %vm767, %v3318, 0
  %v3327 = vsel %vm767, %v3320, 0
  %v3329 = vsel %vm767, %v3322, 0
  %3331 = vmatpush.xpose.msra.mxu0 0.0
  %3332 = vmatpush.xpose.msra.mxu0 0.0
  %3333 = vmatpush.xpose.msra.mxu0 0.0
  %3334 = vmatpush.xpose.msra.mxu0 0.0
  %3335 = vmatpush.xpose.msra.mxu0 0.0
  %3336 = vmatpush.xpose.msra.mxu0 0.0
  %3337 = vmatpush.xpose.msra.mxu0 0.0
  %3338 = vmatpush.xpose.msra.mxu0 0.0
  %3339 = vmatpush.xpose.msra.mxu0 0.0
  %3340 = vmatpush.xpose.msra.mxu0 0.0
  %3341 = vmatpush.xpose.msra.mxu0 0.0
  %3342 = vmatpush.xpose.msra.mxu0 0.0
  %3343 = vmatpush.xpose.msra.mxu0 0.0
  %3344 = vmatpush.xpose.msra.mxu0 0.0
  %3345 = vmatpush.xpose.msra.mxu0 %v3329
  %3346 = vmatpush.xpose.msra.mxu0 %v3327
  %3347 = vmatmul.f32.gmra.mxu0 %v3323
  %v3348 = vpop.f32.mrf.mxu0
  %v3349 = vadd.f32 0.0, %v3348
  %3350 = vmatmul.f32.gmra.mxu0 %v3325
  %v3351 = vpop.f32.mrf.mxu0
  %v3352 = vadd.f32 0.0, %v3351
  %3353 = vdwg.mxu0
  %3354 = vrot.lane.b32.xlu0 %v532, 104
  %v3355 = vpop.permute.xlu0 %3354
  %3356 = vrot.lane.b32.xlu0 %v535, 104
  %v3357 = vpop.permute.xlu0 %3356
  %3358 = vrot.lane.b32.xlu0 %v616, 72
  %v3359 = vpop.permute.xlu0 %3358
  %3360 = vrot.lane.b32.xlu0 %v617, 72
  %v3361 = vpop.permute.xlu0 %3360
  %v3362 = vsel %vm767, %v3355, 0
  %v3364 = vsel %vm767, %v3357, 0
  %v3366 = vsel %vm767, %v3359, 0
  %v3368 = vsel %vm767, %v3361, 0
  %3370 = vmatpush.xpose.msra.mxu0 0.0
  %3371 = vmatpush.xpose.msra.mxu0 0.0
  %3372 = vmatpush.xpose.msra.mxu0 0.0
  %3373 = vmatpush.xpose.msra.mxu0 0.0
  %3374 = vmatpush.xpose.msra.mxu0 0.0
  %3375 = vmatpush.xpose.msra.mxu0 0.0
  %3376 = vmatpush.xpose.msra.mxu0 0.0
  %3377 = vmatpush.xpose.msra.mxu0 0.0
  %3378 = vmatpush.xpose.msra.mxu0 0.0
  %3379 = vmatpush.xpose.msra.mxu0 0.0
  %3380 = vmatpush.xpose.msra.mxu0 0.0
  %3381 = vmatpush.xpose.msra.mxu0 0.0
  %3382 = vmatpush.xpose.msra.mxu0 0.0
  %3383 = vmatpush.xpose.msra.mxu0 0.0
  %3384 = vmatpush.xpose.msra.mxu0 %v3368
  %3385 = vmatpush.xpose.msra.mxu0 %v3366
  %3386 = vmatmul.f32.gmra.mxu0 %v3362
  %v3387 = vpop.f32.mrf.mxu0
  %v3388 = vadd.f32 0.0, %v3387
  %3389 = vmatmul.f32.gmra.mxu0 %v3364
  %v3390 = vpop.f32.mrf.mxu0
  %v3391 = vadd.f32 0.0, %v3390
  %3392 = vdwg.mxu0
  %3393 = vrot.lane.b32.xlu0 %v538, 104
  %v3394 = vpop.permute.xlu0 %3393
  %3395 = vrot.lane.b32.xlu0 %v541, 104
  %v3396 = vpop.permute.xlu0 %3395
  %3397 = vrot.lane.b32.xlu0 %v618, 72
  %v3398 = vpop.permute.xlu0 %3397
  %3399 = vrot.lane.b32.xlu0 %v619, 72
  %v3400 = vpop.permute.xlu0 %3399
  %v3401 = vsel %vm767, %v3394, 0
  %v3403 = vsel %vm767, %v3396, 0
  %v3405 = vsel %vm767, %v3398, 0
  %v3407 = vsel %vm767, %v3400, 0
  %3409 = vmatpush.xpose.msra.mxu0 0.0
  %3410 = vmatpush.xpose.msra.mxu0 0.0
  %3411 = vmatpush.xpose.msra.mxu0 0.0
  %3412 = vmatpush.xpose.msra.mxu0 0.0
  %3413 = vmatpush.xpose.msra.mxu0 0.0
  %3414 = vmatpush.xpose.msra.mxu0 0.0
  %3415 = vmatpush.xpose.msra.mxu0 0.0
  %3416 = vmatpush.xpose.msra.mxu0 0.0
  %3417 = vmatpush.xpose.msra.mxu0 0.0
  %3418 = vmatpush.xpose.msra.mxu0 0.0
  %3419 = vmatpush.xpose.msra.mxu0 0.0
  %3420 = vmatpush.xpose.msra.mxu0 0.0
  %3421 = vmatpush.xpose.msra.mxu0 0.0
  %3422 = vmatpush.xpose.msra.mxu0 0.0
  %3423 = vmatpush.xpose.msra.mxu0 %v3407
  %3424 = vmatpush.xpose.msra.mxu0 %v3405
  %3425 = vmatmul.f32.gmra.mxu0 %v3401
  %v3426 = vpop.f32.mrf.mxu0
  %v3427 = vadd.f32 0.0, %v3426
  %3428 = vmatmul.f32.gmra.mxu0 %v3403
  %v3429 = vpop.f32.mrf.mxu0
  %v3430 = vadd.f32 0.0, %v3429
  %3431 = vdwg.mxu0
  %v3432 = vmul.f32 %v3310, %v3268
  %v3433 = vmul.f32 %v3313, %v3269
  %v3434 = vmul.f32 %v3349, %v3270
  %v3435 = vmul.f32 %v3352, %v3271
  %v3436 = vmul.f32 %v3388, %v3272
  %v3437 = vmul.f32 %v3391, %v3273
  %v3438 = vmul.f32 %v3427, %v3274
  %v3439 = vmul.f32 %v3430, %v3275
  %v3440 = vsel %vm648, %v3432, -inf
  %3441 = vmax.xlane.f32.xlu0 %v3440
  %v3442 = vpop.xlane.xlu0 %3441
  %v3443 = vsel %vm648, %v3433, -inf
  %3444 = vmax.xlane.f32.xlu0 %v3443
  %v3445 = vpop.xlane.xlu0 %3444
  %v3446 = vsel %vm648, %v3434, -inf
  %3447 = vmax.xlane.f32.xlu0 %v3446
  %v3448 = vpop.xlane.xlu0 %3447
  %v3449 = vsel %vm648, %v3435, -inf
  %3450 = vmax.xlane.f32.xlu0 %v3449
  %v3451 = vpop.xlane.xlu0 %3450
  %v3452 = vsel %vm648, %v3436, -inf
  %3453 = vmax.xlane.f32.xlu0 %v3452
  %v3454 = vpop.xlane.xlu0 %3453
  %v3455 = vsel %vm648, %v3437, -inf
  %3456 = vmax.xlane.f32.xlu0 %v3455
  %v3457 = vpop.xlane.xlu0 %3456
  %v3458 = vsel %vm648, %v3438, -inf
  %3459 = vmax.xlane.f32.xlu0 %v3458
  %v3460 = vpop.xlane.xlu0 %3459
  %v3461 = vsel %vm648, %v3439, -inf
  %3462 = vmax.xlane.f32.xlu0 %v3461
  %v3463 = vpop.xlane.xlu0 %3462
  %v3464 = vsub.f32 %v3432, %v3442
  %v3465 = vsub.f32 %v3433, %v3445
  %v3466 = vsub.f32 %v3434, %v3448
  %v3467 = vsub.f32 %v3435, %v3451
  %v3468 = vsub.f32 %v3436, %v3454
  %v3469 = vsub.f32 %v3437, %v3457
  %v3470 = vsub.f32 %v3438, %v3460
  %v3471 = vsub.f32 %v3439, %v3463
  %v3472 = vmul.f32 %v3464, 1.442695
  %v3473 = vpow.pop %v3472
  %v3474 = vmul.f32 %v3465, 1.442695
  %v3475 = vpow.pop %v3474
  %v3476 = vmul.f32 %v3466, 1.442695
  %v3477 = vpow.pop %v3476
  %v3478 = vmul.f32 %v3467, 1.442695
  %v3479 = vpow.pop %v3478
  %v3480 = vmul.f32 %v3468, 1.442695
  %v3481 = vpow.pop %v3480
  %v3482 = vmul.f32 %v3469, 1.442695
  %v3483 = vpow.pop %v3482
  %v3484 = vmul.f32 %v3470, 1.442695
  %v3485 = vpow.pop %v3484
  %v3486 = vmul.f32 %v3471, 1.442695
  %v3487 = vpow.pop %v3486
  %v3488 = vsel %vm648, %v3473, 0.0
  %3489 = vadd.xlane.f32.xlu0 %v3488
  %v3490 = vpop.xlane.xlu0 %3489
  %v3491 = vsel %vm648, %v3475, 0.0
  %3492 = vadd.xlane.f32.xlu0 %v3491
  %v3493 = vpop.xlane.xlu0 %3492
  %v3494 = vsel %vm648, %v3477, 0.0
  %3495 = vadd.xlane.f32.xlu0 %v3494
  %v3496 = vpop.xlane.xlu0 %3495
  %v3497 = vsel %vm648, %v3479, 0.0
  %3498 = vadd.xlane.f32.xlu0 %v3497
  %v3499 = vpop.xlane.xlu0 %3498
  %v3500 = vsel %vm648, %v3481, 0.0
  %3501 = vadd.xlane.f32.xlu0 %v3500
  %v3502 = vpop.xlane.xlu0 %3501
  %v3503 = vsel %vm648, %v3483, 0.0
  %3504 = vadd.xlane.f32.xlu0 %v3503
  %v3505 = vpop.xlane.xlu0 %3504
  %v3506 = vsel %vm648, %v3485, 0.0
  %3507 = vadd.xlane.f32.xlu0 %v3506
  %v3508 = vpop.xlane.xlu0 %3507
  %v3509 = vsel %vm648, %v3487, 0.0
  %3510 = vadd.xlane.f32.xlu0 %v3509
  %v3511 = vpop.xlane.xlu0 %3510
  %v3512 = vrcp.pop %v3490
  %v3513 = vrcp.pop %v3493
  %v3514 = vrcp.pop %v3496
  %v3515 = vrcp.pop %v3499
  %v3516 = vrcp.pop %v3502
  %v3517 = vrcp.pop %v3505
  %v3518 = vrcp.pop %v3508
  %v3519 = vrcp.pop %v3511
  %v3520 = vmul.f32 %v3473, %v3512
  %v3521 = vmul.f32 %v3475, %v3513
  %v3522 = vmul.f32 %v3477, %v3514
  %v3523 = vmul.f32 %v3479, %v3515
  %v3524 = vmul.f32 %v3481, %v3516
  %v3525 = vmul.f32 %v3483, %v3517
  %v3526 = vmul.f32 %v3485, %v3518
  %v3527 = vmul.f32 %v3487, %v3519
  %3528 = vrot.lane.b32.xlu0 %v589, 104
  %v3529 = vpop.permute.xlu0 %3528
  %3530 = vrot.lane.b32.xlu0 %v592, 104
  %v3531 = vpop.permute.xlu0 %3530
  %v3535 = vsel %vm648, %v3520, 0
  %v3538 = vsel %vm648, %v3521, 0
  %3540 = vmatpush.msra.mxu0 0.0
  %3541 = vmatpush.msra.mxu0 0.0
  %3542 = vmatpush.msra.mxu0 0.0
  %3543 = vmatpush.msra.mxu0 0.0
  %3544 = vmatpush.msra.mxu0 0.0
  %3545 = vmatpush.msra.mxu0 0.0
  %3546 = vmatpush.msra.mxu0 0.0
  %3547 = vmatpush.msra.mxu0 0.0
  %3548 = vmatpush.msra.mxu0 0.0
  %3549 = vmatpush.msra.mxu0 0.0
  %3550 = vmatpush.msra.mxu0 0.0
  %3551 = vmatpush.msra.mxu0 0.0
  %3552 = vmatpush.msra.mxu0 0.0
  %3553 = vmatpush.msra.mxu0 0.0
  %3554 = vmatpush.msra.mxu0 %v3531
  %3555 = vmatpush.msra.mxu0 %v3529
  %3556 = vmatmul.f32.gmra.mxu0 %v3535
  %v3557 = vpop.f32.mrf.mxu0
  %v3558 = vadd.f32 0.0, %v3557
  %3559 = vmatmul.f32.gmra.mxu0 %v3538
  %v3560 = vpop.f32.mrf.mxu0
  %v3561 = vadd.f32 0.0, %v3560
  %3562 = vdwg.mxu0
  %3563 = vrot.lane.b32.xlu0 %v595, 104
  %v3564 = vpop.permute.xlu0 %3563
  %3565 = vrot.lane.b32.xlu0 %v598, 104
  %v3566 = vpop.permute.xlu0 %3565
  %v3570 = vsel %vm648, %v3522, 0
  %v3573 = vsel %vm648, %v3523, 0
  %3575 = vmatpush.msra.mxu0 0.0
  %3576 = vmatpush.msra.mxu0 0.0
  %3577 = vmatpush.msra.mxu0 0.0
  %3578 = vmatpush.msra.mxu0 0.0
  %3579 = vmatpush.msra.mxu0 0.0
  %3580 = vmatpush.msra.mxu0 0.0
  %3581 = vmatpush.msra.mxu0 0.0
  %3582 = vmatpush.msra.mxu0 0.0
  %3583 = vmatpush.msra.mxu0 0.0
  %3584 = vmatpush.msra.mxu0 0.0
  %3585 = vmatpush.msra.mxu0 0.0
  %3586 = vmatpush.msra.mxu0 0.0
  %3587 = vmatpush.msra.mxu0 0.0
  %3588 = vmatpush.msra.mxu0 0.0
  %3589 = vmatpush.msra.mxu0 %v3566
  %3590 = vmatpush.msra.mxu0 %v3564
  %3591 = vmatmul.f32.gmra.mxu0 %v3570
  %v3592 = vpop.f32.mrf.mxu0
  %v3593 = vadd.f32 0.0, %v3592
  %3594 = vmatmul.f32.gmra.mxu0 %v3573
  %v3595 = vpop.f32.mrf.mxu0
  %v3596 = vadd.f32 0.0, %v3595
  %3597 = vdwg.mxu0
  %3598 = vrot.lane.b32.xlu0 %v601, 104
  %v3599 = vpop.permute.xlu0 %3598
  %3600 = vrot.lane.b32.xlu0 %v604, 104
  %v3601 = vpop.permute.xlu0 %3600
  %v3605 = vsel %vm648, %v3524, 0
  %v3608 = vsel %vm648, %v3525, 0
  %3610 = vmatpush.msra.mxu0 0.0
  %3611 = vmatpush.msra.mxu0 0.0
  %3612 = vmatpush.msra.mxu0 0.0
  %3613 = vmatpush.msra.mxu0 0.0
  %3614 = vmatpush.msra.mxu0 0.0
  %3615 = vmatpush.msra.mxu0 0.0
  %3616 = vmatpush.msra.mxu0 0.0
  %3617 = vmatpush.msra.mxu0 0.0
  %3618 = vmatpush.msra.mxu0 0.0
  %3619 = vmatpush.msra.mxu0 0.0
  %3620 = vmatpush.msra.mxu0 0.0
  %3621 = vmatpush.msra.mxu0 0.0
  %3622 = vmatpush.msra.mxu0 0.0
  %3623 = vmatpush.msra.mxu0 0.0
  %3624 = vmatpush.msra.mxu0 %v3601
  %3625 = vmatpush.msra.mxu0 %v3599
  %3626 = vmatmul.f32.gmra.mxu0 %v3605
  %v3627 = vpop.f32.mrf.mxu0
  %v3628 = vadd.f32 0.0, %v3627
  %3629 = vmatmul.f32.gmra.mxu0 %v3608
  %v3630 = vpop.f32.mrf.mxu0
  %v3631 = vadd.f32 0.0, %v3630
  %3632 = vdwg.mxu0
  %3633 = vrot.lane.b32.xlu0 %v607, 104
  %v3634 = vpop.permute.xlu0 %3633
  %3635 = vrot.lane.b32.xlu0 %v610, 104
  %v3636 = vpop.permute.xlu0 %3635
  %v3640 = vsel %vm648, %v3526, 0
  %v3643 = vsel %vm648, %v3527, 0
  %3645 = vmatpush.msra.mxu0 0.0
  %3646 = vmatpush.msra.mxu0 0.0
  %3647 = vmatpush.msra.mxu0 0.0
  %3648 = vmatpush.msra.mxu0 0.0
  %3649 = vmatpush.msra.mxu0 0.0
  %3650 = vmatpush.msra.mxu0 0.0
  %3651 = vmatpush.msra.mxu0 0.0
  %3652 = vmatpush.msra.mxu0 0.0
  %3653 = vmatpush.msra.mxu0 0.0
  %3654 = vmatpush.msra.mxu0 0.0
  %3655 = vmatpush.msra.mxu0 0.0
  %3656 = vmatpush.msra.mxu0 0.0
  %3657 = vmatpush.msra.mxu0 0.0
  %3658 = vmatpush.msra.mxu0 0.0
  %3659 = vmatpush.msra.mxu0 %v3636
  %3660 = vmatpush.msra.mxu0 %v3634
  %3661 = vmatmul.f32.gmra.mxu0 %v3640
  %v3662 = vpop.f32.mrf.mxu0
  %v3663 = vadd.f32 0.0, %v3662
  %3664 = vmatmul.f32.gmra.mxu0 %v3643
  %v3665 = vpop.f32.mrf.mxu0
  %v3666 = vadd.f32 0.0, %v3665
  %3667 = vdwg.mxu0
  %v3668 = vmul.f32 %v3558, %v3558
  %v3669 = vmul.f32 %v3561, %v3561
  %v3670 = vmul.f32 %v3593, %v3593
  %v3671 = vmul.f32 %v3596, %v3596
  %v3672 = vmul.f32 %v3628, %v3628
  %v3673 = vmul.f32 %v3631, %v3631
  %v3674 = vmul.f32 %v3663, %v3663
  %v3675 = vmul.f32 %v3666, %v3666
  %v3676 = vsel %vm767, %v3668, 0.0
  %3677 = vadd.xlane.f32.xlu0 %v3676
  %v3678 = vpop.xlane.xlu0 %3677
  %v3679 = vsel %vm767, %v3669, 0.0
  %3680 = vadd.xlane.f32.xlu0 %v3679
  %v3681 = vpop.xlane.xlu0 %3680
  %v3682 = vsel %vm767, %v3670, 0.0
  %3683 = vadd.xlane.f32.xlu0 %v3682
  %v3684 = vpop.xlane.xlu0 %3683
  %v3685 = vsel %vm767, %v3671, 0.0
  %3686 = vadd.xlane.f32.xlu0 %v3685
  %v3687 = vpop.xlane.xlu0 %3686
  %v3688 = vsel %vm767, %v3672, 0.0
  %3689 = vadd.xlane.f32.xlu0 %v3688
  %v3690 = vpop.xlane.xlu0 %3689
  %v3691 = vsel %vm767, %v3673, 0.0
  %3692 = vadd.xlane.f32.xlu0 %v3691
  %v3693 = vpop.xlane.xlu0 %3692
  %v3694 = vsel %vm767, %v3674, 0.0
  %3695 = vadd.xlane.f32.xlu0 %v3694
  %v3696 = vpop.xlane.xlu0 %3695
  %v3697 = vsel %vm767, %v3675, 0.0
  %3698 = vadd.xlane.f32.xlu0 %v3697
  %v3699 = vpop.xlane.xlu0 %3698
  %v3700 = vmul.f32 %v3678, %v1168
  %v3701 = vmul.f32 %v3681, %v1168
  %v3702 = vmul.f32 %v3684, %v1168
  %v3703 = vmul.f32 %v3687, %v1168
  %v3704 = vmul.f32 %v3690, %v1168
  %v3705 = vmul.f32 %v3693, %v1168
  %v3706 = vmul.f32 %v3696, %v1168
  %v3707 = vmul.f32 %v3699, %v1168
  %v3708 = vadd.f32 %v3700, 1e-06
  %v3709 = vadd.f32 %v3701, 1e-06
  %v3710 = vadd.f32 %v3702, 1e-06
  %v3711 = vadd.f32 %v3703, 1e-06
  %v3712 = vadd.f32 %v3704, 1e-06
  %v3713 = vadd.f32 %v3705, 1e-06
  %v3714 = vadd.f32 %v3706, 1e-06
  %v3715 = vadd.f32 %v3707, 1e-06
  %v3716 = vrsqrt.pop %v3708
  %v3717 = vmul.f32 %v3716, %v3708
  %v3718 = vmul.f32 %v3717, %v3716
  %v3719 = vmul.f32 0.5, %v3718
  %v3720 = vsub.f32 1.5, %v3719
  %v3721 = vmul.f32 %v3716, %v3720
  %vm3722 = vweird.f32 %v3708
  %vm3723 = vweird.f32 %v3716
  %vm3724 = vmor %vm3722, %vm3723
  %v3725 = vsel %vm3724, %v3716, %v3721
  %v3726 = vrsqrt.pop %v3709
  %v3727 = vmul.f32 %v3726, %v3709
  %v3728 = vmul.f32 %v3727, %v3726
  %v3729 = vmul.f32 0.5, %v3728
  %v3730 = vsub.f32 1.5, %v3729
  %v3731 = vmul.f32 %v3726, %v3730
  %vm3732 = vweird.f32 %v3709
  %vm3733 = vweird.f32 %v3726
  %vm3734 = vmor %vm3732, %vm3733
  %v3735 = vsel %vm3734, %v3726, %v3731
  %v3736 = vrsqrt.pop %v3710
  %v3737 = vmul.f32 %v3736, %v3710
  %v3738 = vmul.f32 %v3737, %v3736
  %v3739 = vmul.f32 0.5, %v3738
  %v3740 = vsub.f32 1.5, %v3739
  %v3741 = vmul.f32 %v3736, %v3740
  %vm3742 = vweird.f32 %v3710
  %vm3743 = vweird.f32 %v3736
  %vm3744 = vmor %vm3742, %vm3743
  %v3745 = vsel %vm3744, %v3736, %v3741
  %v3746 = vrsqrt.pop %v3711
  %v3747 = vmul.f32 %v3746, %v3711
  %v3748 = vmul.f32 %v3747, %v3746
  %v3749 = vmul.f32 0.5, %v3748
  %v3750 = vsub.f32 1.5, %v3749
  %v3751 = vmul.f32 %v3746, %v3750
  %vm3752 = vweird.f32 %v3711
  %vm3753 = vweird.f32 %v3746
  %vm3754 = vmor %vm3752, %vm3753
  %v3755 = vsel %vm3754, %v3746, %v3751
  %v3756 = vrsqrt.pop %v3712
  %v3757 = vmul.f32 %v3756, %v3712
  %v3758 = vmul.f32 %v3757, %v3756
  %v3759 = vmul.f32 0.5, %v3758
  %v3760 = vsub.f32 1.5, %v3759
  %v3761 = vmul.f32 %v3756, %v3760
  %vm3762 = vweird.f32 %v3712
  %vm3763 = vweird.f32 %v3756
  %vm3764 = vmor %vm3762, %vm3763
  %v3765 = vsel %vm3764, %v3756, %v3761
  %v3766 = vrsqrt.pop %v3713
  %v3767 = vmul.f32 %v3766, %v3713
  %v3768 = vmul.f32 %v3767, %v3766
  %v3769 = vmul.f32 0.5, %v3768
  %v3770 = vsub.f32 1.5, %v3769
  %v3771 = vmul.f32 %v3766, %v3770
  %vm3772 = vweird.f32 %v3713
  %vm3773 = vweird.f32 %v3766
  %vm3774 = vmor %vm3772, %vm3773
  %v3775 = vsel %vm3774, %v3766, %v3771
  %v3776 = vrsqrt.pop %v3714
  %v3777 = vmul.f32 %v3776, %v3714
  %v3778 = vmul.f32 %v3777, %v3776
  %v3779 = vmul.f32 0.5, %v3778
  %v3780 = vsub.f32 1.5, %v3779
  %v3781 = vmul.f32 %v3776, %v3780
  %vm3782 = vweird.f32 %v3714
  %vm3783 = vweird.f32 %v3776
  %vm3784 = vmor %vm3782, %vm3783
  %v3785 = vsel %vm3784, %v3776, %v3781
  %v3786 = vrsqrt.pop %v3715
  %v3787 = vmul.f32 %v3786, %v3715
  %v3788 = vmul.f32 %v3787, %v3786
  %v3789 = vmul.f32 0.5, %v3788
  %v3790 = vsub.f32 1.5, %v3789
  %v3791 = vmul.f32 %v3786, %v3790
  %vm3792 = vweird.f32 %v3715
  %vm3793 = vweird.f32 %v3786
  %vm3794 = vmor %vm3792, %vm3793
  %v3795 = vsel %vm3794, %v3786, %v3791
  %v3796 = vmul.f32 %v3558, %v3725
  %v3797 = vmul.f32 %v3561, %v3735
  %v3798 = vmul.f32 %v3593, %v3745
  %v3799 = vmul.f32 %v3596, %v3755
  %v3800 = vmul.f32 %v3628, %v3765
  %v3801 = vmul.f32 %v3631, %v3775
  %v3802 = vmul.f32 %v3663, %v3785
  %v3803 = vmul.f32 %v3666, %v3795
  %3812 = vrot.lane.b32.xlu0 %v3796, 56
  %v3813 = vpop.permute.xlu0 %3812
  %3814 = vrot.lane.b32.xlu0 %v3797, 56
  %v3815 = vpop.permute.xlu0 %3814
  %3816 = vrot.lane.b32.xlu0 %v3798, 56
  %v3817 = vpop.permute.xlu0 %3816
  %3818 = vrot.lane.b32.xlu0 %v3799, 56
  %v3819 = vpop.permute.xlu0 %3818
  %3820 = vrot.lane.b32.xlu0 %v3800, 56
  %v3821 = vpop.permute.xlu0 %3820
  %3822 = vrot.lane.b32.xlu0 %v3801, 56
  %v3823 = vpop.permute.xlu0 %3822
  %3824 = vrot.lane.b32.xlu0 %v3802, 56
  %v3825 = vpop.permute.xlu0 %3824
  %3826 = vrot.lane.b32.xlu0 %v3803, 56
  %v3827 = vpop.permute.xlu0 %3826
  %v3836 = vmul.f32 %v1425, %v3813
  %v3837 = vmul.f32 %v1426, %v3815
  %v3838 = vmul.f32 %v1427, %v3817
  %v3839 = vmul.f32 %v1428, %v3819
  %v3840 = vmul.f32 %v1429, %v3821
  %v3841 = vmul.f32 %v1430, %v3823
  %v3842 = vmul.f32 %v1431, %v3825
  %v3843 = vmul.f32 %v1432, %v3827
  %3852 = vrot.lane.b32.xlu0 %v3836, 72
  %v3853 = vpop.permute.xlu0 %3852
  %3854 = vrot.lane.b32.xlu0 %v3837, 72
  %v3855 = vpop.permute.xlu0 %3854
  %3856 = vrot.lane.b32.xlu0 %v3838, 72
  %v3857 = vpop.permute.xlu0 %3856
  %3858 = vrot.lane.b32.xlu0 %v3839, 72
  %v3859 = vpop.permute.xlu0 %3858
  %3860 = vrot.lane.b32.xlu0 %v3840, 72
  %v3861 = vpop.permute.xlu0 %3860
  %3862 = vrot.lane.b32.xlu0 %v3841, 72
  %v3863 = vpop.permute.xlu0 %3862
  %3864 = vrot.lane.b32.xlu0 %v3842, 72
  %v3865 = vpop.permute.xlu0 %3864
  %3866 = vrot.lane.b32.xlu0 %v3843, 72
  %v3867 = vpop.permute.xlu0 %3866
  %v3868 = vsel %vm767, %v3853, 0
  %v3870 = vsel %vm767, %v3855, 0
  %v3872 = vsel %vm767, %v3857, 0
  %v3874 = vsel %vm767, %v3859, 0
  %v3876 = vsel %vm767, %v3861, 0
  %v3878 = vsel %vm767, %v3863, 0
  %v3880 = vsel %vm767, %v3865, 0
  %v3882 = vsel %vm767, %v3867, 0
  %3884 = vmatpush.msra.mxu0 0.0
  %3885 = vmatpush.msra.mxu0 0.0
  %3886 = vmatpush.msra.mxu0 0.0
  %3887 = vmatpush.msra.mxu0 0.0
  %3888 = vmatpush.msra.mxu0 0.0
  %3889 = vmatpush.msra.mxu0 0.0
  %3890 = vmatpush.msra.mxu0 0.0
  %3891 = vmatpush.msra.mxu0 0.0
  %3892 = vmatpush.msra.mxu0 0.0
  %3893 = vmatpush.msra.mxu0 0.0
  %3894 = vmatpush.msra.mxu0 0.0
  %3895 = vmatpush.msra.mxu0 0.0
  %3896 = vmatpush.msra.mxu0 0.0
  %3897 = vmatpush.msra.mxu0 0.0
  %3898 = vmatpush.msra.mxu0 0.0
  %3899 = vmatpush.msra.mxu0 %v623
  %3900 = vmatmul.f32.gmra.mxu0 %v3868
  %v3901 = vpop.f32.mrf.mxu0
  %v3902 = vadd.f32 0.0, %v3901
  %3903 = vmatmul.f32.gmra.mxu0 %v3870
  %v3904 = vpop.f32.mrf.mxu0
  %v3905 = vadd.f32 0.0, %v3904
  %3906 = vmatmul.f32.gmra.mxu0 %v3872
  %v3907 = vpop.f32.mrf.mxu0
  %v3908 = vadd.f32 0.0, %v3907
  %3909 = vmatmul.f32.gmra.mxu0 %v3874
  %v3910 = vpop.f32.mrf.mxu0
  %v3911 = vadd.f32 0.0, %v3910
  %3912 = vmatmul.f32.gmra.mxu0 %v3876
  %v3913 = vpop.f32.mrf.mxu0
  %v3914 = vadd.f32 0.0, %v3913
  %3915 = vmatmul.f32.gmra.mxu0 %v3878
  %v3916 = vpop.f32.mrf.mxu0
  %v3917 = vadd.f32 0.0, %v3916
  %3918 = vmatmul.f32.gmra.mxu0 %v3880
  %v3919 = vpop.f32.mrf.mxu0
  %v3920 = vadd.f32 0.0, %v3919
  %3921 = vmatmul.f32.gmra.mxu0 %v3882
  %v3922 = vpop.f32.mrf.mxu0
  %v3923 = vadd.f32 0.0, %v3922
  %3924 = vdwg.mxu0
  %v3925 = vadd.f32 %v3132, %v3902
  %v3926 = vadd.f32 %v3133, %v3905
  %v3927 = vadd.f32 %v3134, %v3908
  %v3928 = vadd.f32 %v3135, %v3911
  %v3929 = vadd.f32 %v3136, %v3914
  %v3930 = vadd.f32 %v3137, %v3917
  %v3931 = vadd.f32 %v3138, %v3920
  %v3932 = vadd.f32 %v3139, %v3923
  %v3933 = vadd.f32 %v35, %v3925
  %v3934 = vadd.f32 %v36, %v3926
  %v3935 = vadd.f32 %v37, %v3927
  %v3936 = vadd.f32 %v38, %v3928
  %v3937 = vadd.f32 %v39, %v3929
  %v3938 = vadd.f32 %v40, %v3930
  %v3939 = vadd.f32 %v41, %v3931
  %v3940 = vadd.f32 %v42, %v3932
  %v3941 = vld [vmem:[%s7] sm:$0x1]
  %v3942 = vmul.f32 %v3933, %v3933
  %v3943 = vmul.f32 %v3934, %v3934
  %v3944 = vmul.f32 %v3935, %v3935
  %v3945 = vmul.f32 %v3936, %v3936
  %v3946 = vmul.f32 %v3937, %v3937
  %v3947 = vmul.f32 %v3938, %v3938
  %v3948 = vmul.f32 %v3939, %v3939
  %v3949 = vmul.f32 %v3940, %v3940
  %v3950 = vsel %vm319, %v3942, 0.0
  %3951 = vadd.xlane.f32.xlu0 %v3950
  %v3952 = vpop.xlane.xlu0 %3951
  %v3953 = vsel %vm319, %v3943, 0.0
  %3954 = vadd.xlane.f32.xlu0 %v3953
  %v3955 = vpop.xlane.xlu0 %3954
  %v3956 = vsel %vm319, %v3944, 0.0
  %3957 = vadd.xlane.f32.xlu0 %v3956
  %v3958 = vpop.xlane.xlu0 %3957
  %v3959 = vsel %vm319, %v3945, 0.0
  %3960 = vadd.xlane.f32.xlu0 %v3959
  %v3961 = vpop.xlane.xlu0 %3960
  %v3962 = vsel %vm319, %v3946, 0.0
  %3963 = vadd.xlane.f32.xlu0 %v3962
  %v3964 = vpop.xlane.xlu0 %3963
  %v3965 = vsel %vm319, %v3947, 0.0
  %3966 = vadd.xlane.f32.xlu0 %v3965
  %v3967 = vpop.xlane.xlu0 %3966
  %v3968 = vsel %vm319, %v3948, 0.0
  %3969 = vadd.xlane.f32.xlu0 %v3968
  %v3970 = vpop.xlane.xlu0 %3969
  %v3971 = vsel %vm319, %v3949, 0.0
  %3972 = vadd.xlane.f32.xlu0 %v3971
  %v3973 = vpop.xlane.xlu0 %3972
  %v3974 = vmul.f32 %v3952, %v350
  %v3975 = vmul.f32 %v3955, %v350
  %v3976 = vmul.f32 %v3958, %v350
  %v3977 = vmul.f32 %v3961, %v350
  %v3978 = vmul.f32 %v3964, %v350
  %v3979 = vmul.f32 %v3967, %v350
  %v3980 = vmul.f32 %v3970, %v350
  %v3981 = vmul.f32 %v3973, %v350
  %v3982 = vadd.f32 %v3974, 1e-06
  %v3983 = vadd.f32 %v3975, 1e-06
  %v3984 = vadd.f32 %v3976, 1e-06
  %v3985 = vadd.f32 %v3977, 1e-06
  %v3986 = vadd.f32 %v3978, 1e-06
  %v3987 = vadd.f32 %v3979, 1e-06
  %v3988 = vadd.f32 %v3980, 1e-06
  %v3989 = vadd.f32 %v3981, 1e-06
  %v3990 = vrsqrt.pop %v3982
  %v3991 = vmul.f32 %v3990, %v3982
  %v3992 = vmul.f32 %v3991, %v3990
  %v3993 = vmul.f32 0.5, %v3992
  %v3994 = vsub.f32 1.5, %v3993
  %v3995 = vmul.f32 %v3990, %v3994
  %vm3996 = vweird.f32 %v3982
  %vm3997 = vweird.f32 %v3990
  %vm3998 = vmor %vm3996, %vm3997
  %v3999 = vsel %vm3998, %v3990, %v3995
  %v4000 = vrsqrt.pop %v3983
  %v4001 = vmul.f32 %v4000, %v3983
  %v4002 = vmul.f32 %v4001, %v4000
  %v4003 = vmul.f32 0.5, %v4002
  %v4004 = vsub.f32 1.5, %v4003
  %v4005 = vmul.f32 %v4000, %v4004
  %vm4006 = vweird.f32 %v3983
  %vm4007 = vweird.f32 %v4000
  %vm4008 = vmor %vm4006, %vm4007
  %v4009 = vsel %vm4008, %v4000, %v4005
  %v4010 = vrsqrt.pop %v3984
  %v4011 = vmul.f32 %v4010, %v3984
  %v4012 = vmul.f32 %v4011, %v4010
  %v4013 = vmul.f32 0.5, %v4012
  %v4014 = vsub.f32 1.5, %v4013
  %v4015 = vmul.f32 %v4010, %v4014
  %vm4016 = vweird.f32 %v3984
  %vm4017 = vweird.f32 %v4010
  %vm4018 = vmor %vm4016, %vm4017
  %v4019 = vsel %vm4018, %v4010, %v4015
  %v4020 = vrsqrt.pop %v3985
  %v4021 = vmul.f32 %v4020, %v3985
  %v4022 = vmul.f32 %v4021, %v4020
  %v4023 = vmul.f32 0.5, %v4022
  %v4024 = vsub.f32 1.5, %v4023
  %v4025 = vmul.f32 %v4020, %v4024
  %vm4026 = vweird.f32 %v3985
  %vm4027 = vweird.f32 %v4020
  %vm4028 = vmor %vm4026, %vm4027
  %v4029 = vsel %vm4028, %v4020, %v4025
  %v4030 = vrsqrt.pop %v3986
  %v4031 = vmul.f32 %v4030, %v3986
  %v4032 = vmul.f32 %v4031, %v4030
  %v4033 = vmul.f32 0.5, %v4032
  %v4034 = vsub.f32 1.5, %v4033
  %v4035 = vmul.f32 %v4030, %v4034
  %vm4036 = vweird.f32 %v3986
  %vm4037 = vweird.f32 %v4030
  %vm4038 = vmor %vm4036, %vm4037
  %v4039 = vsel %vm4038, %v4030, %v4035
  %v4040 = vrsqrt.pop %v3987
  %v4041 = vmul.f32 %v4040, %v3987
  %v4042 = vmul.f32 %v4041, %v4040
  %v4043 = vmul.f32 0.5, %v4042
  %v4044 = vsub.f32 1.5, %v4043
  %v4045 = vmul.f32 %v4040, %v4044
  %vm4046 = vweird.f32 %v3987
  %vm4047 = vweird.f32 %v4040
  %vm4048 = vmor %vm4046, %vm4047
  %v4049 = vsel %vm4048, %v4040, %v4045
  %v4050 = vrsqrt.pop %v3988
  %v4051 = vmul.f32 %v4050, %v3988
  %v4052 = vmul.f32 %v4051, %v4050
  %v4053 = vmul.f32 0.5, %v4052
  %v4054 = vsub.f32 1.5, %v4053
  %v4055 = vmul.f32 %v4050, %v4054
  %vm4056 = vweird.f32 %v3988
  %vm4057 = vweird.f32 %v4050
  %vm4058 = vmor %vm4056, %vm4057
  %v4059 = vsel %vm4058, %v4050, %v4055
  %v4060 = vrsqrt.pop %v3989
  %v4061 = vmul.f32 %v4060, %v3989
  %v4062 = vmul.f32 %v4061, %v4060
  %v4063 = vmul.f32 0.5, %v4062
  %v4064 = vsub.f32 1.5, %v4063
  %v4065 = vmul.f32 %v4060, %v4064
  %vm4066 = vweird.f32 %v3989
  %vm4067 = vweird.f32 %v4060
  %vm4068 = vmor %vm4066, %vm4067
  %v4069 = vsel %vm4068, %v4060, %v4065
  %v4070 = vmul.f32 %v3933, %v3999
  %v4071 = vmul.f32 %v3934, %v4009
  %v4072 = vmul.f32 %v3935, %v4019
  %v4073 = vmul.f32 %v3936, %v4029
  %v4074 = vmul.f32 %v3937, %v4039
  %v4075 = vmul.f32 %v3938, %v4049
  %v4076 = vmul.f32 %v3939, %v4059
  %v4077 = vmul.f32 %v3940, %v4069
  %v4079 = vperm.slane %v3941, 0
  %v4081 = vmul.f32 %v4070, %v4079
  %v4082 = vmul.f32 %v4071, %v4079
  %v4083 = vmul.f32 %v4072, %v4079
  %v4084 = vmul.f32 %v4073, %v4079
  %v4085 = vmul.f32 %v4074, %v4079
  %v4086 = vmul.f32 %v4075, %v4079
  %v4087 = vmul.f32 %v4076, %v4079
  %v4088 = vmul.f32 %v4077, %v4079
  %v4089 = vld [vmem:[%s8] sm:$0xff]
  %v4090 = vld [vmem:[%s8 + $0x8] sm:$0xff]
  %v4091 = vld [vmem:[%s8 + $0x10] sm:$0xff]
  %v4092 = vld [vmem:[%s8 + $0x18] sm:$0xff]
  %v4094 = vsel %vm319, %v4081, 0
  %v4097 = vsel %vm319, %v4082, 0
  %v4100 = vsel %vm319, %v4083, 0
  %v4103 = vsel %vm319, %v4084, 0
  %v4106 = vsel %vm319, %v4085, 0
  %v4109 = vsel %vm319, %v4086, 0
  %v4112 = vsel %vm319, %v4087, 0
  %v4115 = vsel %vm319, %v4088, 0
  %4117 = vmatpush.msra.mxu0 0.0
  %4118 = vmatpush.msra.mxu0 0.0
  %4119 = vmatpush.msra.mxu0 0.0
  %4120 = vmatpush.msra.mxu0 0.0
  %4121 = vmatpush.msra.mxu0 0.0
  %4122 = vmatpush.msra.mxu0 0.0
  %4123 = vmatpush.msra.mxu0 0.0
  %4124 = vmatpush.msra.mxu0 0.0
  %4125 = vmatpush.msra.mxu0 0.0
  %4126 = vmatpush.msra.mxu0 0.0
  %4127 = vmatpush.msra.mxu0 0.0
  %4128 = vmatpush.msra.mxu0 0.0
  %4129 = vmatpush.msra.mxu0 %v4092
  %4130 = vmatpush.msra.mxu0 %v4091
  %4131 = vmatpush.msra.mxu0 %v4090
  %4132 = vmatpush.msra.mxu0 %v4089
  %4133 = vmatmul.f32.gmra.mxu0 %v4094
  %v4134 = vpop.f32.mrf.mxu0
  %v4135 = vadd.f32 0.0, %v4134
  %4136 = vmatmul.f32.gmra.mxu0 %v4097
  %v4137 = vpop.f32.mrf.mxu0
  %v4138 = vadd.f32 0.0, %v4137
  %4139 = vmatmul.f32.gmra.mxu0 %v4100
  %v4140 = vpop.f32.mrf.mxu0
  %v4141 = vadd.f32 0.0, %v4140
  %4142 = vmatmul.f32.gmra.mxu0 %v4103
  %v4143 = vpop.f32.mrf.mxu0
  %v4144 = vadd.f32 0.0, %v4143
  %4145 = vmatmul.f32.gmra.mxu0 %v4106
  %v4146 = vpop.f32.mrf.mxu0
  %v4147 = vadd.f32 0.0, %v4146
  %4148 = vmatmul.f32.gmra.mxu0 %v4109
  %v4149 = vpop.f32.mrf.mxu0
  %v4150 = vadd.f32 0.0, %v4149
  %4151 = vmatmul.f32.gmra.mxu0 %v4112
  %v4152 = vpop.f32.mrf.mxu0
  %v4153 = vadd.f32 0.0, %v4152
  %4154 = vmatmul.f32.gmra.mxu0 %v4115
  %v4155 = vpop.f32.mrf.mxu0
  %v4156 = vadd.f32 0.0, %v4155
  %4157 = vdwg.mxu0
  %v4158 = vxor.u32 %v4135, 2147483648
  %v4159 = vxor.u32 %v4138, 2147483648
  %v4160 = vxor.u32 %v4141, 2147483648
  %v4161 = vxor.u32 %v4144, 2147483648
  %v4162 = vxor.u32 %v4147, 2147483648
  %v4163 = vxor.u32 %v4150, 2147483648
  %v4164 = vxor.u32 %v4153, 2147483648
  %v4165 = vxor.u32 %v4156, 2147483648
  %v4166 = vmul.f32 %v4158, 1.442695
  %v4167 = vpow.pop %v4166
  %v4168 = vmul.f32 %v4159, 1.442695
  %v4169 = vpow.pop %v4168
  %v4170 = vmul.f32 %v4160, 1.442695
  %v4171 = vpow.pop %v4170
  %v4172 = vmul.f32 %v4161, 1.442695
  %v4173 = vpow.pop %v4172
  %v4174 = vmul.f32 %v4162, 1.442695
  %v4175 = vpow.pop %v4174
  %v4176 = vmul.f32 %v4163, 1.442695
  %v4177 = vpow.pop %v4176
  %v4178 = vmul.f32 %v4164, 1.442695
  %v4179 = vpow.pop %v4178
  %v4180 = vmul.f32 %v4165, 1.442695
  %v4181 = vpow.pop %v4180
  %v4182 = vadd.f32 %v4167, 1.0
  %v4183 = vadd.f32 %v4169, 1.0
  %v4184 = vadd.f32 %v4171, 1.0
  %v4185 = vadd.f32 %v4173, 1.0
  %v4186 = vadd.f32 %v4175, 1.0
  %v4187 = vadd.f32 %v4177, 1.0
  %v4188 = vadd.f32 %v4179, 1.0
  %v4189 = vadd.f32 %v4181, 1.0
  %v4190 = vrcp.pop %v4182
  %v4191 = vmul.f32 %v4182, %v4190
  %v4192 = vsub.f32 1.0, %v4191
  %v4193 = vmul.f32 %v4190, %v4192
  %v4194 = vadd.f32 %v4190, %v4193
  %vm4195 = vweird.f32 %v4182
  %vm4196 = vweird.f32 %v4190
  %vm4197 = vmor %vm4195, %vm4196
  %v4198 = vsel %vm4197, %v4190, %v4194
  %v4199 = vand.u32 2147483647, %v4182
  %vm4200 = vcmp.eq.f32.partialorder %v4199, 8.507059e+37
  %v4201 = vand.u32 %v4182, 2147483648
  %v4202 = vor.u32 1.1754944e-38, %v4201
  %v4203 = vsel %vm4200, %v4202, %v4198
  %v4204 = vmul.f32 1.0, %v4203
  %v4205 = vrcp.pop %v4183
  %v4206 = vmul.f32 %v4183, %v4205
  %v4207 = vsub.f32 1.0, %v4206
  %v4208 = vmul.f32 %v4205, %v4207
  %v4209 = vadd.f32 %v4205, %v4208
  %vm4210 = vweird.f32 %v4183
  %vm4211 = vweird.f32 %v4205
  %vm4212 = vmor %vm4210, %vm4211
  %v4213 = vsel %vm4212, %v4205, %v4209
  %v4214 = vand.u32 2147483647, %v4183
  %vm4215 = vcmp.eq.f32.partialorder %v4214, 8.507059e+37
  %v4216 = vand.u32 %v4183, 2147483648
  %v4217 = vor.u32 1.1754944e-38, %v4216
  %v4218 = vsel %vm4215, %v4217, %v4213
  %v4219 = vmul.f32 1.0, %v4218
  %v4220 = vrcp.pop %v4184
  %v4221 = vmul.f32 %v4184, %v4220
  %v4222 = vsub.f32 1.0, %v4221
  %v4223 = vmul.f32 %v4220, %v4222
  %v4224 = vadd.f32 %v4220, %v4223
  %vm4225 = vweird.f32 %v4184
  %vm4226 = vweird.f32 %v4220
  %vm4227 = vmor %vm4225, %vm4226
  %v4228 = vsel %vm4227, %v4220, %v4224
  %v4229 = vand.u32 2147483647, %v4184
  %vm4230 = vcmp.eq.f32.partialorder %v4229, 8.507059e+37
  %v4231 = vand.u32 %v4184, 2147483648
  %v4232 = vor.u32 1.1754944e-38, %v4231
  %v4233 = vsel %vm4230, %v4232, %v4228
  %v4234 = vmul.f32 1.0, %v4233
  %v4235 = vrcp.pop %v4185
  %v4236 = vmul.f32 %v4185, %v4235
  %v4237 = vsub.f32 1.0, %v4236
  %v4238 = vmul.f32 %v4235, %v4237
  %v4239 = vadd.f32 %v4235, %v4238
  %vm4240 = vweird.f32 %v4185
  %vm4241 = vweird.f32 %v4235
  %vm4242 = vmor %vm4240, %vm4241
  %v4243 = vsel %vm4242, %v4235, %v4239
  %v4244 = vand.u32 2147483647, %v4185
  %vm4245 = vcmp.eq.f32.partialorder %v4244, 8.507059e+37
  %v4246 = vand.u32 %v4185, 2147483648
  %v4247 = vor.u32 1.1754944e-38, %v4246
  %v4248 = vsel %vm4245, %v4247, %v4243
  %v4249 = vmul.f32 1.0, %v4248
  %v4250 = vrcp.pop %v4186
  %v4251 = vmul.f32 %v4186, %v4250
  %v4252 = vsub.f32 1.0, %v4251
  %v4253 = vmul.f32 %v4250, %v4252
  %v4254 = vadd.f32 %v4250, %v4253
  %vm4255 = vweird.f32 %v4186
  %vm4256 = vweird.f32 %v4250
  %vm4257 = vmor %vm4255, %vm4256
  %v4258 = vsel %vm4257, %v4250, %v4254
  %v4259 = vand.u32 2147483647, %v4186
  %vm4260 = vcmp.eq.f32.partialorder %v4259, 8.507059e+37
  %v4261 = vand.u32 %v4186, 2147483648
  %v4262 = vor.u32 1.1754944e-38, %v4261
  %v4263 = vsel %vm4260, %v4262, %v4258
  %v4264 = vmul.f32 1.0, %v4263
  %v4265 = vrcp.pop %v4187
  %v4266 = vmul.f32 %v4187, %v4265
  %v4267 = vsub.f32 1.0, %v4266
  %v4268 = vmul.f32 %v4265, %v4267
  %v4269 = vadd.f32 %v4265, %v4268
  %vm4270 = vweird.f32 %v4187
  %vm4271 = vweird.f32 %v4265
  %vm4272 = vmor %vm4270, %vm4271
  %v4273 = vsel %vm4272, %v4265, %v4269
  %v4274 = vand.u32 2147483647, %v4187
  %vm4275 = vcmp.eq.f32.partialorder %v4274, 8.507059e+37
  %v4276 = vand.u32 %v4187, 2147483648
  %v4277 = vor.u32 1.1754944e-38, %v4276
  %v4278 = vsel %vm4275, %v4277, %v4273
  %v4279 = vmul.f32 1.0, %v4278
  %v4280 = vrcp.pop %v4188
  %v4281 = vmul.f32 %v4188, %v4280
  %v4282 = vsub.f32 1.0, %v4281
  %v4283 = vmul.f32 %v4280, %v4282
  %v4284 = vadd.f32 %v4280, %v4283
  %vm4285 = vweird.f32 %v4188
  %vm4286 = vweird.f32 %v4280
  %vm4287 = vmor %vm4285, %vm4286
  %v4288 = vsel %vm4287, %v4280, %v4284
  %v4289 = vand.u32 2147483647, %v4188
  %vm4290 = vcmp.eq.f32.partialorder %v4289, 8.507059e+37
  %v4291 = vand.u32 %v4188, 2147483648
  %v4292 = vor.u32 1.1754944e-38, %v4291
  %v4293 = vsel %vm4290, %v4292, %v4288
  %v4294 = vmul.f32 1.0, %v4293
  %v4295 = vrcp.pop %v4189
  %v4296 = vmul.f32 %v4189, %v4295
  %v4297 = vsub.f32 1.0, %v4296
  %v4298 = vmul.f32 %v4295, %v4297
  %v4299 = vadd.f32 %v4295, %v4298
  %vm4300 = vweird.f32 %v4189
  %vm4301 = vweird.f32 %v4295
  %vm4302 = vmor %vm4300, %vm4301
  %v4303 = vsel %vm4302, %v4295, %v4299
  %v4304 = vand.u32 2147483647, %v4189
  %vm4305 = vcmp.eq.f32.partialorder %v4304, 8.507059e+37
  %v4306 = vand.u32 %v4189, 2147483648
  %v4307 = vor.u32 1.1754944e-38, %v4306
  %v4308 = vsel %vm4305, %v4307, %v4303
  %v4309 = vmul.f32 1.0, %v4308
  %v4310 = vmul.f32 %v4135, %v4204
  %v4311 = vmul.f32 %v4138, %v4219
  %v4312 = vmul.f32 %v4141, %v4234
  %v4313 = vmul.f32 %v4144, %v4249
  %v4314 = vmul.f32 %v4147, %v4264
  %v4315 = vmul.f32 %v4150, %v4279
  %v4316 = vmul.f32 %v4153, %v4294
  %v4317 = vmul.f32 %v4156, %v4309
  %4326 = vrot.lane.b32.xlu0 %v4135, 64
  %v4327 = vpop.permute.xlu0 %4326
  %4328 = vrot.lane.b32.xlu0 %v4138, 64
  %v4329 = vpop.permute.xlu0 %4328
  %4330 = vrot.lane.b32.xlu0 %v4141, 64
  %v4331 = vpop.permute.xlu0 %4330
  %4332 = vrot.lane.b32.xlu0 %v4144, 64
  %v4333 = vpop.permute.xlu0 %4332
  %4334 = vrot.lane.b32.xlu0 %v4147, 64
  %v4335 = vpop.permute.xlu0 %4334
  %4336 = vrot.lane.b32.xlu0 %v4150, 64
  %v4337 = vpop.permute.xlu0 %4336
  %4338 = vrot.lane.b32.xlu0 %v4153, 64
  %v4339 = vpop.permute.xlu0 %4338
  %4340 = vrot.lane.b32.xlu0 %v4156, 64
  %v4341 = vpop.permute.xlu0 %4340
  %v4350 = vmul.f32 %v4310, %v4327
  %v4351 = vmul.f32 %v4311, %v4329
  %v4352 = vmul.f32 %v4312, %v4331
  %v4353 = vmul.f32 %v4313, %v4333
  %v4354 = vmul.f32 %v4314, %v4335
  %v4355 = vmul.f32 %v4315, %v4337
  %v4356 = vmul.f32 %v4316, %v4339
  %v4357 = vmul.f32 %v4317, %v4341
  %v4358 = vld [vmem:[%s9] sm:$0xff]
  %v4359 = vld [vmem:[%s9 + $0x8] sm:$0xff]
  %v4360 = vld [vmem:[%s9 + $0x10] sm:$0xff]
  %v4361 = vld [vmem:[%s9 + $0x18] sm:$0xff]
  %v4362 = vld [vmem:[%s9 + $0x20] sm:$0xff]
  %v4363 = vld [vmem:[%s9 + $0x28] sm:$0xff]
  %v4364 = vld [vmem:[%s9 + $0x30] sm:$0xff]
  %v4365 = vld [vmem:[%s9 + $0x38] sm:$0xff]
  %4374 = vrot.lane.b32.xlu0 %v4350, 64
  %v4375 = vpop.permute.xlu0 %4374
  %4376 = vrot.lane.b32.xlu0 %v4351, 64
  %v4377 = vpop.permute.xlu0 %4376
  %4378 = vrot.lane.b32.xlu0 %v4352, 64
  %v4379 = vpop.permute.xlu0 %4378
  %4380 = vrot.lane.b32.xlu0 %v4353, 64
  %v4381 = vpop.permute.xlu0 %4380
  %4382 = vrot.lane.b32.xlu0 %v4354, 64
  %v4383 = vpop.permute.xlu0 %4382
  %4384 = vrot.lane.b32.xlu0 %v4355, 64
  %v4385 = vpop.permute.xlu0 %4384
  %4386 = vrot.lane.b32.xlu0 %v4356, 64
  %v4387 = vpop.permute.xlu0 %4386
  %4388 = vrot.lane.b32.xlu0 %v4357, 64
  %v4389 = vpop.permute.xlu0 %4388
  %vm4390 = vcmask 523264
  %v4391 = vsel %vm4390, %v4375, 0
  %v4393 = vsel %vm4390, %v4377, 0
  %v4395 = vsel %vm4390, %v4379, 0
  %v4397 = vsel %vm4390, %v4381, 0
  %v4399 = vsel %vm4390, %v4383, 0
  %v4401 = vsel %vm4390, %v4385, 0
  %v4403 = vsel %vm4390, %v4387, 0
  %v4405 = vsel %vm4390, %v4389, 0
  %4407 = vmatpush.msra.mxu0 0.0
  %4408 = vmatpush.msra.mxu0 0.0
  %4409 = vmatpush.msra.mxu0 0.0
  %4410 = vmatpush.msra.mxu0 0.0
  %4411 = vmatpush.msra.mxu0 0.0
  %4412 = vmatpush.msra.mxu0 0.0
  %4413 = vmatpush.msra.mxu0 0.0
  %4414 = vmatpush.msra.mxu0 0.0
  %4415 = vmatpush.msra.mxu0 %v4365
  %4416 = vmatpush.msra.mxu0 %v4364
  %4417 = vmatpush.msra.mxu0 %v4363
  %4418 = vmatpush.msra.mxu0 %v4362
  %4419 = vmatpush.msra.mxu0 %v4361
  %4420 = vmatpush.msra.mxu0 %v4360
  %4421 = vmatpush.msra.mxu0 %v4359
  %4422 = vmatpush.msra.mxu0 %v4358
  %4423 = vmatmul.f32.gmra.mxu0 %v4391
  %v4424 = vpop.f32.mrf.mxu0
  %v4425 = vadd.f32 0.0, %v4424
  %4426 = vmatmul.f32.gmra.mxu0 %v4393
  %v4427 = vpop.f32.mrf.mxu0
  %v4428 = vadd.f32 0.0, %v4427
  %4429 = vmatmul.f32.gmra.mxu0 %v4395
  %v4430 = vpop.f32.mrf.mxu0
  %v4431 = vadd.f32 0.0, %v4430
  %4432 = vmatmul.f32.gmra.mxu0 %v4397
  %v4433 = vpop.f32.mrf.mxu0
  %v4434 = vadd.f32 0.0, %v4433
  %4435 = vmatmul.f32.gmra.mxu0 %v4399
  %v4436 = vpop.f32.mrf.mxu0
  %v4437 = vadd.f32 0.0, %v4436
  %4438 = vmatmul.f32.gmra.mxu0 %v4401
  %v4439 = vpop.f32.mrf.mxu0
  %v4440 = vadd.f32 0.0, %v4439
  %4441 = vmatmul.f32.gmra.mxu0 %v4403
  %v4442 = vpop.f32.mrf.mxu0
  %v4443 = vadd.f32 0.0, %v4442
  %4444 = vmatmul.f32.gmra.mxu0 %v4405
  %v4445 = vpop.f32.mrf.mxu0
  %v4446 = vadd.f32 0.0, %v4445
  %4447 = vdwg.mxu0
  %v4448 = vadd.f32 %v3933, %v4425
  %v4449 = vadd.f32 %v3934, %v4428
  %v4450 = vadd.f32 %v3935, %v4431
  %v4451 = vadd.f32 %v3936, %v4434
  %v4452 = vadd.f32 %v3937, %v4437
  %v4453 = vadd.f32 %v3938, %v4440
  %v4454 = vadd.f32 %v3939, %v4443
  %v4455 = vadd.f32 %v3940, %v4446
  %4456 = vst.msk [vmem:[%s10] sm:$0xff] %vm319, %v4448
  %4457 = vst.msk [vmem:[%s10 + $0x8] sm:$0xff] %vm319, %v4449
  %4458 = vst.msk [vmem:[%s10 + $0x10] sm:$0xff] %vm319, %v4450
  %4459 = vst.msk [vmem:[%s10 + $0x18] sm:$0xff] %vm319, %v4451
  %4460 = vst.msk [vmem:[%s10 + $0x20] sm:$0xff] %vm319, %v4452
  %4461 = vst.msk [vmem:[%s10 + $0x28] sm:$0xff] %vm319, %v4453
  %4462 = vst.msk [vmem:[%s10 + $0x30] sm:$0xff] %vm319, %v4454
  %4463 = vst.msk [vmem:[%s10 + $0x38] sm:$0xff] %vm319, %v4455
  // Predicated region
  $region42: #{tpu_custom_call.1} parent=0 // pred_check
    _
  $region43: #{tpu_custom_call.1} parent=0 // pred_check_branch
    %4465 = sbr.rel (0) target = $region45
  $region44: #{tpu_custom_call.1} parent=0 // pred_region
    _
  $region45: #{tpu_custom_call.1} parent=0 // pred_fallthru
    _
  // Predicated region
  $region46: #{tpu_custom_call.1} parent=0 // pred_check
    _
  $region47: #{tpu_custom_call.1} parent=0 // pred_check_branch
    %4467 = sbr.rel (0) target = $region49
  $region48: #{tpu_custom_call.1} parent=0 // pred_region
    _
  $region49: #{tpu_custom_call.1} parent=0 // pred_fallthru
    _

</llo_original>
